<compile_context>
chip_gen: v6e
topology: v6e:2x2x1
jax: 0.10.0
libtpu: 0.0.40
codegen_flags: <defaults>
</compile_context>

<pallas_src>
import jax
import jax.numpy as jnp
from jax import lax
from jax.experimental import pallas as pl
from jax.experimental.pallas import tpu as pltpu


# ----------------------------------------------------------------------------
# Fused per-image kernel: 4 x (padded strided-slice im2col + 1 dot + bias +
# LeakyReLU + eval-BN) + linear head + sigmoid.  Everything stays in VMEM.
# ----------------------------------------------------------------------------
def _make_kernel(block_dims):
    nb = len(block_dims)

    def kernel(*refs):
        x_ref = refs[0]
        blk_refs = [refs[1 + 4 * i: 1 + 4 * (i + 1)] for i in range(nb)]
        hw_ref = refs[1 + 4 * nb]          # [ds*ds, 128] head weight slab
        hb_ref = refs[2 + 4 * nb]          # [1, 1] head bias
        o_ref = refs[3 + 4 * nb]           # [1, 1, 1] output block (this image)
        scratch = refs[4 + 4 * nb:]        # (pad_i, col_i) * nb

        # Activation slab for this image: [H*W, Cin], channel minor.
        x = x_ref[0]

        for i, (H, W, Cin, Cout) in enumerate(block_dims):
            w_ref, b_ref, g_ref, s_ref = blk_refs[i]
            pad_ref = scratch[2 * i]       # [(H+2)*(W+2), Cin] zero-padded slab
            col_ref = scratch[2 * i + 1]   # [Ho*Wo, 9*Cin] im2col patches
            Ho = (H - 1) // 2 + 1
            Wo = (W - 1) // 2 + 1
            Wp = W + 2

            # Zero-pad the activation into the scratch (pad=1 on H and W).
            pad_ref[...] = jnp.zeros_like(pad_ref)
            for h in range(H):
                pad_ref[pl.ds((h + 1) * Wp + 1, W), :] = x[h * W:(h + 1) * W, :]

            # Gather the 9 taps with static strided sublane slices (stride 2
            # over the padded width) and lay them side by side in the im2col
            # scratch so the whole conv collapses into one MXU dot.
            for kh in range(3):
                for kw in range(3):
                    t = kh * 3 + kw
                    for ho in range(Ho):
                        base = (kh + 2 * ho) * Wp + kw
                        if Wo > 1:
                            piece = pad_ref[pl.ds(base, Wo, stride=2), :]
                        else:
                            piece = pad_ref[pl.ds(base, 1), :]
                        col_ref[pl.ds(ho * Wo, Wo), pl.ds(t * Cin, Cin)] = piece

            # Single fused 9-tap conv dot: [Ho*Wo, 9*Cin] @ [9*Cin, Cout].
            acc = jnp.dot(col_ref[...], w_ref[...],
                          preferred_element_type=jnp.float32)
            acc = acc + b_ref[...]                        # conv bias (1, Cout)
            acc = jnp.where(acc >= 0.0, acc, 0.2 * acc)   # LeakyReLU(0.2)
            acc = acc * g_ref[...] + s_ref[...]           # eval-mode BN / identity
            x = acc                                       # next block's input

        # Linear head: VPU multiply + XLU reductions (no padded matmul).
        prod = x * hw_ref[...]                            # [ds*ds, 128]
        per_row = jnp.sum(prod, axis=-1, keepdims=True)   # lane reduce
        logit = jnp.sum(per_row, axis=0, keepdims=True) + hb_ref[...]  # [1, 1]
        o_ref[0] = 1.0 / (1.0 + jnp.exp(-logit))          # exact sigmoid

    return kernel


# ----------------------------------------------------------------------------
# Parameter init (deterministic, matches module shapes; eval-mode BN folded)
# ----------------------------------------------------------------------------
def init_params(key, size, channels):
    chan_plan = [(channels, 16, False), (16, 32, True), (32, 64, True), (64, 128, True)]
    eps = 0.8
    blocks, block_dims = [], []
    H = W = size
    for cin, cout, bn in chan_plan:
        key, k1, k2, k3, k4 = jax.random.split(key, 5)
        w = jax.random.normal(k1, (3, 3, cin, cout), jnp.float32) * 0.1   # HWIO
        b = jax.random.normal(k2, (1, cout), jnp.float32) * 0.1
        if bn:
            gamma = 1.0 + 0.1 * jax.random.normal(k3, (1, cout), jnp.float32)
            beta = 0.1 * jax.random.normal(k4, (1, cout), jnp.float32)
            scale = gamma / jnp.sqrt(1.0 + eps)   # running_mean=0, running_var=1
            shift = beta
        else:
            scale = jnp.ones((1, cout), jnp.float32)
            shift = jnp.zeros((1, cout), jnp.float32)
        blocks.append(dict(w=w, w_flat=w.reshape(9 * cin, cout), b=b,
                           scale=scale, shift=shift))
        block_dims.append((H, W, cin, cout))
        H, W = (H - 1) // 2 + 1, (W - 1) // 2 + 1

    ds2 = H * W   # final spatial positions = (size // 16)**2 for size % 16 == 0
    key, k1, k2 = jax.random.split(key, 3)
    lin_w = jax.random.normal(k1, (128 * ds2, 1), jnp.float32) * 0.1
    lin_b = jax.random.normal(k2, (1, 1), jnp.float32) * 0.1
    # Reorder the head weight to NHWC row order: head_w[p, c] = lin_w[c*ds2 + p].
    head_w = lin_w.reshape(128, ds2).T                    # [ds*ds, 128]
    return dict(blocks=blocks, block_dims=block_dims,
                lin_w=lin_w, lin_b=lin_b, head_w=head_w)


# ----------------------------------------------------------------------------
# Forward pass (single fused Pallas call, batch-parallel grid) + JAX reference
# ----------------------------------------------------------------------------
def pallas_forward(img_nchw, params):
    N, C, H, W = img_nchw.shape
    x = jnp.transpose(img_nchw, (0, 2, 3, 1)).reshape(N, H * W, C)   # NHWC slabs

    block_dims = params['block_dims']
    args = [x]
    in_specs = [pl.BlockSpec((1, H * W, C), lambda n: (n, 0, 0))]
    for blk in params['blocks']:
        for name in ('w_flat', 'b', 'scale', 'shift'):
            a = blk[name]
            args.append(a)
            in_specs.append(pl.BlockSpec(a.shape, lambda n, nd=a.ndim: (0,) * nd))
    for a in (params['head_w'], params['lin_b']):
        args.append(a)
        in_specs.append(pl.BlockSpec(a.shape, lambda n, nd=a.ndim: (0,) * nd))

    scratch_shapes = []
    for (bh, bw, cin, cout) in block_dims:
        ho, wo = (bh - 1) // 2 + 1, (bw - 1) // 2 + 1
        scratch_shapes.append(pltpu.VMEM(((bh + 2) * (bw + 2), cin), jnp.float32))
        scratch_shapes.append(pltpu.VMEM((ho * wo, 9 * cin), jnp.float32))

    # Honest advisory cost estimate (true conv FLOPs only).
    flops = 0
    for (bh, bw, cin, cout) in block_dims:
        ho, wo = (bh - 1) // 2 + 1, (bw - 1) // 2 + 1
        flops += 2 * ho * wo * 9 * cin * cout + 6 * ho * wo * cout
    flops += 2 * params['head_w'].size + 4
    flops *= N
    bytes_accessed = sum(int(a.size) * a.dtype.itemsize for a in args) + N * 4

    out = pl.pallas_call(
        _make_kernel(block_dims),
        out_shape=jax.ShapeDtypeStruct((N, 1, 1), jnp.float32),
        grid_spec=pltpu.PrefetchScalarGridSpec(
            num_scalar_prefetch=0,
            grid=(N,),
            in_specs=in_specs,
            out_specs=pl.BlockSpec((1, 1, 1), lambda n: (n, 0, 0)),
            scratch_shapes=scratch_shapes),
        compiler_params=pltpu.CompilerParams(dimension_semantics=("parallel",)),
        cost_estimate=pl.CostEstimate(flops=int(flops), transcendentals=int(N),
                                      bytes_accessed=int(bytes_accessed)),
    )(*args)
    return out.reshape(N, 1)


def reference_forward(img_nchw, params):
    x = jnp.transpose(img_nchw, (0, 2, 3, 1))
    for blk in params['blocks']:
        y = lax.conv_general_dilated(
            x, blk['w'], window_strides=(2, 2), padding=((1, 1), (1, 1)),
            dimension_numbers=('NHWC', 'HWIO', 'NHWC'))
        y = y + blk['b']
        y = jnp.where(y >= 0.0, y, 0.2 * y)
        y = y * blk['scale'] + blk['shift']
        x = y
    flat = jnp.transpose(x, (0, 3, 1, 2)).reshape(x.shape[0], -1)   # PyTorch order
    return jax.nn.sigmoid(flat @ params['lin_w'] + params['lin_b'])


if __name__ == "__main__":
    SIZE, CHANNELS, BATCH = 16, 4, 2
    key = jax.random.PRNGKey(0)
    key, kimg = jax.random.split(key)
    img = jax.random.normal(kimg, (BATCH, CHANNELS, SIZE, SIZE), jnp.float32)

    params = init_params(key, SIZE, CHANNELS)

    out = jax.block_until_ready(pallas_forward(img, params))
    assert out.shape == (BATCH, 1), out.shape

    ref = jax.block_until_ready(reference_forward(img, params))
    assert jnp.allclose(out, ref, atol=1e-4, rtol=1e-4), (out, ref)

    print("KERNEL_OK")
</pallas_src>

<mosaic_0001>
module attributes {stable_mosaic.version = 11 : i64} {
  func.func @kernel(%arg0: i32, %arg1: memref<1x256x4xf32, #tpu.memory_space<vmem>>, %arg2: memref<36x16xf32, #tpu.memory_space<vmem>>, %arg3: memref<1x16xf32, #tpu.memory_space<vmem>>, %arg4: memref<1x16xf32, #tpu.memory_space<vmem>>, %arg5: memref<1x16xf32, #tpu.memory_space<vmem>>, %arg6: memref<144x32xf32, #tpu.memory_space<vmem>>, %arg7: memref<1x32xf32, #tpu.memory_space<vmem>>, %arg8: memref<1x32xf32, #tpu.memory_space<vmem>>, %arg9: memref<1x32xf32, #tpu.memory_space<vmem>>, %arg10: memref<288x64xf32, #tpu.memory_space<vmem>>, %arg11: memref<1x64xf32, #tpu.memory_space<vmem>>, %arg12: memref<1x64xf32, #tpu.memory_space<vmem>>, %arg13: memref<1x64xf32, #tpu.memory_space<vmem>>, %arg14: memref<576x128xf32, #tpu.memory_space<vmem>>, %arg15: memref<1x128xf32, #tpu.memory_space<vmem>>, %arg16: memref<1x128xf32, #tpu.memory_space<vmem>>, %arg17: memref<1x128xf32, #tpu.memory_space<vmem>>, %arg18: memref<1x128xf32, #tpu.memory_space<vmem>>, %arg19: memref<1x1xf32, #tpu.memory_space<vmem>>, %arg20: memref<1x1x1xf32, #tpu.memory_space<vmem>>, %arg21: memref<324x4xf32, #tpu.memory_space<vmem>>, %arg22: memref<64x36xf32, #tpu.memory_space<vmem>>, %arg23: memref<100x16xf32, #tpu.memory_space<vmem>>, %arg24: memref<16x144xf32, #tpu.memory_space<vmem>>, %arg25: memref<36x32xf32, #tpu.memory_space<vmem>>, %arg26: memref<4x288xf32, #tpu.memory_space<vmem>>, %arg27: memref<16x64xf32, #tpu.memory_space<vmem>>, %arg28: memref<1x576xf32, #tpu.memory_space<vmem>>) attributes {dimension_semantics = [#tpu.dimension_semantics<parallel>], iteration_bounds = array<i64: 2>, scalar_prefetch = 0 : i64, scratch_operands = 8 : i64, tpu.core_type = #tpu.core_type<tc>, window_params = [{transform_indices = @transform_0, window_bounds = array<i64: 1, 256, 4>}, {pipeline_mode = #tpu.pipeline_mode<synchronous>, transform_indices = @transform_1, window_bounds = array<i64: 36, 16>}, {pipeline_mode = #tpu.pipeline_mode<synchronous>, transform_indices = @transform_2, window_bounds = array<i64: 1, 16>}, {pipeline_mode = #tpu.pipeline_mode<synchronous>, transform_indices = @transform_3, window_bounds = array<i64: 1, 16>}, {pipeline_mode = #tpu.pipeline_mode<synchronous>, transform_indices = @transform_4, window_bounds = array<i64: 1, 16>}, {pipeline_mode = #tpu.pipeline_mode<synchronous>, transform_indices = @transform_5, window_bounds = array<i64: 144, 32>}, {pipeline_mode = #tpu.pipeline_mode<synchronous>, transform_indices = @transform_6, window_bounds = array<i64: 1, 32>}, {pipeline_mode = #tpu.pipeline_mode<synchronous>, transform_indices = @transform_7, window_bounds = array<i64: 1, 32>}, {pipeline_mode = #tpu.pipeline_mode<synchronous>, transform_indices = @transform_8, window_bounds = array<i64: 1, 32>}, {pipeline_mode = #tpu.pipeline_mode<synchronous>, transform_indices = @transform_9, window_bounds = array<i64: 288, 64>}, {pipeline_mode = #tpu.pipeline_mode<synchronous>, transform_indices = @transform_10, window_bounds = array<i64: 1, 64>}, {pipeline_mode = #tpu.pipeline_mode<synchronous>, transform_indices = @transform_11, window_bounds = array<i64: 1, 64>}, {pipeline_mode = #tpu.pipeline_mode<synchronous>, transform_indices = @transform_12, window_bounds = array<i64: 1, 64>}, {pipeline_mode = #tpu.pipeline_mode<synchronous>, transform_indices = @transform_13, window_bounds = array<i64: 576, 128>}, {pipeline_mode = #tpu.pipeline_mode<synchronous>, transform_indices = @transform_14, window_bounds = array<i64: 1, 128>}, {pipeline_mode = #tpu.pipeline_mode<synchronous>, transform_indices = @transform_15, window_bounds = array<i64: 1, 128>}, {pipeline_mode = #tpu.pipeline_mode<synchronous>, transform_indices = @transform_16, window_bounds = array<i64: 1, 128>}, {pipeline_mode = #tpu.pipeline_mode<synchronous>, transform_indices = @transform_17, window_bounds = array<i64: 1, 128>}, {pipeline_mode = #tpu.pipeline_mode<synchronous>, transform_indices = @transform_18, window_bounds = array<i64: 1, 1>}, {transform_indices = @transform_19, window_bounds = array<i64: 1, 1, 1>}]} {
    %c0 = arith.constant 0 : index
    %c0_0 = arith.constant 0 : index
    %c0_1 = arith.constant 0 : index
    %0 = vector.load %arg1[%c0, %c0_0, %c0_1] : memref<1x256x4xf32, #tpu.memory_space<vmem>>, vector<1x256x4xf32>
    %1 = vector.shape_cast %0 : vector<1x256x4xf32> to vector<256x4xf32>
    %cst = arith.constant 0.000000e+00 : f32
    %2 = vector.broadcast %cst : f32 to vector<324x4xf32>
    %c0_2 = arith.constant 0 : index
    %c0_3 = arith.constant 0 : index
    %3 = vector.load %arg21[%c0_2, %c0_3] : memref<324x4xf32, #tpu.memory_space<vmem>>, vector<324x4xf32>
    tpu.vector_store %arg21[%c0_2, %c0_3], %2 {strides = array<i32>} : memref<324x4xf32, #tpu.memory_space<vmem>>, vector<324x4xf32>,
    %4 = vector.extract_strided_slice %1 {offsets = [0, 0], sizes = [16, 4], strides = [1, 1]} : vector<256x4xf32> to vector<16x4xf32>
    %c19 = arith.constant 19 : index
    %c0_4 = arith.constant 0 : index
    %5 = vector.load %arg21[%c19, %c0_4] : memref<324x4xf32, #tpu.memory_space<vmem>>, vector<16x4xf32>
    tpu.vector_store %arg21[%c19, %c0_4], %4 {strides = array<i32>} : memref<324x4xf32, #tpu.memory_space<vmem>>, vector<16x4xf32>,
    %6 = vector.extract_strided_slice %1 {offsets = [16, 0], sizes = [16, 4], strides = [1, 1]} : vector<256x4xf32> to vector<16x4xf32>
    %c37 = arith.constant 37 : index
    %c0_5 = arith.constant 0 : index
    %7 = vector.load %arg21[%c37, %c0_5] : memref<324x4xf32, #tpu.memory_space<vmem>>, vector<16x4xf32>
    tpu.vector_store %arg21[%c37, %c0_5], %6 {strides = array<i32>} : memref<324x4xf32, #tpu.memory_space<vmem>>, vector<16x4xf32>,
    %8 = vector.extract_strided_slice %1 {offsets = [32, 0], sizes = [16, 4], strides = [1, 1]} : vector<256x4xf32> to vector<16x4xf32>
    %c55 = arith.constant 55 : index
    %c0_6 = arith.constant 0 : index
    %9 = vector.load %arg21[%c55, %c0_6] : memref<324x4xf32, #tpu.memory_space<vmem>>, vector<16x4xf32>
    tpu.vector_store %arg21[%c55, %c0_6], %8 {strides = array<i32>} : memref<324x4xf32, #tpu.memory_space<vmem>>, vector<16x4xf32>,
    %10 = vector.extract_strided_slice %1 {offsets = [48, 0], sizes = [16, 4], strides = [1, 1]} : vector<256x4xf32> to vector<16x4xf32>
    %c73 = arith.constant 73 : index
    %c0_7 = arith.constant 0 : index
    %11 = vector.load %arg21[%c73, %c0_7] : memref<324x4xf32, #tpu.memory_space<vmem>>, vector<16x4xf32>
    tpu.vector_store %arg21[%c73, %c0_7], %10 {strides = array<i32>} : memref<324x4xf32, #tpu.memory_space<vmem>>, vector<16x4xf32>,
    %12 = vector.extract_strided_slice %1 {offsets = [64, 0], sizes = [16, 4], strides = [1, 1]} : vector<256x4xf32> to vector<16x4xf32>
    %c91 = arith.constant 91 : index
    %c0_8 = arith.constant 0 : index
    %13 = vector.load %arg21[%c91, %c0_8] : memref<324x4xf32, #tpu.memory_space<vmem>>, vector<16x4xf32>
    tpu.vector_store %arg21[%c91, %c0_8], %12 {strides = array<i32>} : memref<324x4xf32, #tpu.memory_space<vmem>>, vector<16x4xf32>,
    %14 = vector.extract_strided_slice %1 {offsets = [80, 0], sizes = [16, 4], strides = [1, 1]} : vector<256x4xf32> to vector<16x4xf32>
    %c109 = arith.constant 109 : index
    %c0_9 = arith.constant 0 : index
    %15 = vector.load %arg21[%c109, %c0_9] : memref<324x4xf32, #tpu.memory_space<vmem>>, vector<16x4xf32>
    tpu.vector_store %arg21[%c109, %c0_9], %14 {strides = array<i32>} : memref<324x4xf32, #tpu.memory_space<vmem>>, vector<16x4xf32>,
    %16 = vector.extract_strided_slice %1 {offsets = [96, 0], sizes = [16, 4], strides = [1, 1]} : vector<256x4xf32> to vector<16x4xf32>
    %c127 = arith.constant 127 : index
    %c0_10 = arith.constant 0 : index
    %17 = vector.load %arg21[%c127, %c0_10] : memref<324x4xf32, #tpu.memory_space<vmem>>, vector<16x4xf32>
    tpu.vector_store %arg21[%c127, %c0_10], %16 {strides = array<i32>} : memref<324x4xf32, #tpu.memory_space<vmem>>, vector<16x4xf32>,
    %18 = vector.extract_strided_slice %1 {offsets = [112, 0], sizes = [16, 4], strides = [1, 1]} : vector<256x4xf32> to vector<16x4xf32>
    %c145 = arith.constant 145 : index
    %c0_11 = arith.constant 0 : index
    %19 = vector.load %arg21[%c145, %c0_11] : memref<324x4xf32, #tpu.memory_space<vmem>>, vector<16x4xf32>
    tpu.vector_store %arg21[%c145, %c0_11], %18 {strides = array<i32>} : memref<324x4xf32, #tpu.memory_space<vmem>>, vector<16x4xf32>,
    %20 = vector.extract_strided_slice %1 {offsets = [128, 0], sizes = [16, 4], strides = [1, 1]} : vector<256x4xf32> to vector<16x4xf32>
    %c163 = arith.constant 163 : index
    %c0_12 = arith.constant 0 : index
    %21 = vector.load %arg21[%c163, %c0_12] : memref<324x4xf32, #tpu.memory_space<vmem>>, vector<16x4xf32>
    tpu.vector_store %arg21[%c163, %c0_12], %20 {strides = array<i32>} : memref<324x4xf32, #tpu.memory_space<vmem>>, vector<16x4xf32>,
    %22 = vector.extract_strided_slice %1 {offsets = [144, 0], sizes = [16, 4], strides = [1, 1]} : vector<256x4xf32> to vector<16x4xf32>
    %c181 = arith.constant 181 : index
    %c0_13 = arith.constant 0 : index
    %23 = vector.load %arg21[%c181, %c0_13] : memref<324x4xf32, #tpu.memory_space<vmem>>, vector<16x4xf32>
    tpu.vector_store %arg21[%c181, %c0_13], %22 {strides = array<i32>} : memref<324x4xf32, #tpu.memory_space<vmem>>, vector<16x4xf32>,
    %24 = vector.extract_strided_slice %1 {offsets = [160, 0], sizes = [16, 4], strides = [1, 1]} : vector<256x4xf32> to vector<16x4xf32>
    %c199 = arith.constant 199 : index
    %c0_14 = arith.constant 0 : index
    %25 = vector.load %arg21[%c199, %c0_14] : memref<324x4xf32, #tpu.memory_space<vmem>>, vector<16x4xf32>
    tpu.vector_store %arg21[%c199, %c0_14], %24 {strides = array<i32>} : memref<324x4xf32, #tpu.memory_space<vmem>>, vector<16x4xf32>,
    %26 = vector.extract_strided_slice %1 {offsets = [176, 0], sizes = [16, 4], strides = [1, 1]} : vector<256x4xf32> to vector<16x4xf32>
    %c217 = arith.constant 217 : index
    %c0_15 = arith.constant 0 : index
    %27 = vector.load %arg21[%c217, %c0_15] : memref<324x4xf32, #tpu.memory_space<vmem>>, vector<16x4xf32>
    tpu.vector_store %arg21[%c217, %c0_15], %26 {strides = array<i32>} : memref<324x4xf32, #tpu.memory_space<vmem>>, vector<16x4xf32>,
    %28 = vector.extract_strided_slice %1 {offsets = [192, 0], sizes = [16, 4], strides = [1, 1]} : vector<256x4xf32> to vector<16x4xf32>
    %c235 = arith.constant 235 : index
    %c0_16 = arith.constant 0 : index
    %29 = vector.load %arg21[%c235, %c0_16] : memref<324x4xf32, #tpu.memory_space<vmem>>, vector<16x4xf32>
    tpu.vector_store %arg21[%c235, %c0_16], %28 {strides = array<i32>} : memref<324x4xf32, #tpu.memory_space<vmem>>, vector<16x4xf32>,
    %30 = vector.extract_strided_slice %1 {offsets = [208, 0], sizes = [16, 4], strides = [1, 1]} : vector<256x4xf32> to vector<16x4xf32>
    %c253 = arith.constant 253 : index
    %c0_17 = arith.constant 0 : index
    %31 = vector.load %arg21[%c253, %c0_17] : memref<324x4xf32, #tpu.memory_space<vmem>>, vector<16x4xf32>
    tpu.vector_store %arg21[%c253, %c0_17], %30 {strides = array<i32>} : memref<324x4xf32, #tpu.memory_space<vmem>>, vector<16x4xf32>,
    %32 = vector.extract_strided_slice %1 {offsets = [224, 0], sizes = [16, 4], strides = [1, 1]} : vector<256x4xf32> to vector<16x4xf32>
    %c271 = arith.constant 271 : index
    %c0_18 = arith.constant 0 : index
    %33 = vector.load %arg21[%c271, %c0_18] : memref<324x4xf32, #tpu.memory_space<vmem>>, vector<16x4xf32>
    tpu.vector_store %arg21[%c271, %c0_18], %32 {strides = array<i32>} : memref<324x4xf32, #tpu.memory_space<vmem>>, vector<16x4xf32>,
    %34 = vector.extract_strided_slice %1 {offsets = [240, 0], sizes = [16, 4], strides = [1, 1]} : vector<256x4xf32> to vector<16x4xf32>
    %c289 = arith.constant 289 : index
    %c0_19 = arith.constant 0 : index
    %35 = vector.load %arg21[%c289, %c0_19] : memref<324x4xf32, #tpu.memory_space<vmem>>, vector<16x4xf32>
    tpu.vector_store %arg21[%c289, %c0_19], %34 {strides = array<i32>} : memref<324x4xf32, #tpu.memory_space<vmem>>, vector<16x4xf32>,
    %c0_20 = arith.constant 0 : index
    %c0_21 = arith.constant 0 : index
    %36 = tpu.strided_load %arg21[%c0_20, %c0_21] {strides = array<i32: 2, 1>} : memref<324x4xf32, #tpu.memory_space<vmem>>, vector<8x4xf32>
    %c0_22 = arith.constant 0 : index
    %c0_23 = arith.constant 0 : index
    %37 = vector.load %arg22[%c0_22, %c0_23] : memref<64x36xf32, #tpu.memory_space<vmem>>, vector<8x4xf32>
    tpu.vector_store %arg22[%c0_22, %c0_23], %36 {strides = array<i32>} : memref<64x36xf32, #tpu.memory_space<vmem>>, vector<8x4xf32>,
    %c36 = arith.constant 36 : index
    %c0_24 = arith.constant 0 : index
    %38 = tpu.strided_load %arg21[%c36, %c0_24] {strides = array<i32: 2, 1>} : memref<324x4xf32, #tpu.memory_space<vmem>>, vector<8x4xf32>
    %c8 = arith.constant 8 : index
    %c0_25 = arith.constant 0 : index
    %39 = vector.load %arg22[%c8, %c0_25] : memref<64x36xf32, #tpu.memory_space<vmem>>, vector<8x4xf32>
    tpu.vector_store %arg22[%c8, %c0_25], %38 {strides = array<i32>} : memref<64x36xf32, #tpu.memory_space<vmem>>, vector<8x4xf32>,
    %c72 = arith.constant 72 : index
    %c0_26 = arith.constant 0 : index
    %40 = tpu.strided_load %arg21[%c72, %c0_26] {strides = array<i32: 2, 1>} : memref<324x4xf32, #tpu.memory_space<vmem>>, vector<8x4xf32>
    %c16 = arith.constant 16 : index
    %c0_27 = arith.constant 0 : index
    %41 = vector.load %arg22[%c16, %c0_27] : memref<64x36xf32, #tpu.memory_space<vmem>>, vector<8x4xf32>
    tpu.vector_store %arg22[%c16, %c0_27], %40 {strides = array<i32>} : memref<64x36xf32, #tpu.memory_space<vmem>>, vector<8x4xf32>,
    %c108 = arith.constant 108 : index
    %c0_28 = arith.constant 0 : index
    %42 = tpu.strided_load %arg21[%c108, %c0_28] {strides = array<i32: 2, 1>} : memref<324x4xf32, #tpu.memory_space<vmem>>, vector<8x4xf32>
    %c24 = arith.constant 24 : index
    %c0_29 = arith.constant 0 : index
    %43 = vector.load %arg22[%c24, %c0_29] : memref<64x36xf32, #tpu.memory_space<vmem>>, vector<8x4xf32>
    tpu.vector_store %arg22[%c24, %c0_29], %42 {strides = array<i32>} : memref<64x36xf32, #tpu.memory_space<vmem>>, vector<8x4xf32>,
    %c144 = arith.constant 144 : index
    %c0_30 = arith.constant 0 : index
    %44 = tpu.strided_load %arg21[%c144, %c0_30] {strides = array<i32: 2, 1>} : memref<324x4xf32, #tpu.memory_space<vmem>>, vector<8x4xf32>
    %c32 = arith.constant 32 : index
    %c0_31 = arith.constant 0 : index
    %45 = vector.load %arg22[%c32, %c0_31] : memref<64x36xf32, #tpu.memory_space<vmem>>, vector<8x4xf32>
    tpu.vector_store %arg22[%c32, %c0_31], %44 {strides = array<i32>} : memref<64x36xf32, #tpu.memory_space<vmem>>, vector<8x4xf32>,
    %c180 = arith.constant 180 : index
    %c0_32 = arith.constant 0 : index
    %46 = tpu.strided_load %arg21[%c180, %c0_32] {strides = array<i32: 2, 1>} : memref<324x4xf32, #tpu.memory_space<vmem>>, vector<8x4xf32>
    %c40 = arith.constant 40 : index
    %c0_33 = arith.constant 0 : index
    %47 = vector.load %arg22[%c40, %c0_33] : memref<64x36xf32, #tpu.memory_space<vmem>>, vector<8x4xf32>
    tpu.vector_store %arg22[%c40, %c0_33], %46 {strides = array<i32>} : memref<64x36xf32, #tpu.memory_space<vmem>>, vector<8x4xf32>,
    %c216 = arith.constant 216 : index
    %c0_34 = arith.constant 0 : index
    %48 = tpu.strided_load %arg21[%c216, %c0_34] {strides = array<i32: 2, 1>} : memref<324x4xf32, #tpu.memory_space<vmem>>, vector<8x4xf32>
    %c48 = arith.constant 48 : index
    %c0_35 = arith.constant 0 : index
    %49 = vector.load %arg22[%c48, %c0_35] : memref<64x36xf32, #tpu.memory_space<vmem>>, vector<8x4xf32>
    tpu.vector_store %arg22[%c48, %c0_35], %48 {strides = array<i32>} : memref<64x36xf32, #tpu.memory_space<vmem>>, vector<8x4xf32>,
    %c252 = arith.constant 252 : index
    %c0_36 = arith.constant 0 : index
    %50 = tpu.strided_load %arg21[%c252, %c0_36] {strides = array<i32: 2, 1>} : memref<324x4xf32, #tpu.memory_space<vmem>>, vector<8x4xf32>
    %c56 = arith.constant 56 : index
    %c0_37 = arith.constant 0 : index
    %51 = vector.load %arg22[%c56, %c0_37] : memref<64x36xf32, #tpu.memory_space<vmem>>, vector<8x4xf32>
    tpu.vector_store %arg22[%c56, %c0_37], %50 {strides = array<i32>} : memref<64x36xf32, #tpu.memory_space<vmem>>, vector<8x4xf32>,
    %c1 = arith.constant 1 : index
    %c0_38 = arith.constant 0 : index
    %52 = tpu.strided_load %arg21[%c1, %c0_38] {strides = array<i32: 2, 1>} : memref<324x4xf32, #tpu.memory_space<vmem>>, vector<8x4xf32>
    %c0_39 = arith.constant 0 : index
    %c4 = arith.constant 4 : index
    %53 = vector.load %arg22[%c0_39, %c4] : memref<64x36xf32, #tpu.memory_space<vmem>>, vector<8x4xf32>
    tpu.vector_store %arg22[%c0_39, %c4], %52 {strides = array<i32>} : memref<64x36xf32, #tpu.memory_space<vmem>>, vector<8x4xf32>,
    %c37_40 = arith.constant 37 : index
    %c0_41 = arith.constant 0 : index
    %54 = tpu.strided_load %arg21[%c37_40, %c0_41] {strides = array<i32: 2, 1>} : memref<324x4xf32, #tpu.memory_space<vmem>>, vector<8x4xf32>
    %c8_42 = arith.constant 8 : index
    %c4_43 = arith.constant 4 : index
    %55 = vector.load %arg22[%c8_42, %c4_43] : memref<64x36xf32, #tpu.memory_space<vmem>>, vector<8x4xf32>
    tpu.vector_store %arg22[%c8_42, %c4_43], %54 {strides = array<i32>} : memref<64x36xf32, #tpu.memory_space<vmem>>, vector<8x4xf32>,
    %c73_44 = arith.constant 73 : index
    %c0_45 = arith.constant 0 : index
    %56 = tpu.strided_load %arg21[%c73_44, %c0_45] {strides = array<i32: 2, 1>} : memref<324x4xf32, #tpu.memory_space<vmem>>, vector<8x4xf32>
    %c16_46 = arith.constant 16 : index
    %c4_47 = arith.constant 4 : index
    %57 = vector.load %arg22[%c16_46, %c4_47] : memref<64x36xf32, #tpu.memory_space<vmem>>, vector<8x4xf32>
    tpu.vector_store %arg22[%c16_46, %c4_47], %56 {strides = array<i32>} : memref<64x36xf32, #tpu.memory_space<vmem>>, vector<8x4xf32>,
    %c109_48 = arith.constant 109 : index
    %c0_49 = arith.constant 0 : index
    %58 = tpu.strided_load %arg21[%c109_48, %c0_49] {strides = array<i32: 2, 1>} : memref<324x4xf32, #tpu.memory_space<vmem>>, vector<8x4xf32>
    %c24_50 = arith.constant 24 : index
    %c4_51 = arith.constant 4 : index
    %59 = vector.load %arg22[%c24_50, %c4_51] : memref<64x36xf32, #tpu.memory_space<vmem>>, vector<8x4xf32>
    tpu.vector_store %arg22[%c24_50, %c4_51], %58 {strides = array<i32>} : memref<64x36xf32, #tpu.memory_space<vmem>>, vector<8x4xf32>,
    %c145_52 = arith.constant 145 : index
    %c0_53 = arith.constant 0 : index
    %60 = tpu.strided_load %arg21[%c145_52, %c0_53] {strides = array<i32: 2, 1>} : memref<324x4xf32, #tpu.memory_space<vmem>>, vector<8x4xf32>
    %c32_54 = arith.constant 32 : index
    %c4_55 = arith.constant 4 : index
    %61 = vector.load %arg22[%c32_54, %c4_55] : memref<64x36xf32, #tpu.memory_space<vmem>>, vector<8x4xf32>
    tpu.vector_store %arg22[%c32_54, %c4_55], %60 {strides = array<i32>} : memref<64x36xf32, #tpu.memory_space<vmem>>, vector<8x4xf32>,
    %c181_56 = arith.constant 181 : index
    %c0_57 = arith.constant 0 : index
    %62 = tpu.strided_load %arg21[%c181_56, %c0_57] {strides = array<i32: 2, 1>} : memref<324x4xf32, #tpu.memory_space<vmem>>, vector<8x4xf32>
    %c40_58 = arith.constant 40 : index
    %c4_59 = arith.constant 4 : index
    %63 = vector.load %arg22[%c40_58, %c4_59] : memref<64x36xf32, #tpu.memory_space<vmem>>, vector<8x4xf32>
    tpu.vector_store %arg22[%c40_58, %c4_59], %62 {strides = array<i32>} : memref<64x36xf32, #tpu.memory_space<vmem>>, vector<8x4xf32>,
    %c217_60 = arith.constant 217 : index
    %c0_61 = arith.constant 0 : index
    %64 = tpu.strided_load %arg21[%c217_60, %c0_61] {strides = array<i32: 2, 1>} : memref<324x4xf32, #tpu.memory_space<vmem>>, vector<8x4xf32>
    %c48_62 = arith.constant 48 : index
    %c4_63 = arith.constant 4 : index
    %65 = vector.load %arg22[%c48_62, %c4_63] : memref<64x36xf32, #tpu.memory_space<vmem>>, vector<8x4xf32>
    tpu.vector_store %arg22[%c48_62, %c4_63], %64 {strides = array<i32>} : memref<64x36xf32, #tpu.memory_space<vmem>>, vector<8x4xf32>,
    %c253_64 = arith.constant 253 : index
    %c0_65 = arith.constant 0 : index
    %66 = tpu.strided_load %arg21[%c253_64, %c0_65] {strides = array<i32: 2, 1>} : memref<324x4xf32, #tpu.memory_space<vmem>>, vector<8x4xf32>
    %c56_66 = arith.constant 56 : index
    %c4_67 = arith.constant 4 : index
    %67 = vector.load %arg22[%c56_66, %c4_67] : memref<64x36xf32, #tpu.memory_space<vmem>>, vector<8x4xf32>
    tpu.vector_store %arg22[%c56_66, %c4_67], %66 {strides = array<i32>} : memref<64x36xf32, #tpu.memory_space<vmem>>, vector<8x4xf32>,
    %c2 = arith.constant 2 : index
    %c0_68 = arith.constant 0 : index
    %68 = tpu.strided_load %arg21[%c2, %c0_68] {strides = array<i32: 2, 1>} : memref<324x4xf32, #tpu.memory_space<vmem>>, vector<8x4xf32>
    %c0_69 = arith.constant 0 : index
    %c8_70 = arith.constant 8 : index
    %69 = vector.load %arg22[%c0_69, %c8_70] : memref<64x36xf32, #tpu.memory_space<vmem>>, vector<8x4xf32>
    tpu.vector_store %arg22[%c0_69, %c8_70], %68 {strides = array<i32>} : memref<64x36xf32, #tpu.memory_space<vmem>>, vector<8x4xf32>,
    %c38 = arith.constant 38 : index
    %c0_71 = arith.constant 0 : index
    %70 = tpu.strided_load %arg21[%c38, %c0_71] {strides = array<i32: 2, 1>} : memref<324x4xf32, #tpu.memory_space<vmem>>, vector<8x4xf32>
    %c8_72 = arith.constant 8 : index
    %c8_73 = arith.constant 8 : index
    %71 = vector.load %arg22[%c8_72, %c8_73] : memref<64x36xf32, #tpu.memory_space<vmem>>, vector<8x4xf32>
    tpu.vector_store %arg22[%c8_72, %c8_73], %70 {strides = array<i32>} : memref<64x36xf32, #tpu.memory_space<vmem>>, vector<8x4xf32>,
    %c74 = arith.constant 74 : index
    %c0_74 = arith.constant 0 : index
    %72 = tpu.strided_load %arg21[%c74, %c0_74] {strides = array<i32: 2, 1>} : memref<324x4xf32, #tpu.memory_space<vmem>>, vector<8x4xf32>
    %c16_75 = arith.constant 16 : index
    %c8_76 = arith.constant 8 : index
    %73 = vector.load %arg22[%c16_75, %c8_76] : memref<64x36xf32, #tpu.memory_space<vmem>>, vector<8x4xf32>
    tpu.vector_store %arg22[%c16_75, %c8_76], %72 {strides = array<i32>} : memref<64x36xf32, #tpu.memory_space<vmem>>, vector<8x4xf32>,
    %c110 = arith.constant 110 : index
    %c0_77 = arith.constant 0 : index
    %74 = tpu.strided_load %arg21[%c110, %c0_77] {strides = array<i32: 2, 1>} : memref<324x4xf32, #tpu.memory_space<vmem>>, vector<8x4xf32>
    %c24_78 = arith.constant 24 : index
    %c8_79 = arith.constant 8 : index
    %75 = vector.load %arg22[%c24_78, %c8_79] : memref<64x36xf32, #tpu.memory_space<vmem>>, vector<8x4xf32>
    tpu.vector_store %arg22[%c24_78, %c8_79], %74 {strides = array<i32>} : memref<64x36xf32, #tpu.memory_space<vmem>>, vector<8x4xf32>,
    %c146 = arith.constant 146 : index
    %c0_80 = arith.constant 0 : index
    %76 = tpu.strided_load %arg21[%c146, %c0_80] {strides = array<i32: 2, 1>} : memref<324x4xf32, #tpu.memory_space<vmem>>, vector<8x4xf32>
    %c32_81 = arith.constant 32 : index
    %c8_82 = arith.constant 8 : index
    %77 = vector.load %arg22[%c32_81, %c8_82] : memref<64x36xf32, #tpu.memory_space<vmem>>, vector<8x4xf32>
    tpu.vector_store %arg22[%c32_81, %c8_82], %76 {strides = array<i32>} : memref<64x36xf32, #tpu.memory_space<vmem>>, vector<8x4xf32>,
    %c182 = arith.constant 182 : index
    %c0_83 = arith.constant 0 : index
    %78 = tpu.strided_load %arg21[%c182, %c0_83] {strides = array<i32: 2, 1>} : memref<324x4xf32, #tpu.memory_space<vmem>>, vector<8x4xf32>
    %c40_84 = arith.constant 40 : index
    %c8_85 = arith.constant 8 : index
    %79 = vector.load %arg22[%c40_84, %c8_85] : memref<64x36xf32, #tpu.memory_space<vmem>>, vector<8x4xf32>
    tpu.vector_store %arg22[%c40_84, %c8_85], %78 {strides = array<i32>} : memref<64x36xf32, #tpu.memory_space<vmem>>, vector<8x4xf32>,
    %c218 = arith.constant 218 : index
    %c0_86 = arith.constant 0 : index
    %80 = tpu.strided_load %arg21[%c218, %c0_86] {strides = array<i32: 2, 1>} : memref<324x4xf32, #tpu.memory_space<vmem>>, vector<8x4xf32>
    %c48_87 = arith.constant 48 : index
    %c8_88 = arith.constant 8 : index
    %81 = vector.load %arg22[%c48_87, %c8_88] : memref<64x36xf32, #tpu.memory_space<vmem>>, vector<8x4xf32>
    tpu.vector_store %arg22[%c48_87, %c8_88], %80 {strides = array<i32>} : memref<64x36xf32, #tpu.memory_space<vmem>>, vector<8x4xf32>,
    %c254 = arith.constant 254 : index
    %c0_89 = arith.constant 0 : index
    %82 = tpu.strided_load %arg21[%c254, %c0_89] {strides = array<i32: 2, 1>} : memref<324x4xf32, #tpu.memory_space<vmem>>, vector<8x4xf32>
    %c56_90 = arith.constant 56 : index
    %c8_91 = arith.constant 8 : index
    %83 = vector.load %arg22[%c56_90, %c8_91] : memref<64x36xf32, #tpu.memory_space<vmem>>, vector<8x4xf32>
    tpu.vector_store %arg22[%c56_90, %c8_91], %82 {strides = array<i32>} : memref<64x36xf32, #tpu.memory_space<vmem>>, vector<8x4xf32>,
    %c18 = arith.constant 18 : index
    %c0_92 = arith.constant 0 : index
    %84 = tpu.strided_load %arg21[%c18, %c0_92] {strides = array<i32: 2, 1>} : memref<324x4xf32, #tpu.memory_space<vmem>>, vector<8x4xf32>
    %c0_93 = arith.constant 0 : index
    %c12 = arith.constant 12 : index
    %85 = vector.load %arg22[%c0_93, %c12] : memref<64x36xf32, #tpu.memory_space<vmem>>, vector<8x4xf32>
    tpu.vector_store %arg22[%c0_93, %c12], %84 {strides = array<i32>} : memref<64x36xf32, #tpu.memory_space<vmem>>, vector<8x4xf32>,
    %c54 = arith.constant 54 : index
    %c0_94 = arith.constant 0 : index
    %86 = tpu.strided_load %arg21[%c54, %c0_94] {strides = array<i32: 2, 1>} : memref<324x4xf32, #tpu.memory_space<vmem>>, vector<8x4xf32>
    %c8_95 = arith.constant 8 : index
    %c12_96 = arith.constant 12 : index
    %87 = vector.load %arg22[%c8_95, %c12_96] : memref<64x36xf32, #tpu.memory_space<vmem>>, vector<8x4xf32>
    tpu.vector_store %arg22[%c8_95, %c12_96], %86 {strides = array<i32>} : memref<64x36xf32, #tpu.memory_space<vmem>>, vector<8x4xf32>,
    %c90 = arith.constant 90 : index
    %c0_97 = arith.constant 0 : index
    %88 = tpu.strided_load %arg21[%c90, %c0_97] {strides = array<i32: 2, 1>} : memref<324x4xf32, #tpu.memory_space<vmem>>, vector<8x4xf32>
    %c16_98 = arith.constant 16 : index
    %c12_99 = arith.constant 12 : index
    %89 = vector.load %arg22[%c16_98, %c12_99] : memref<64x36xf32, #tpu.memory_space<vmem>>, vector<8x4xf32>
    tpu.vector_store %arg22[%c16_98, %c12_99], %88 {strides = array<i32>} : memref<64x36xf32, #tpu.memory_space<vmem>>, vector<8x4xf32>,
    %c126 = arith.constant 126 : index
    %c0_100 = arith.constant 0 : index
    %90 = tpu.strided_load %arg21[%c126, %c0_100] {strides = array<i32: 2, 1>} : memref<324x4xf32, #tpu.memory_space<vmem>>, vector<8x4xf32>
    %c24_101 = arith.constant 24 : index
    %c12_102 = arith.constant 12 : index
    %91 = vector.load %arg22[%c24_101, %c12_102] : memref<64x36xf32, #tpu.memory_space<vmem>>, vector<8x4xf32>
    tpu.vector_store %arg22[%c24_101, %c12_102], %90 {strides = array<i32>} : memref<64x36xf32, #tpu.memory_space<vmem>>, vector<8x4xf32>,
    %c162 = arith.constant 162 : index
    %c0_103 = arith.constant 0 : index
    %92 = tpu.strided_load %arg21[%c162, %c0_103] {strides = array<i32: 2, 1>} : memref<324x4xf32, #tpu.memory_space<vmem>>, vector<8x4xf32>
    %c32_104 = arith.constant 32 : index
    %c12_105 = arith.constant 12 : index
    %93 = vector.load %arg22[%c32_104, %c12_105] : memref<64x36xf32, #tpu.memory_space<vmem>>, vector<8x4xf32>
    tpu.vector_store %arg22[%c32_104, %c12_105], %92 {strides = array<i32>} : memref<64x36xf32, #tpu.memory_space<vmem>>, vector<8x4xf32>,
    %c198 = arith.constant 198 : index
    %c0_106 = arith.constant 0 : index
    %94 = tpu.strided_load %arg21[%c198, %c0_106] {strides = array<i32: 2, 1>} : memref<324x4xf32, #tpu.memory_space<vmem>>, vector<8x4xf32>
    %c40_107 = arith.constant 40 : index
    %c12_108 = arith.constant 12 : index
    %95 = vector.load %arg22[%c40_107, %c12_108] : memref<64x36xf32, #tpu.memory_space<vmem>>, vector<8x4xf32>
    tpu.vector_store %arg22[%c40_107, %c12_108], %94 {strides = array<i32>} : memref<64x36xf32, #tpu.memory_space<vmem>>, vector<8x4xf32>,
    %c234 = arith.constant 234 : index
    %c0_109 = arith.constant 0 : index
    %96 = tpu.strided_load %arg21[%c234, %c0_109] {strides = array<i32: 2, 1>} : memref<324x4xf32, #tpu.memory_space<vmem>>, vector<8x4xf32>
    %c48_110 = arith.constant 48 : index
    %c12_111 = arith.constant 12 : index
    %97 = vector.load %arg22[%c48_110, %c12_111] : memref<64x36xf32, #tpu.memory_space<vmem>>, vector<8x4xf32>
    tpu.vector_store %arg22[%c48_110, %c12_111], %96 {strides = array<i32>} : memref<64x36xf32, #tpu.memory_space<vmem>>, vector<8x4xf32>,
    %c270 = arith.constant 270 : index
    %c0_112 = arith.constant 0 : index
    %98 = tpu.strided_load %arg21[%c270, %c0_112] {strides = array<i32: 2, 1>} : memref<324x4xf32, #tpu.memory_space<vmem>>, vector<8x4xf32>
    %c56_113 = arith.constant 56 : index
    %c12_114 = arith.constant 12 : index
    %99 = vector.load %arg22[%c56_113, %c12_114] : memref<64x36xf32, #tpu.memory_space<vmem>>, vector<8x4xf32>
    tpu.vector_store %arg22[%c56_113, %c12_114], %98 {strides = array<i32>} : memref<64x36xf32, #tpu.memory_space<vmem>>, vector<8x4xf32>,
    %c19_115 = arith.constant 19 : index
    %c0_116 = arith.constant 0 : index
    %100 = tpu.strided_load %arg21[%c19_115, %c0_116] {strides = array<i32: 2, 1>} : memref<324x4xf32, #tpu.memory_space<vmem>>, vector<8x4xf32>
    %c0_117 = arith.constant 0 : index
    %c16_118 = arith.constant 16 : index
    %101 = vector.load %arg22[%c0_117, %c16_118] : memref<64x36xf32, #tpu.memory_space<vmem>>, vector<8x4xf32>
    tpu.vector_store %arg22[%c0_117, %c16_118], %100 {strides = array<i32>} : memref<64x36xf32, #tpu.memory_space<vmem>>, vector<8x4xf32>,
    %c55_119 = arith.constant 55 : index
    %c0_120 = arith.constant 0 : index
    %102 = tpu.strided_load %arg21[%c55_119, %c0_120] {strides = array<i32: 2, 1>} : memref<324x4xf32, #tpu.memory_space<vmem>>, vector<8x4xf32>
    %c8_121 = arith.constant 8 : index
    %c16_122 = arith.constant 16 : index
    %103 = vector.load %arg22[%c8_121, %c16_122] : memref<64x36xf32, #tpu.memory_space<vmem>>, vector<8x4xf32>
    tpu.vector_store %arg22[%c8_121, %c16_122], %102 {strides = array<i32>} : memref<64x36xf32, #tpu.memory_space<vmem>>, vector<8x4xf32>,
    %c91_123 = arith.constant 91 : index
    %c0_124 = arith.constant 0 : index
    %104 = tpu.strided_load %arg21[%c91_123, %c0_124] {strides = array<i32: 2, 1>} : memref<324x4xf32, #tpu.memory_space<vmem>>, vector<8x4xf32>
    %c16_125 = arith.constant 16 : index
    %c16_126 = arith.constant 16 : index
    %105 = vector.load %arg22[%c16_125, %c16_126] : memref<64x36xf32, #tpu.memory_space<vmem>>, vector<8x4xf32>
    tpu.vector_store %arg22[%c16_125, %c16_126], %104 {strides = array<i32>} : memref<64x36xf32, #tpu.memory_space<vmem>>, vector<8x4xf32>,
    %c127_127 = arith.constant 127 : index
    %c0_128 = arith.constant 0 : index
    %106 = tpu.strided_load %arg21[%c127_127, %c0_128] {strides = array<i32: 2, 1>} : memref<324x4xf32, #tpu.memory_space<vmem>>, vector<8x4xf32>
    %c24_129 = arith.constant 24 : index
    %c16_130 = arith.constant 16 : index
    %107 = vector.load %arg22[%c24_129, %c16_130] : memref<64x36xf32, #tpu.memory_space<vmem>>, vector<8x4xf32>
    tpu.vector_store %arg22[%c24_129, %c16_130], %106 {strides = array<i32>} : memref<64x36xf32, #tpu.memory_space<vmem>>, vector<8x4xf32>,
    %c163_131 = arith.constant 163 : index
    %c0_132 = arith.constant 0 : index
    %108 = tpu.strided_load %arg21[%c163_131, %c0_132] {strides = array<i32: 2, 1>} : memref<324x4xf32, #tpu.memory_space<vmem>>, vector<8x4xf32>
    %c32_133 = arith.constant 32 : index
    %c16_134 = arith.constant 16 : index
    %109 = vector.load %arg22[%c32_133, %c16_134] : memref<64x36xf32, #tpu.memory_space<vmem>>, vector<8x4xf32>
    tpu.vector_store %arg22[%c32_133, %c16_134], %108 {strides = array<i32>} : memref<64x36xf32, #tpu.memory_space<vmem>>, vector<8x4xf32>,
    %c199_135 = arith.constant 199 : index
    %c0_136 = arith.constant 0 : index
    %110 = tpu.strided_load %arg21[%c199_135, %c0_136] {strides = array<i32: 2, 1>} : memref<324x4xf32, #tpu.memory_space<vmem>>, vector<8x4xf32>
    %c40_137 = arith.constant 40 : index
    %c16_138 = arith.constant 16 : index
    %111 = vector.load %arg22[%c40_137, %c16_138] : memref<64x36xf32, #tpu.memory_space<vmem>>, vector<8x4xf32>
    tpu.vector_store %arg22[%c40_137, %c16_138], %110 {strides = array<i32>} : memref<64x36xf32, #tpu.memory_space<vmem>>, vector<8x4xf32>,
    %c235_139 = arith.constant 235 : index
    %c0_140 = arith.constant 0 : index
    %112 = tpu.strided_load %arg21[%c235_139, %c0_140] {strides = array<i32: 2, 1>} : memref<324x4xf32, #tpu.memory_space<vmem>>, vector<8x4xf32>
    %c48_141 = arith.constant 48 : index
    %c16_142 = arith.constant 16 : index
    %113 = vector.load %arg22[%c48_141, %c16_142] : memref<64x36xf32, #tpu.memory_space<vmem>>, vector<8x4xf32>
    tpu.vector_store %arg22[%c48_141, %c16_142], %112 {strides = array<i32>} : memref<64x36xf32, #tpu.memory_space<vmem>>, vector<8x4xf32>,
    %c271_143 = arith.constant 271 : index
    %c0_144 = arith.constant 0 : index
    %114 = tpu.strided_load %arg21[%c271_143, %c0_144] {strides = array<i32: 2, 1>} : memref<324x4xf32, #tpu.memory_space<vmem>>, vector<8x4xf32>
    %c56_145 = arith.constant 56 : index
    %c16_146 = arith.constant 16 : index
    %115 = vector.load %arg22[%c56_145, %c16_146] : memref<64x36xf32, #tpu.memory_space<vmem>>, vector<8x4xf32>
    tpu.vector_store %arg22[%c56_145, %c16_146], %114 {strides = array<i32>} : memref<64x36xf32, #tpu.memory_space<vmem>>, vector<8x4xf32>,
    %c20 = arith.constant 20 : index
    %c0_147 = arith.constant 0 : index
    %116 = tpu.strided_load %arg21[%c20, %c0_147] {strides = array<i32: 2, 1>} : memref<324x4xf32, #tpu.memory_space<vmem>>, vector<8x4xf32>
    %c0_148 = arith.constant 0 : index
    %c20_149 = arith.constant 20 : index
    %117 = vector.load %arg22[%c0_148, %c20_149] : memref<64x36xf32, #tpu.memory_space<vmem>>, vector<8x4xf32>
    tpu.vector_store %arg22[%c0_148, %c20_149], %116 {strides = array<i32>} : memref<64x36xf32, #tpu.memory_space<vmem>>, vector<8x4xf32>,
    %c56_150 = arith.constant 56 : index
    %c0_151 = arith.constant 0 : index
    %118 = tpu.strided_load %arg21[%c56_150, %c0_151] {strides = array<i32: 2, 1>} : memref<324x4xf32, #tpu.memory_space<vmem>>, vector<8x4xf32>
    %c8_152 = arith.constant 8 : index
    %c20_153 = arith.constant 20 : index
    %119 = vector.load %arg22[%c8_152, %c20_153] : memref<64x36xf32, #tpu.memory_space<vmem>>, vector<8x4xf32>
    tpu.vector_store %arg22[%c8_152, %c20_153], %118 {strides = array<i32>} : memref<64x36xf32, #tpu.memory_space<vmem>>, vector<8x4xf32>,
    %c92 = arith.constant 92 : index
    %c0_154 = arith.constant 0 : index
    %120 = tpu.strided_load %arg21[%c92, %c0_154] {strides = array<i32: 2, 1>} : memref<324x4xf32, #tpu.memory_space<vmem>>, vector<8x4xf32>
    %c16_155 = arith.constant 16 : index
    %c20_156 = arith.constant 20 : index
    %121 = vector.load %arg22[%c16_155, %c20_156] : memref<64x36xf32, #tpu.memory_space<vmem>>, vector<8x4xf32>
    tpu.vector_store %arg22[%c16_155, %c20_156], %120 {strides = array<i32>} : memref<64x36xf32, #tpu.memory_space<vmem>>, vector<8x4xf32>,
    %c128 = arith.constant 128 : index
    %c0_157 = arith.constant 0 : index
    %122 = tpu.strided_load %arg21[%c128, %c0_157] {strides = array<i32: 2, 1>} : memref<324x4xf32, #tpu.memory_space<vmem>>, vector<8x4xf32>
    %c24_158 = arith.constant 24 : index
    %c20_159 = arith.constant 20 : index
    %123 = vector.load %arg22[%c24_158, %c20_159] : memref<64x36xf32, #tpu.memory_space<vmem>>, vector<8x4xf32>
    tpu.vector_store %arg22[%c24_158, %c20_159], %122 {strides = array<i32>} : memref<64x36xf32, #tpu.memory_space<vmem>>, vector<8x4xf32>,
    %c164 = arith.constant 164 : index
    %c0_160 = arith.constant 0 : index
    %124 = tpu.strided_load %arg21[%c164, %c0_160] {strides = array<i32: 2, 1>} : memref<324x4xf32, #tpu.memory_space<vmem>>, vector<8x4xf32>
    %c32_161 = arith.constant 32 : index
    %c20_162 = arith.constant 20 : index
    %125 = vector.load %arg22[%c32_161, %c20_162] : memref<64x36xf32, #tpu.memory_space<vmem>>, vector<8x4xf32>
    tpu.vector_store %arg22[%c32_161, %c20_162], %124 {strides = array<i32>} : memref<64x36xf32, #tpu.memory_space<vmem>>, vector<8x4xf32>,
    %c200 = arith.constant 200 : index
    %c0_163 = arith.constant 0 : index
    %126 = tpu.strided_load %arg21[%c200, %c0_163] {strides = array<i32: 2, 1>} : memref<324x4xf32, #tpu.memory_space<vmem>>, vector<8x4xf32>
    %c40_164 = arith.constant 40 : index
    %c20_165 = arith.constant 20 : index
    %127 = vector.load %arg22[%c40_164, %c20_165] : memref<64x36xf32, #tpu.memory_space<vmem>>, vector<8x4xf32>
    tpu.vector_store %arg22[%c40_164, %c20_165], %126 {strides = array<i32>} : memref<64x36xf32, #tpu.memory_space<vmem>>, vector<8x4xf32>,
    %c236 = arith.constant 236 : index
    %c0_166 = arith.constant 0 : index
    %128 = tpu.strided_load %arg21[%c236, %c0_166] {strides = array<i32: 2, 1>} : memref<324x4xf32, #tpu.memory_space<vmem>>, vector<8x4xf32>
    %c48_167 = arith.constant 48 : index
    %c20_168 = arith.constant 20 : index
    %129 = vector.load %arg22[%c48_167, %c20_168] : memref<64x36xf32, #tpu.memory_space<vmem>>, vector<8x4xf32>
    tpu.vector_store %arg22[%c48_167, %c20_168], %128 {strides = array<i32>} : memref<64x36xf32, #tpu.memory_space<vmem>>, vector<8x4xf32>,
    %c272 = arith.constant 272 : index
    %c0_169 = arith.constant 0 : index
    %130 = tpu.strided_load %arg21[%c272, %c0_169] {strides = array<i32: 2, 1>} : memref<324x4xf32, #tpu.memory_space<vmem>>, vector<8x4xf32>
    %c56_170 = arith.constant 56 : index
    %c20_171 = arith.constant 20 : index
    %131 = vector.load %arg22[%c56_170, %c20_171] : memref<64x36xf32, #tpu.memory_space<vmem>>, vector<8x4xf32>
    tpu.vector_store %arg22[%c56_170, %c20_171], %130 {strides = array<i32>} : memref<64x36xf32, #tpu.memory_space<vmem>>, vector<8x4xf32>,
    %c36_172 = arith.constant 36 : index
    %c0_173 = arith.constant 0 : index
    %132 = tpu.strided_load %arg21[%c36_172, %c0_173] {strides = array<i32: 2, 1>} : memref<324x4xf32, #tpu.memory_space<vmem>>, vector<8x4xf32>
    %c0_174 = arith.constant 0 : index
    %c24_175 = arith.constant 24 : index
    %133 = vector.load %arg22[%c0_174, %c24_175] : memref<64x36xf32, #tpu.memory_space<vmem>>, vector<8x4xf32>
    tpu.vector_store %arg22[%c0_174, %c24_175], %132 {strides = array<i32>} : memref<64x36xf32, #tpu.memory_space<vmem>>, vector<8x4xf32>,
    %c72_176 = arith.constant 72 : index
    %c0_177 = arith.constant 0 : index
    %134 = tpu.strided_load %arg21[%c72_176, %c0_177] {strides = array<i32: 2, 1>} : memref<324x4xf32, #tpu.memory_space<vmem>>, vector<8x4xf32>
    %c8_178 = arith.constant 8 : index
    %c24_179 = arith.constant 24 : index
    %135 = vector.load %arg22[%c8_178, %c24_179] : memref<64x36xf32, #tpu.memory_space<vmem>>, vector<8x4xf32>
    tpu.vector_store %arg22[%c8_178, %c24_179], %134 {strides = array<i32>} : memref<64x36xf32, #tpu.memory_space<vmem>>, vector<8x4xf32>,
    %c108_180 = arith.constant 108 : index
    %c0_181 = arith.constant 0 : index
    %136 = tpu.strided_load %arg21[%c108_180, %c0_181] {strides = array<i32: 2, 1>} : memref<324x4xf32, #tpu.memory_space<vmem>>, vector<8x4xf32>
    %c16_182 = arith.constant 16 : index
    %c24_183 = arith.constant 24 : index
    %137 = vector.load %arg22[%c16_182, %c24_183] : memref<64x36xf32, #tpu.memory_space<vmem>>, vector<8x4xf32>
    tpu.vector_store %arg22[%c16_182, %c24_183], %136 {strides = array<i32>} : memref<64x36xf32, #tpu.memory_space<vmem>>, vector<8x4xf32>,
    %c144_184 = arith.constant 144 : index
    %c0_185 = arith.constant 0 : index
    %138 = tpu.strided_load %arg21[%c144_184, %c0_185] {strides = array<i32: 2, 1>} : memref<324x4xf32, #tpu.memory_space<vmem>>, vector<8x4xf32>
    %c24_186 = arith.constant 24 : index
    %c24_187 = arith.constant 24 : index
    %139 = vector.load %arg22[%c24_186, %c24_187] : memref<64x36xf32, #tpu.memory_space<vmem>>, vector<8x4xf32>
    tpu.vector_store %arg22[%c24_186, %c24_187], %138 {strides = array<i32>} : memref<64x36xf32, #tpu.memory_space<vmem>>, vector<8x4xf32>,
    %c180_188 = arith.constant 180 : index
    %c0_189 = arith.constant 0 : index
    %140 = tpu.strided_load %arg21[%c180_188, %c0_189] {strides = array<i32: 2, 1>} : memref<324x4xf32, #tpu.memory_space<vmem>>, vector<8x4xf32>
    %c32_190 = arith.constant 32 : index
    %c24_191 = arith.constant 24 : index
    %141 = vector.load %arg22[%c32_190, %c24_191] : memref<64x36xf32, #tpu.memory_space<vmem>>, vector<8x4xf32>
    tpu.vector_store %arg22[%c32_190, %c24_191], %140 {strides = array<i32>} : memref<64x36xf32, #tpu.memory_space<vmem>>, vector<8x4xf32>,
    %c216_192 = arith.constant 216 : index
    %c0_193 = arith.constant 0 : index
    %142 = tpu.strided_load %arg21[%c216_192, %c0_193] {strides = array<i32: 2, 1>} : memref<324x4xf32, #tpu.memory_space<vmem>>, vector<8x4xf32>
    %c40_194 = arith.constant 40 : index
    %c24_195 = arith.constant 24 : index
    %143 = vector.load %arg22[%c40_194, %c24_195] : memref<64x36xf32, #tpu.memory_space<vmem>>, vector<8x4xf32>
    tpu.vector_store %arg22[%c40_194, %c24_195], %142 {strides = array<i32>} : memref<64x36xf32, #tpu.memory_space<vmem>>, vector<8x4xf32>,
    %c252_196 = arith.constant 252 : index
    %c0_197 = arith.constant 0 : index
    %144 = tpu.strided_load %arg21[%c252_196, %c0_197] {strides = array<i32: 2, 1>} : memref<324x4xf32, #tpu.memory_space<vmem>>, vector<8x4xf32>
    %c48_198 = arith.constant 48 : index
    %c24_199 = arith.constant 24 : index
    %145 = vector.load %arg22[%c48_198, %c24_199] : memref<64x36xf32, #tpu.memory_space<vmem>>, vector<8x4xf32>
    tpu.vector_store %arg22[%c48_198, %c24_199], %144 {strides = array<i32>} : memref<64x36xf32, #tpu.memory_space<vmem>>, vector<8x4xf32>,
    %c288 = arith.constant 288 : index
    %c0_200 = arith.constant 0 : index
    %146 = tpu.strided_load %arg21[%c288, %c0_200] {strides = array<i32: 2, 1>} : memref<324x4xf32, #tpu.memory_space<vmem>>, vector<8x4xf32>
    %c56_201 = arith.constant 56 : index
    %c24_202 = arith.constant 24 : index
    %147 = vector.load %arg22[%c56_201, %c24_202] : memref<64x36xf32, #tpu.memory_space<vmem>>, vector<8x4xf32>
    tpu.vector_store %arg22[%c56_201, %c24_202], %146 {strides = array<i32>} : memref<64x36xf32, #tpu.memory_space<vmem>>, vector<8x4xf32>,
    %c37_203 = arith.constant 37 : index
    %c0_204 = arith.constant 0 : index
    %148 = tpu.strided_load %arg21[%c37_203, %c0_204] {strides = array<i32: 2, 1>} : memref<324x4xf32, #tpu.memory_space<vmem>>, vector<8x4xf32>
    %c0_205 = arith.constant 0 : index
    %c28 = arith.constant 28 : index
    %149 = vector.load %arg22[%c0_205, %c28] : memref<64x36xf32, #tpu.memory_space<vmem>>, vector<8x4xf32>
    tpu.vector_store %arg22[%c0_205, %c28], %148 {strides = array<i32>} : memref<64x36xf32, #tpu.memory_space<vmem>>, vector<8x4xf32>,
    %c73_206 = arith.constant 73 : index
    %c0_207 = arith.constant 0 : index
    %150 = tpu.strided_load %arg21[%c73_206, %c0_207] {strides = array<i32: 2, 1>} : memref<324x4xf32, #tpu.memory_space<vmem>>, vector<8x4xf32>
    %c8_208 = arith.constant 8 : index
    %c28_209 = arith.constant 28 : index
    %151 = vector.load %arg22[%c8_208, %c28_209] : memref<64x36xf32, #tpu.memory_space<vmem>>, vector<8x4xf32>
    tpu.vector_store %arg22[%c8_208, %c28_209], %150 {strides = array<i32>} : memref<64x36xf32, #tpu.memory_space<vmem>>, vector<8x4xf32>,
    %c109_210 = arith.constant 109 : index
    %c0_211 = arith.constant 0 : index
    %152 = tpu.strided_load %arg21[%c109_210, %c0_211] {strides = array<i32: 2, 1>} : memref<324x4xf32, #tpu.memory_space<vmem>>, vector<8x4xf32>
    %c16_212 = arith.constant 16 : index
    %c28_213 = arith.constant 28 : index
    %153 = vector.load %arg22[%c16_212, %c28_213] : memref<64x36xf32, #tpu.memory_space<vmem>>, vector<8x4xf32>
    tpu.vector_store %arg22[%c16_212, %c28_213], %152 {strides = array<i32>} : memref<64x36xf32, #tpu.memory_space<vmem>>, vector<8x4xf32>,
    %c145_214 = arith.constant 145 : index
    %c0_215 = arith.constant 0 : index
    %154 = tpu.strided_load %arg21[%c145_214, %c0_215] {strides = array<i32: 2, 1>} : memref<324x4xf32, #tpu.memory_space<vmem>>, vector<8x4xf32>
    %c24_216 = arith.constant 24 : index
    %c28_217 = arith.constant 28 : index
    %155 = vector.load %arg22[%c24_216, %c28_217] : memref<64x36xf32, #tpu.memory_space<vmem>>, vector<8x4xf32>
    tpu.vector_store %arg22[%c24_216, %c28_217], %154 {strides = array<i32>} : memref<64x36xf32, #tpu.memory_space<vmem>>, vector<8x4xf32>,
    %c181_218 = arith.constant 181 : index
    %c0_219 = arith.constant 0 : index
    %156 = tpu.strided_load %arg21[%c181_218, %c0_219] {strides = array<i32: 2, 1>} : memref<324x4xf32, #tpu.memory_space<vmem>>, vector<8x4xf32>
    %c32_220 = arith.constant 32 : index
    %c28_221 = arith.constant 28 : index
    %157 = vector.load %arg22[%c32_220, %c28_221] : memref<64x36xf32, #tpu.memory_space<vmem>>, vector<8x4xf32>
    tpu.vector_store %arg22[%c32_220, %c28_221], %156 {strides = array<i32>} : memref<64x36xf32, #tpu.memory_space<vmem>>, vector<8x4xf32>,
    %c217_222 = arith.constant 217 : index
    %c0_223 = arith.constant 0 : index
    %158 = tpu.strided_load %arg21[%c217_222, %c0_223] {strides = array<i32: 2, 1>} : memref<324x4xf32, #tpu.memory_space<vmem>>, vector<8x4xf32>
    %c40_224 = arith.constant 40 : index
    %c28_225 = arith.constant 28 : index
    %159 = vector.load %arg22[%c40_224, %c28_225] : memref<64x36xf32, #tpu.memory_space<vmem>>, vector<8x4xf32>
    tpu.vector_store %arg22[%c40_224, %c28_225], %158 {strides = array<i32>} : memref<64x36xf32, #tpu.memory_space<vmem>>, vector<8x4xf32>,
    %c253_226 = arith.constant 253 : index
    %c0_227 = arith.constant 0 : index
    %160 = tpu.strided_load %arg21[%c253_226, %c0_227] {strides = array<i32: 2, 1>} : memref<324x4xf32, #tpu.memory_space<vmem>>, vector<8x4xf32>
    %c48_228 = arith.constant 48 : index
    %c28_229 = arith.constant 28 : index
    %161 = vector.load %arg22[%c48_228, %c28_229] : memref<64x36xf32, #tpu.memory_space<vmem>>, vector<8x4xf32>
    tpu.vector_store %arg22[%c48_228, %c28_229], %160 {strides = array<i32>} : memref<64x36xf32, #tpu.memory_space<vmem>>, vector<8x4xf32>,
    %c289_230 = arith.constant 289 : index
    %c0_231 = arith.constant 0 : index
    %162 = tpu.strided_load %arg21[%c289_230, %c0_231] {strides = array<i32: 2, 1>} : memref<324x4xf32, #tpu.memory_space<vmem>>, vector<8x4xf32>
    %c56_232 = arith.constant 56 : index
    %c28_233 = arith.constant 28 : index
    %163 = vector.load %arg22[%c56_232, %c28_233] : memref<64x36xf32, #tpu.memory_space<vmem>>, vector<8x4xf32>
    tpu.vector_store %arg22[%c56_232, %c28_233], %162 {strides = array<i32>} : memref<64x36xf32, #tpu.memory_space<vmem>>, vector<8x4xf32>,
    %c38_234 = arith.constant 38 : index
    %c0_235 = arith.constant 0 : index
    %164 = tpu.strided_load %arg21[%c38_234, %c0_235] {strides = array<i32: 2, 1>} : memref<324x4xf32, #tpu.memory_space<vmem>>, vector<8x4xf32>
    %c0_236 = arith.constant 0 : index
    %c32_237 = arith.constant 32 : index
    %165 = vector.load %arg22[%c0_236, %c32_237] : memref<64x36xf32, #tpu.memory_space<vmem>>, vector<8x4xf32>
    tpu.vector_store %arg22[%c0_236, %c32_237], %164 {strides = array<i32>} : memref<64x36xf32, #tpu.memory_space<vmem>>, vector<8x4xf32>,
    %c74_238 = arith.constant 74 : index
    %c0_239 = arith.constant 0 : index
    %166 = tpu.strided_load %arg21[%c74_238, %c0_239] {strides = array<i32: 2, 1>} : memref<324x4xf32, #tpu.memory_space<vmem>>, vector<8x4xf32>
    %c8_240 = arith.constant 8 : index
    %c32_241 = arith.constant 32 : index
    %167 = vector.load %arg22[%c8_240, %c32_241] : memref<64x36xf32, #tpu.memory_space<vmem>>, vector<8x4xf32>
    tpu.vector_store %arg22[%c8_240, %c32_241], %166 {strides = array<i32>} : memref<64x36xf32, #tpu.memory_space<vmem>>, vector<8x4xf32>,
    %c110_242 = arith.constant 110 : index
    %c0_243 = arith.constant 0 : index
    %168 = tpu.strided_load %arg21[%c110_242, %c0_243] {strides = array<i32: 2, 1>} : memref<324x4xf32, #tpu.memory_space<vmem>>, vector<8x4xf32>
    %c16_244 = arith.constant 16 : index
    %c32_245 = arith.constant 32 : index
    %169 = vector.load %arg22[%c16_244, %c32_245] : memref<64x36xf32, #tpu.memory_space<vmem>>, vector<8x4xf32>
    tpu.vector_store %arg22[%c16_244, %c32_245], %168 {strides = array<i32>} : memref<64x36xf32, #tpu.memory_space<vmem>>, vector<8x4xf32>,
    %c146_246 = arith.constant 146 : index
    %c0_247 = arith.constant 0 : index
    %170 = tpu.strided_load %arg21[%c146_246, %c0_247] {strides = array<i32: 2, 1>} : memref<324x4xf32, #tpu.memory_space<vmem>>, vector<8x4xf32>
    %c24_248 = arith.constant 24 : index
    %c32_249 = arith.constant 32 : index
    %171 = vector.load %arg22[%c24_248, %c32_249] : memref<64x36xf32, #tpu.memory_space<vmem>>, vector<8x4xf32>
    tpu.vector_store %arg22[%c24_248, %c32_249], %170 {strides = array<i32>} : memref<64x36xf32, #tpu.memory_space<vmem>>, vector<8x4xf32>,
    %c182_250 = arith.constant 182 : index
    %c0_251 = arith.constant 0 : index
    %172 = tpu.strided_load %arg21[%c182_250, %c0_251] {strides = array<i32: 2, 1>} : memref<324x4xf32, #tpu.memory_space<vmem>>, vector<8x4xf32>
    %c32_252 = arith.constant 32 : index
    %c32_253 = arith.constant 32 : index
    %173 = vector.load %arg22[%c32_252, %c32_253] : memref<64x36xf32, #tpu.memory_space<vmem>>, vector<8x4xf32>
    tpu.vector_store %arg22[%c32_252, %c32_253], %172 {strides = array<i32>} : memref<64x36xf32, #tpu.memory_space<vmem>>, vector<8x4xf32>,
    %c218_254 = arith.constant 218 : index
    %c0_255 = arith.constant 0 : index
    %174 = tpu.strided_load %arg21[%c218_254, %c0_255] {strides = array<i32: 2, 1>} : memref<324x4xf32, #tpu.memory_space<vmem>>, vector<8x4xf32>
    %c40_256 = arith.constant 40 : index
    %c32_257 = arith.constant 32 : index
    %175 = vector.load %arg22[%c40_256, %c32_257] : memref<64x36xf32, #tpu.memory_space<vmem>>, vector<8x4xf32>
    tpu.vector_store %arg22[%c40_256, %c32_257], %174 {strides = array<i32>} : memref<64x36xf32, #tpu.memory_space<vmem>>, vector<8x4xf32>,
    %c254_258 = arith.constant 254 : index
    %c0_259 = arith.constant 0 : index
    %176 = tpu.strided_load %arg21[%c254_258, %c0_259] {strides = array<i32: 2, 1>} : memref<324x4xf32, #tpu.memory_space<vmem>>, vector<8x4xf32>
    %c48_260 = arith.constant 48 : index
    %c32_261 = arith.constant 32 : index
    %177 = vector.load %arg22[%c48_260, %c32_261] : memref<64x36xf32, #tpu.memory_space<vmem>>, vector<8x4xf32>
    tpu.vector_store %arg22[%c48_260, %c32_261], %176 {strides = array<i32>} : memref<64x36xf32, #tpu.memory_space<vmem>>, vector<8x4xf32>,
    %c290 = arith.constant 290 : index
    %c0_262 = arith.constant 0 : index
    %178 = tpu.strided_load %arg21[%c290, %c0_262] {strides = array<i32: 2, 1>} : memref<324x4xf32, #tpu.memory_space<vmem>>, vector<8x4xf32>
    %c56_263 = arith.constant 56 : index
    %c32_264 = arith.constant 32 : index
    %179 = vector.load %arg22[%c56_263, %c32_264] : memref<64x36xf32, #tpu.memory_space<vmem>>, vector<8x4xf32>
    tpu.vector_store %arg22[%c56_263, %c32_264], %178 {strides = array<i32>} : memref<64x36xf32, #tpu.memory_space<vmem>>, vector<8x4xf32>,
    %c0_265 = arith.constant 0 : index
    %c0_266 = arith.constant 0 : index
    %180 = vector.load %arg22[%c0_265, %c0_266] : memref<64x36xf32, #tpu.memory_space<vmem>>, vector<64x36xf32>
    %c0_267 = arith.constant 0 : index
    %c0_268 = arith.constant 0 : index
    %181 = vector.load %arg2[%c0_267, %c0_268] : memref<36x16xf32, #tpu.memory_space<vmem>>, vector<36x16xf32>
    %cst_269 = arith.constant dense<0.000000e+00> : vector<64x16xf32>
    %182 = tpu.matmul %180, %181, %cst_269 {dimension_numbers = #tpu.dot_dimension_numbers<[1], [0], [0], [1], [0, 0, 1, 1], [], []>} : vector<64x36xf32>, vector<36x16xf32>, vector<64x16xf32> -> vector<64x16xf32>
    %c0_270 = arith.constant 0 : index
    %c0_271 = arith.constant 0 : index
    %183 = vector.load %arg3[%c0_270, %c0_271] : memref<1x16xf32, #tpu.memory_space<vmem>>, vector<1x16xf32>
    %184 = vector.broadcast %183 : vector<1x16xf32> to vector<64x16xf32>
    %185 = arith.addf %182, %184 : vector<64x16xf32>
    %cst_272 = arith.constant 0.000000e+00 : f32
    %186 = vector.broadcast %cst_272 : f32 to vector<64x16xf32>
    %187 = arith.cmpf oge, %185, %186 : vector<64x16xf32>
    %cst_273 = arith.constant 2.000000e-01 : f32
    %188 = vector.broadcast %cst_273 : f32 to vector<64x16xf32>
    %189 = arith.mulf %188, %185 : vector<64x16xf32>
    %190 = arith.select %187, %185, %189 : vector<64x16xi1>, vector<64x16xf32>
    %c0_274 = arith.constant 0 : index
    %c0_275 = arith.constant 0 : index
    %191 = vector.load %arg4[%c0_274, %c0_275] : memref<1x16xf32, #tpu.memory_space<vmem>>, vector<1x16xf32>
    %192 = vector.broadcast %191 : vector<1x16xf32> to vector<64x16xf32>
    %193 = arith.mulf %190, %192 : vector<64x16xf32>
    %c0_276 = arith.constant 0 : index
    %c0_277 = arith.constant 0 : index
    %194 = vector.load %arg5[%c0_276, %c0_277] : memref<1x16xf32, #tpu.memory_space<vmem>>, vector<1x16xf32>
    %195 = vector.broadcast %194 : vector<1x16xf32> to vector<64x16xf32>
    %196 = arith.addf %193, %195 : vector<64x16xf32>
    %cst_278 = arith.constant 0.000000e+00 : f32
    %197 = vector.broadcast %cst_278 : f32 to vector<100x16xf32>
    %c0_279 = arith.constant 0 : index
    %c0_280 = arith.constant 0 : index
    %198 = vector.load %arg23[%c0_279, %c0_280] : memref<100x16xf32, #tpu.memory_space<vmem>>, vector<100x16xf32>
    tpu.vector_store %arg23[%c0_279, %c0_280], %197 {strides = array<i32>} : memref<100x16xf32, #tpu.memory_space<vmem>>, vector<100x16xf32>,
    %199 = vector.extract_strided_slice %196 {offsets = [0, 0], sizes = [8, 16], strides = [1, 1]} : vector<64x16xf32> to vector<8x16xf32>
    %c11 = arith.constant 11 : index
    %c0_281 = arith.constant 0 : index
    %200 = vector.load %arg23[%c11, %c0_281] : memref<100x16xf32, #tpu.memory_space<vmem>>, vector<8x16xf32>
    tpu.vector_store %arg23[%c11, %c0_281], %199 {strides = array<i32>} : memref<100x16xf32, #tpu.memory_space<vmem>>, vector<8x16xf32>,
    %201 = vector.extract_strided_slice %196 {offsets = [8, 0], sizes = [8, 16], strides = [1, 1]} : vector<64x16xf32> to vector<8x16xf32>
    %c21 = arith.constant 21 : index
    %c0_282 = arith.constant 0 : index
    %202 = vector.load %arg23[%c21, %c0_282] : memref<100x16xf32, #tpu.memory_space<vmem>>, vector<8x16xf32>
    tpu.vector_store %arg23[%c21, %c0_282], %201 {strides = array<i32>} : memref<100x16xf32, #tpu.memory_space<vmem>>, vector<8x16xf32>,
    %203 = vector.extract_strided_slice %196 {offsets = [16, 0], sizes = [8, 16], strides = [1, 1]} : vector<64x16xf32> to vector<8x16xf32>
    %c31 = arith.constant 31 : index
    %c0_283 = arith.constant 0 : index
    %204 = vector.load %arg23[%c31, %c0_283] : memref<100x16xf32, #tpu.memory_space<vmem>>, vector<8x16xf32>
    tpu.vector_store %arg23[%c31, %c0_283], %203 {strides = array<i32>} : memref<100x16xf32, #tpu.memory_space<vmem>>, vector<8x16xf32>,
    %205 = vector.extract_strided_slice %196 {offsets = [24, 0], sizes = [8, 16], strides = [1, 1]} : vector<64x16xf32> to vector<8x16xf32>
    %c41 = arith.constant 41 : index
    %c0_284 = arith.constant 0 : index
    %206 = vector.load %arg23[%c41, %c0_284] : memref<100x16xf32, #tpu.memory_space<vmem>>, vector<8x16xf32>
    tpu.vector_store %arg23[%c41, %c0_284], %205 {strides = array<i32>} : memref<100x16xf32, #tpu.memory_space<vmem>>, vector<8x16xf32>,
    %207 = vector.extract_strided_slice %196 {offsets = [32, 0], sizes = [8, 16], strides = [1, 1]} : vector<64x16xf32> to vector<8x16xf32>
    %c51 = arith.constant 51 : index
    %c0_285 = arith.constant 0 : index
    %208 = vector.load %arg23[%c51, %c0_285] : memref<100x16xf32, #tpu.memory_space<vmem>>, vector<8x16xf32>
    tpu.vector_store %arg23[%c51, %c0_285], %207 {strides = array<i32>} : memref<100x16xf32, #tpu.memory_space<vmem>>, vector<8x16xf32>,
    %209 = vector.extract_strided_slice %196 {offsets = [40, 0], sizes = [8, 16], strides = [1, 1]} : vector<64x16xf32> to vector<8x16xf32>
    %c61 = arith.constant 61 : index
    %c0_286 = arith.constant 0 : index
    %210 = vector.load %arg23[%c61, %c0_286] : memref<100x16xf32, #tpu.memory_space<vmem>>, vector<8x16xf32>
    tpu.vector_store %arg23[%c61, %c0_286], %209 {strides = array<i32>} : memref<100x16xf32, #tpu.memory_space<vmem>>, vector<8x16xf32>,
    %211 = vector.extract_strided_slice %196 {offsets = [48, 0], sizes = [8, 16], strides = [1, 1]} : vector<64x16xf32> to vector<8x16xf32>
    %c71 = arith.constant 71 : index
    %c0_287 = arith.constant 0 : index
    %212 = vector.load %arg23[%c71, %c0_287] : memref<100x16xf32, #tpu.memory_space<vmem>>, vector<8x16xf32>
    tpu.vector_store %arg23[%c71, %c0_287], %211 {strides = array<i32>} : memref<100x16xf32, #tpu.memory_space<vmem>>, vector<8x16xf32>,
    %213 = vector.extract_strided_slice %196 {offsets = [56, 0], sizes = [8, 16], strides = [1, 1]} : vector<64x16xf32> to vector<8x16xf32>
    %c81 = arith.constant 81 : index
    %c0_288 = arith.constant 0 : index
    %214 = vector.load %arg23[%c81, %c0_288] : memref<100x16xf32, #tpu.memory_space<vmem>>, vector<8x16xf32>
    tpu.vector_store %arg23[%c81, %c0_288], %213 {strides = array<i32>} : memref<100x16xf32, #tpu.memory_space<vmem>>, vector<8x16xf32>,
    %c0_289 = arith.constant 0 : index
    %c0_290 = arith.constant 0 : index
    %215 = tpu.strided_load %arg23[%c0_289, %c0_290] {strides = array<i32: 2, 1>} : memref<100x16xf32, #tpu.memory_space<vmem>>, vector<4x16xf32>
    %c0_291 = arith.constant 0 : index
    %c0_292 = arith.constant 0 : index
    %216 = vector.load %arg24[%c0_291, %c0_292] : memref<16x144xf32, #tpu.memory_space<vmem>>, vector<4x16xf32>
    tpu.vector_store %arg24[%c0_291, %c0_292], %215 {strides = array<i32>} : memref<16x144xf32, #tpu.memory_space<vmem>>, vector<4x16xf32>,
    %c20_293 = arith.constant 20 : index
    %c0_294 = arith.constant 0 : index
    %217 = tpu.strided_load %arg23[%c20_293, %c0_294] {strides = array<i32: 2, 1>} : memref<100x16xf32, #tpu.memory_space<vmem>>, vector<4x16xf32>
    %c4_295 = arith.constant 4 : index
    %c0_296 = arith.constant 0 : index
    %218 = vector.load %arg24[%c4_295, %c0_296] : memref<16x144xf32, #tpu.memory_space<vmem>>, vector<4x16xf32>
    tpu.vector_store %arg24[%c4_295, %c0_296], %217 {strides = array<i32>} : memref<16x144xf32, #tpu.memory_space<vmem>>, vector<4x16xf32>,
    %c40_297 = arith.constant 40 : index
    %c0_298 = arith.constant 0 : index
    %219 = tpu.strided_load %arg23[%c40_297, %c0_298] {strides = array<i32: 2, 1>} : memref<100x16xf32, #tpu.memory_space<vmem>>, vector<4x16xf32>
    %c8_299 = arith.constant 8 : index
    %c0_300 = arith.constant 0 : index
    %220 = vector.load %arg24[%c8_299, %c0_300] : memref<16x144xf32, #tpu.memory_space<vmem>>, vector<4x16xf32>
    tpu.vector_store %arg24[%c8_299, %c0_300], %219 {strides = array<i32>} : memref<16x144xf32, #tpu.memory_space<vmem>>, vector<4x16xf32>,
    %c60 = arith.constant 60 : index
    %c0_301 = arith.constant 0 : index
    %221 = tpu.strided_load %arg23[%c60, %c0_301] {strides = array<i32: 2, 1>} : memref<100x16xf32, #tpu.memory_space<vmem>>, vector<4x16xf32>
    %c12_302 = arith.constant 12 : index
    %c0_303 = arith.constant 0 : index
    %222 = vector.load %arg24[%c12_302, %c0_303] : memref<16x144xf32, #tpu.memory_space<vmem>>, vector<4x16xf32>
    tpu.vector_store %arg24[%c12_302, %c0_303], %221 {strides = array<i32>} : memref<16x144xf32, #tpu.memory_space<vmem>>, vector<4x16xf32>,
    %c1_304 = arith.constant 1 : index
    %c0_305 = arith.constant 0 : index
    %223 = tpu.strided_load %arg23[%c1_304, %c0_305] {strides = array<i32: 2, 1>} : memref<100x16xf32, #tpu.memory_space<vmem>>, vector<4x16xf32>
    %c0_306 = arith.constant 0 : index
    %c16_307 = arith.constant 16 : index
    %224 = vector.load %arg24[%c0_306, %c16_307] : memref<16x144xf32, #tpu.memory_space<vmem>>, vector<4x16xf32>
    tpu.vector_store %arg24[%c0_306, %c16_307], %223 {strides = array<i32>} : memref<16x144xf32, #tpu.memory_space<vmem>>, vector<4x16xf32>,
    %c21_308 = arith.constant 21 : index
    %c0_309 = arith.constant 0 : index
    %225 = tpu.strided_load %arg23[%c21_308, %c0_309] {strides = array<i32: 2, 1>} : memref<100x16xf32, #tpu.memory_space<vmem>>, vector<4x16xf32>
    %c4_310 = arith.constant 4 : index
    %c16_311 = arith.constant 16 : index
    %226 = vector.load %arg24[%c4_310, %c16_311] : memref<16x144xf32, #tpu.memory_space<vmem>>, vector<4x16xf32>
    tpu.vector_store %arg24[%c4_310, %c16_311], %225 {strides = array<i32>} : memref<16x144xf32, #tpu.memory_space<vmem>>, vector<4x16xf32>,
    %c41_312 = arith.constant 41 : index
    %c0_313 = arith.constant 0 : index
    %227 = tpu.strided_load %arg23[%c41_312, %c0_313] {strides = array<i32: 2, 1>} : memref<100x16xf32, #tpu.memory_space<vmem>>, vector<4x16xf32>
    %c8_314 = arith.constant 8 : index
    %c16_315 = arith.constant 16 : index
    %228 = vector.load %arg24[%c8_314, %c16_315] : memref<16x144xf32, #tpu.memory_space<vmem>>, vector<4x16xf32>
    tpu.vector_store %arg24[%c8_314, %c16_315], %227 {strides = array<i32>} : memref<16x144xf32, #tpu.memory_space<vmem>>, vector<4x16xf32>,
    %c61_316 = arith.constant 61 : index
    %c0_317 = arith.constant 0 : index
    %229 = tpu.strided_load %arg23[%c61_316, %c0_317] {strides = array<i32: 2, 1>} : memref<100x16xf32, #tpu.memory_space<vmem>>, vector<4x16xf32>
    %c12_318 = arith.constant 12 : index
    %c16_319 = arith.constant 16 : index
    %230 = vector.load %arg24[%c12_318, %c16_319] : memref<16x144xf32, #tpu.memory_space<vmem>>, vector<4x16xf32>
    tpu.vector_store %arg24[%c12_318, %c16_319], %229 {strides = array<i32>} : memref<16x144xf32, #tpu.memory_space<vmem>>, vector<4x16xf32>,
    %c2_320 = arith.constant 2 : index
    %c0_321 = arith.constant 0 : index
    %231 = tpu.strided_load %arg23[%c2_320, %c0_321] {strides = array<i32: 2, 1>} : memref<100x16xf32, #tpu.memory_space<vmem>>, vector<4x16xf32>
    %c0_322 = arith.constant 0 : index
    %c32_323 = arith.constant 32 : index
    %232 = vector.load %arg24[%c0_322, %c32_323] : memref<16x144xf32, #tpu.memory_space<vmem>>, vector<4x16xf32>
    tpu.vector_store %arg24[%c0_322, %c32_323], %231 {strides = array<i32>} : memref<16x144xf32, #tpu.memory_space<vmem>>, vector<4x16xf32>,
    %c22 = arith.constant 22 : index
    %c0_324 = arith.constant 0 : index
    %233 = tpu.strided_load %arg23[%c22, %c0_324] {strides = array<i32: 2, 1>} : memref<100x16xf32, #tpu.memory_space<vmem>>, vector<4x16xf32>
    %c4_325 = arith.constant 4 : index
    %c32_326 = arith.constant 32 : index
    %234 = vector.load %arg24[%c4_325, %c32_326] : memref<16x144xf32, #tpu.memory_space<vmem>>, vector<4x16xf32>
    tpu.vector_store %arg24[%c4_325, %c32_326], %233 {strides = array<i32>} : memref<16x144xf32, #tpu.memory_space<vmem>>, vector<4x16xf32>,
    %c42 = arith.constant 42 : index
    %c0_327 = arith.constant 0 : index
    %235 = tpu.strided_load %arg23[%c42, %c0_327] {strides = array<i32: 2, 1>} : memref<100x16xf32, #tpu.memory_space<vmem>>, vector<4x16xf32>
    %c8_328 = arith.constant 8 : index
    %c32_329 = arith.constant 32 : index
    %236 = vector.load %arg24[%c8_328, %c32_329] : memref<16x144xf32, #tpu.memory_space<vmem>>, vector<4x16xf32>
    tpu.vector_store %arg24[%c8_328, %c32_329], %235 {strides = array<i32>} : memref<16x144xf32, #tpu.memory_space<vmem>>, vector<4x16xf32>,
    %c62 = arith.constant 62 : index
    %c0_330 = arith.constant 0 : index
    %237 = tpu.strided_load %arg23[%c62, %c0_330] {strides = array<i32: 2, 1>} : memref<100x16xf32, #tpu.memory_space<vmem>>, vector<4x16xf32>
    %c12_331 = arith.constant 12 : index
    %c32_332 = arith.constant 32 : index
    %238 = vector.load %arg24[%c12_331, %c32_332] : memref<16x144xf32, #tpu.memory_space<vmem>>, vector<4x16xf32>
    tpu.vector_store %arg24[%c12_331, %c32_332], %237 {strides = array<i32>} : memref<16x144xf32, #tpu.memory_space<vmem>>, vector<4x16xf32>,
    %c10 = arith.constant 10 : index
    %c0_333 = arith.constant 0 : index
    %239 = tpu.strided_load %arg23[%c10, %c0_333] {strides = array<i32: 2, 1>} : memref<100x16xf32, #tpu.memory_space<vmem>>, vector<4x16xf32>
    %c0_334 = arith.constant 0 : index
    %c48_335 = arith.constant 48 : index
    %240 = vector.load %arg24[%c0_334, %c48_335] : memref<16x144xf32, #tpu.memory_space<vmem>>, vector<4x16xf32>
    tpu.vector_store %arg24[%c0_334, %c48_335], %239 {strides = array<i32>} : memref<16x144xf32, #tpu.memory_space<vmem>>, vector<4x16xf32>,
    %c30 = arith.constant 30 : index
    %c0_336 = arith.constant 0 : index
    %241 = tpu.strided_load %arg23[%c30, %c0_336] {strides = array<i32: 2, 1>} : memref<100x16xf32, #tpu.memory_space<vmem>>, vector<4x16xf32>
    %c4_337 = arith.constant 4 : index
    %c48_338 = arith.constant 48 : index
    %242 = vector.load %arg24[%c4_337, %c48_338] : memref<16x144xf32, #tpu.memory_space<vmem>>, vector<4x16xf32>
    tpu.vector_store %arg24[%c4_337, %c48_338], %241 {strides = array<i32>} : memref<16x144xf32, #tpu.memory_space<vmem>>, vector<4x16xf32>,
    %c50 = arith.constant 50 : index
    %c0_339 = arith.constant 0 : index
    %243 = tpu.strided_load %arg23[%c50, %c0_339] {strides = array<i32: 2, 1>} : memref<100x16xf32, #tpu.memory_space<vmem>>, vector<4x16xf32>
    %c8_340 = arith.constant 8 : index
    %c48_341 = arith.constant 48 : index
    %244 = vector.load %arg24[%c8_340, %c48_341] : memref<16x144xf32, #tpu.memory_space<vmem>>, vector<4x16xf32>
    tpu.vector_store %arg24[%c8_340, %c48_341], %243 {strides = array<i32>} : memref<16x144xf32, #tpu.memory_space<vmem>>, vector<4x16xf32>,
    %c70 = arith.constant 70 : index
    %c0_342 = arith.constant 0 : index
    %245 = tpu.strided_load %arg23[%c70, %c0_342] {strides = array<i32: 2, 1>} : memref<100x16xf32, #tpu.memory_space<vmem>>, vector<4x16xf32>
    %c12_343 = arith.constant 12 : index
    %c48_344 = arith.constant 48 : index
    %246 = vector.load %arg24[%c12_343, %c48_344] : memref<16x144xf32, #tpu.memory_space<vmem>>, vector<4x16xf32>
    tpu.vector_store %arg24[%c12_343, %c48_344], %245 {strides = array<i32>} : memref<16x144xf32, #tpu.memory_space<vmem>>, vector<4x16xf32>,
    %c11_345 = arith.constant 11 : index
    %c0_346 = arith.constant 0 : index
    %247 = tpu.strided_load %arg23[%c11_345, %c0_346] {strides = array<i32: 2, 1>} : memref<100x16xf32, #tpu.memory_space<vmem>>, vector<4x16xf32>
    %c0_347 = arith.constant 0 : index
    %c64 = arith.constant 64 : index
    %248 = vector.load %arg24[%c0_347, %c64] : memref<16x144xf32, #tpu.memory_space<vmem>>, vector<4x16xf32>
    tpu.vector_store %arg24[%c0_347, %c64], %247 {strides = array<i32>} : memref<16x144xf32, #tpu.memory_space<vmem>>, vector<4x16xf32>,
    %c31_348 = arith.constant 31 : index
    %c0_349 = arith.constant 0 : index
    %249 = tpu.strided_load %arg23[%c31_348, %c0_349] {strides = array<i32: 2, 1>} : memref<100x16xf32, #tpu.memory_space<vmem>>, vector<4x16xf32>
    %c4_350 = arith.constant 4 : index
    %c64_351 = arith.constant 64 : index
    %250 = vector.load %arg24[%c4_350, %c64_351] : memref<16x144xf32, #tpu.memory_space<vmem>>, vector<4x16xf32>
    tpu.vector_store %arg24[%c4_350, %c64_351], %249 {strides = array<i32>} : memref<16x144xf32, #tpu.memory_space<vmem>>, vector<4x16xf32>,
    %c51_352 = arith.constant 51 : index
    %c0_353 = arith.constant 0 : index
    %251 = tpu.strided_load %arg23[%c51_352, %c0_353] {strides = array<i32: 2, 1>} : memref<100x16xf32, #tpu.memory_space<vmem>>, vector<4x16xf32>
    %c8_354 = arith.constant 8 : index
    %c64_355 = arith.constant 64 : index
    %252 = vector.load %arg24[%c8_354, %c64_355] : memref<16x144xf32, #tpu.memory_space<vmem>>, vector<4x16xf32>
    tpu.vector_store %arg24[%c8_354, %c64_355], %251 {strides = array<i32>} : memref<16x144xf32, #tpu.memory_space<vmem>>, vector<4x16xf32>,
    %c71_356 = arith.constant 71 : index
    %c0_357 = arith.constant 0 : index
    %253 = tpu.strided_load %arg23[%c71_356, %c0_357] {strides = array<i32: 2, 1>} : memref<100x16xf32, #tpu.memory_space<vmem>>, vector<4x16xf32>
    %c12_358 = arith.constant 12 : index
    %c64_359 = arith.constant 64 : index
    %254 = vector.load %arg24[%c12_358, %c64_359] : memref<16x144xf32, #tpu.memory_space<vmem>>, vector<4x16xf32>
    tpu.vector_store %arg24[%c12_358, %c64_359], %253 {strides = array<i32>} : memref<16x144xf32, #tpu.memory_space<vmem>>, vector<4x16xf32>,
    %c12_360 = arith.constant 12 : index
    %c0_361 = arith.constant 0 : index
    %255 = tpu.strided_load %arg23[%c12_360, %c0_361] {strides = array<i32: 2, 1>} : memref<100x16xf32, #tpu.memory_space<vmem>>, vector<4x16xf32>
    %c0_362 = arith.constant 0 : index
    %c80 = arith.constant 80 : index
    %256 = vector.load %arg24[%c0_362, %c80] : memref<16x144xf32, #tpu.memory_space<vmem>>, vector<4x16xf32>
    tpu.vector_store %arg24[%c0_362, %c80], %255 {strides = array<i32>} : memref<16x144xf32, #tpu.memory_space<vmem>>, vector<4x16xf32>,
    %c32_363 = arith.constant 32 : index
    %c0_364 = arith.constant 0 : index
    %257 = tpu.strided_load %arg23[%c32_363, %c0_364] {strides = array<i32: 2, 1>} : memref<100x16xf32, #tpu.memory_space<vmem>>, vector<4x16xf32>
    %c4_365 = arith.constant 4 : index
    %c80_366 = arith.constant 80 : index
    %258 = vector.load %arg24[%c4_365, %c80_366] : memref<16x144xf32, #tpu.memory_space<vmem>>, vector<4x16xf32>
    tpu.vector_store %arg24[%c4_365, %c80_366], %257 {strides = array<i32>} : memref<16x144xf32, #tpu.memory_space<vmem>>, vector<4x16xf32>,
    %c52 = arith.constant 52 : index
    %c0_367 = arith.constant 0 : index
    %259 = tpu.strided_load %arg23[%c52, %c0_367] {strides = array<i32: 2, 1>} : memref<100x16xf32, #tpu.memory_space<vmem>>, vector<4x16xf32>
    %c8_368 = arith.constant 8 : index
    %c80_369 = arith.constant 80 : index
    %260 = vector.load %arg24[%c8_368, %c80_369] : memref<16x144xf32, #tpu.memory_space<vmem>>, vector<4x16xf32>
    tpu.vector_store %arg24[%c8_368, %c80_369], %259 {strides = array<i32>} : memref<16x144xf32, #tpu.memory_space<vmem>>, vector<4x16xf32>,
    %c72_370 = arith.constant 72 : index
    %c0_371 = arith.constant 0 : index
    %261 = tpu.strided_load %arg23[%c72_370, %c0_371] {strides = array<i32: 2, 1>} : memref<100x16xf32, #tpu.memory_space<vmem>>, vector<4x16xf32>
    %c12_372 = arith.constant 12 : index
    %c80_373 = arith.constant 80 : index
    %262 = vector.load %arg24[%c12_372, %c80_373] : memref<16x144xf32, #tpu.memory_space<vmem>>, vector<4x16xf32>
    tpu.vector_store %arg24[%c12_372, %c80_373], %261 {strides = array<i32>} : memref<16x144xf32, #tpu.memory_space<vmem>>, vector<4x16xf32>,
    %c20_374 = arith.constant 20 : index
    %c0_375 = arith.constant 0 : index
    %263 = tpu.strided_load %arg23[%c20_374, %c0_375] {strides = array<i32: 2, 1>} : memref<100x16xf32, #tpu.memory_space<vmem>>, vector<4x16xf32>
    %c0_376 = arith.constant 0 : index
    %c96 = arith.constant 96 : index
    %264 = vector.load %arg24[%c0_376, %c96] : memref<16x144xf32, #tpu.memory_space<vmem>>, vector<4x16xf32>
    tpu.vector_store %arg24[%c0_376, %c96], %263 {strides = array<i32>} : memref<16x144xf32, #tpu.memory_space<vmem>>, vector<4x16xf32>,
    %c40_377 = arith.constant 40 : index
    %c0_378 = arith.constant 0 : index
    %265 = tpu.strided_load %arg23[%c40_377, %c0_378] {strides = array<i32: 2, 1>} : memref<100x16xf32, #tpu.memory_space<vmem>>, vector<4x16xf32>
    %c4_379 = arith.constant 4 : index
    %c96_380 = arith.constant 96 : index
    %266 = vector.load %arg24[%c4_379, %c96_380] : memref<16x144xf32, #tpu.memory_space<vmem>>, vector<4x16xf32>
    tpu.vector_store %arg24[%c4_379, %c96_380], %265 {strides = array<i32>} : memref<16x144xf32, #tpu.memory_space<vmem>>, vector<4x16xf32>,
    %c60_381 = arith.constant 60 : index
    %c0_382 = arith.constant 0 : index
    %267 = tpu.strided_load %arg23[%c60_381, %c0_382] {strides = array<i32: 2, 1>} : memref<100x16xf32, #tpu.memory_space<vmem>>, vector<4x16xf32>
    %c8_383 = arith.constant 8 : index
    %c96_384 = arith.constant 96 : index
    %268 = vector.load %arg24[%c8_383, %c96_384] : memref<16x144xf32, #tpu.memory_space<vmem>>, vector<4x16xf32>
    tpu.vector_store %arg24[%c8_383, %c96_384], %267 {strides = array<i32>} : memref<16x144xf32, #tpu.memory_space<vmem>>, vector<4x16xf32>,
    %c80_385 = arith.constant 80 : index
    %c0_386 = arith.constant 0 : index
    %269 = tpu.strided_load %arg23[%c80_385, %c0_386] {strides = array<i32: 2, 1>} : memref<100x16xf32, #tpu.memory_space<vmem>>, vector<4x16xf32>
    %c12_387 = arith.constant 12 : index
    %c96_388 = arith.constant 96 : index
    %270 = vector.load %arg24[%c12_387, %c96_388] : memref<16x144xf32, #tpu.memory_space<vmem>>, vector<4x16xf32>
    tpu.vector_store %arg24[%c12_387, %c96_388], %269 {strides = array<i32>} : memref<16x144xf32, #tpu.memory_space<vmem>>, vector<4x16xf32>,
    %c21_389 = arith.constant 21 : index
    %c0_390 = arith.constant 0 : index
    %271 = tpu.strided_load %arg23[%c21_389, %c0_390] {strides = array<i32: 2, 1>} : memref<100x16xf32, #tpu.memory_space<vmem>>, vector<4x16xf32>
    %c0_391 = arith.constant 0 : index
    %c112 = arith.constant 112 : index
    %272 = vector.load %arg24[%c0_391, %c112] : memref<16x144xf32, #tpu.memory_space<vmem>>, vector<4x16xf32>
    tpu.vector_store %arg24[%c0_391, %c112], %271 {strides = array<i32>} : memref<16x144xf32, #tpu.memory_space<vmem>>, vector<4x16xf32>,
    %c41_392 = arith.constant 41 : index
    %c0_393 = arith.constant 0 : index
    %273 = tpu.strided_load %arg23[%c41_392, %c0_393] {strides = array<i32: 2, 1>} : memref<100x16xf32, #tpu.memory_space<vmem>>, vector<4x16xf32>
    %c4_394 = arith.constant 4 : index
    %c112_395 = arith.constant 112 : index
    %274 = vector.load %arg24[%c4_394, %c112_395] : memref<16x144xf32, #tpu.memory_space<vmem>>, vector<4x16xf32>
    tpu.vector_store %arg24[%c4_394, %c112_395], %273 {strides = array<i32>} : memref<16x144xf32, #tpu.memory_space<vmem>>, vector<4x16xf32>,
    %c61_396 = arith.constant 61 : index
    %c0_397 = arith.constant 0 : index
    %275 = tpu.strided_load %arg23[%c61_396, %c0_397] {strides = array<i32: 2, 1>} : memref<100x16xf32, #tpu.memory_space<vmem>>, vector<4x16xf32>
    %c8_398 = arith.constant 8 : index
    %c112_399 = arith.constant 112 : index
    %276 = vector.load %arg24[%c8_398, %c112_399] : memref<16x144xf32, #tpu.memory_space<vmem>>, vector<4x16xf32>
    tpu.vector_store %arg24[%c8_398, %c112_399], %275 {strides = array<i32>} : memref<16x144xf32, #tpu.memory_space<vmem>>, vector<4x16xf32>,
    %c81_400 = arith.constant 81 : index
    %c0_401 = arith.constant 0 : index
    %277 = tpu.strided_load %arg23[%c81_400, %c0_401] {strides = array<i32: 2, 1>} : memref<100x16xf32, #tpu.memory_space<vmem>>, vector<4x16xf32>
    %c12_402 = arith.constant 12 : index
    %c112_403 = arith.constant 112 : index
    %278 = vector.load %arg24[%c12_402, %c112_403] : memref<16x144xf32, #tpu.memory_space<vmem>>, vector<4x16xf32>
    tpu.vector_store %arg24[%c12_402, %c112_403], %277 {strides = array<i32>} : memref<16x144xf32, #tpu.memory_space<vmem>>, vector<4x16xf32>,
    %c22_404 = arith.constant 22 : index
    %c0_405 = arith.constant 0 : index
    %279 = tpu.strided_load %arg23[%c22_404, %c0_405] {strides = array<i32: 2, 1>} : memref<100x16xf32, #tpu.memory_space<vmem>>, vector<4x16xf32>
    %c0_406 = arith.constant 0 : index
    %c128_407 = arith.constant 128 : index
    %280 = vector.load %arg24[%c0_406, %c128_407] : memref<16x144xf32, #tpu.memory_space<vmem>>, vector<4x16xf32>
    tpu.vector_store %arg24[%c0_406, %c128_407], %279 {strides = array<i32>} : memref<16x144xf32, #tpu.memory_space<vmem>>, vector<4x16xf32>,
    %c42_408 = arith.constant 42 : index
    %c0_409 = arith.constant 0 : index
    %281 = tpu.strided_load %arg23[%c42_408, %c0_409] {strides = array<i32: 2, 1>} : memref<100x16xf32, #tpu.memory_space<vmem>>, vector<4x16xf32>
    %c4_410 = arith.constant 4 : index
    %c128_411 = arith.constant 128 : index
    %282 = vector.load %arg24[%c4_410, %c128_411] : memref<16x144xf32, #tpu.memory_space<vmem>>, vector<4x16xf32>
    tpu.vector_store %arg24[%c4_410, %c128_411], %281 {strides = array<i32>} : memref<16x144xf32, #tpu.memory_space<vmem>>, vector<4x16xf32>,
    %c62_412 = arith.constant 62 : index
    %c0_413 = arith.constant 0 : index
    %283 = tpu.strided_load %arg23[%c62_412, %c0_413] {strides = array<i32: 2, 1>} : memref<100x16xf32, #tpu.memory_space<vmem>>, vector<4x16xf32>
    %c8_414 = arith.constant 8 : index
    %c128_415 = arith.constant 128 : index
    %284 = vector.load %arg24[%c8_414, %c128_415] : memref<16x144xf32, #tpu.memory_space<vmem>>, vector<4x16xf32>
    tpu.vector_store %arg24[%c8_414, %c128_415], %283 {strides = array<i32>} : memref<16x144xf32, #tpu.memory_space<vmem>>, vector<4x16xf32>,
    %c82 = arith.constant 82 : index
    %c0_416 = arith.constant 0 : index
    %285 = tpu.strided_load %arg23[%c82, %c0_416] {strides = array<i32: 2, 1>} : memref<100x16xf32, #tpu.memory_space<vmem>>, vector<4x16xf32>
    %c12_417 = arith.constant 12 : index
    %c128_418 = arith.constant 128 : index
    %286 = vector.load %arg24[%c12_417, %c128_418] : memref<16x144xf32, #tpu.memory_space<vmem>>, vector<4x16xf32>
    tpu.vector_store %arg24[%c12_417, %c128_418], %285 {strides = array<i32>} : memref<16x144xf32, #tpu.memory_space<vmem>>, vector<4x16xf32>,
    %c0_419 = arith.constant 0 : index
    %c0_420 = arith.constant 0 : index
    %287 = vector.load %arg24[%c0_419, %c0_420] : memref<16x144xf32, #tpu.memory_space<vmem>>, vector<16x144xf32>
    %c0_421 = arith.constant 0 : index
    %c0_422 = arith.constant 0 : index
    %288 = vector.load %arg6[%c0_421, %c0_422] : memref<144x32xf32, #tpu.memory_space<vmem>>, vector<144x32xf32>
    %cst_423 = arith.constant dense<0.000000e+00> : vector<16x32xf32>
    %289 = tpu.matmul %287, %288, %cst_423 {dimension_numbers = #tpu.dot_dimension_numbers<[1], [0], [0], [1], [0, 0, 1, 1], [], []>} : vector<16x144xf32>, vector<144x32xf32>, vector<16x32xf32> -> vector<16x32xf32>
    %c0_424 = arith.constant 0 : index
    %c0_425 = arith.constant 0 : index
    %290 = vector.load %arg7[%c0_424, %c0_425] : memref<1x32xf32, #tpu.memory_space<vmem>>, vector<1x32xf32>
    %291 = vector.broadcast %290 : vector<1x32xf32> to vector<16x32xf32>
    %292 = arith.addf %289, %291 : vector<16x32xf32>
    %cst_426 = arith.constant 0.000000e+00 : f32
    %293 = vector.broadcast %cst_426 : f32 to vector<16x32xf32>
    %294 = arith.cmpf oge, %292, %293 : vector<16x32xf32>
    %cst_427 = arith.constant 2.000000e-01 : f32
    %295 = vector.broadcast %cst_427 : f32 to vector<16x32xf32>
    %296 = arith.mulf %295, %292 : vector<16x32xf32>
    %297 = arith.select %294, %292, %296 : vector<16x32xi1>, vector<16x32xf32>
    %c0_428 = arith.constant 0 : index
    %c0_429 = arith.constant 0 : index
    %298 = vector.load %arg8[%c0_428, %c0_429] : memref<1x32xf32, #tpu.memory_space<vmem>>, vector<1x32xf32>
    %299 = vector.broadcast %298 : vector<1x32xf32> to vector<16x32xf32>
    %300 = arith.mulf %297, %299 : vector<16x32xf32>
    %c0_430 = arith.constant 0 : index
    %c0_431 = arith.constant 0 : index
    %301 = vector.load %arg9[%c0_430, %c0_431] : memref<1x32xf32, #tpu.memory_space<vmem>>, vector<1x32xf32>
    %302 = vector.broadcast %301 : vector<1x32xf32> to vector<16x32xf32>
    %303 = arith.addf %300, %302 : vector<16x32xf32>
    %cst_432 = arith.constant 0.000000e+00 : f32
    %304 = vector.broadcast %cst_432 : f32 to vector<36x32xf32>
    %c0_433 = arith.constant 0 : index
    %c0_434 = arith.constant 0 : index
    %305 = vector.load %arg25[%c0_433, %c0_434] : memref<36x32xf32, #tpu.memory_space<vmem>>, vector<36x32xf32>
    tpu.vector_store %arg25[%c0_433, %c0_434], %304 {strides = array<i32>} : memref<36x32xf32, #tpu.memory_space<vmem>>, vector<36x32xf32>,
    %306 = vector.extract_strided_slice %303 {offsets = [0, 0], sizes = [4, 32], strides = [1, 1]} : vector<16x32xf32> to vector<4x32xf32>
    %c7 = arith.constant 7 : index
    %c0_435 = arith.constant 0 : index
    %307 = vector.load %arg25[%c7, %c0_435] : memref<36x32xf32, #tpu.memory_space<vmem>>, vector<4x32xf32>
    tpu.vector_store %arg25[%c7, %c0_435], %306 {strides = array<i32>} : memref<36x32xf32, #tpu.memory_space<vmem>>, vector<4x32xf32>,
    %308 = vector.extract_strided_slice %303 {offsets = [4, 0], sizes = [4, 32], strides = [1, 1]} : vector<16x32xf32> to vector<4x32xf32>
    %c13 = arith.constant 13 : index
    %c0_436 = arith.constant 0 : index
    %309 = vector.load %arg25[%c13, %c0_436] : memref<36x32xf32, #tpu.memory_space<vmem>>, vector<4x32xf32>
    tpu.vector_store %arg25[%c13, %c0_436], %308 {strides = array<i32>} : memref<36x32xf32, #tpu.memory_space<vmem>>, vector<4x32xf32>,
    %310 = vector.extract_strided_slice %303 {offsets = [8, 0], sizes = [4, 32], strides = [1, 1]} : vector<16x32xf32> to vector<4x32xf32>
    %c19_437 = arith.constant 19 : index
    %c0_438 = arith.constant 0 : index
    %311 = vector.load %arg25[%c19_437, %c0_438] : memref<36x32xf32, #tpu.memory_space<vmem>>, vector<4x32xf32>
    tpu.vector_store %arg25[%c19_437, %c0_438], %310 {strides = array<i32>} : memref<36x32xf32, #tpu.memory_space<vmem>>, vector<4x32xf32>,
    %312 = vector.extract_strided_slice %303 {offsets = [12, 0], sizes = [4, 32], strides = [1, 1]} : vector<16x32xf32> to vector<4x32xf32>
    %c25 = arith.constant 25 : index
    %c0_439 = arith.constant 0 : index
    %313 = vector.load %arg25[%c25, %c0_439] : memref<36x32xf32, #tpu.memory_space<vmem>>, vector<4x32xf32>
    tpu.vector_store %arg25[%c25, %c0_439], %312 {strides = array<i32>} : memref<36x32xf32, #tpu.memory_space<vmem>>, vector<4x32xf32>,
    %c0_440 = arith.constant 0 : index
    %c0_441 = arith.constant 0 : index
    %314 = tpu.strided_load %arg25[%c0_440, %c0_441] {strides = array<i32: 2, 1>} : memref<36x32xf32, #tpu.memory_space<vmem>>, vector<2x32xf32>
    %c0_442 = arith.constant 0 : index
    %c0_443 = arith.constant 0 : index
    %315 = vector.load %arg26[%c0_442, %c0_443] : memref<4x288xf32, #tpu.memory_space<vmem>>, vector<2x32xf32>
    tpu.vector_store %arg26[%c0_442, %c0_443], %314 {strides = array<i32>} : memref<4x288xf32, #tpu.memory_space<vmem>>, vector<2x32xf32>,
    %c12_444 = arith.constant 12 : index
    %c0_445 = arith.constant 0 : index
    %316 = tpu.strided_load %arg25[%c12_444, %c0_445] {strides = array<i32: 2, 1>} : memref<36x32xf32, #tpu.memory_space<vmem>>, vector<2x32xf32>
    %c2_446 = arith.constant 2 : index
    %c0_447 = arith.constant 0 : index
    %317 = vector.load %arg26[%c2_446, %c0_447] : memref<4x288xf32, #tpu.memory_space<vmem>>, vector<2x32xf32>
    tpu.vector_store %arg26[%c2_446, %c0_447], %316 {strides = array<i32>} : memref<4x288xf32, #tpu.memory_space<vmem>>, vector<2x32xf32>,
    %c1_448 = arith.constant 1 : index
    %c0_449 = arith.constant 0 : index
    %318 = tpu.strided_load %arg25[%c1_448, %c0_449] {strides = array<i32: 2, 1>} : memref<36x32xf32, #tpu.memory_space<vmem>>, vector<2x32xf32>
    %c0_450 = arith.constant 0 : index
    %c32_451 = arith.constant 32 : index
    %319 = vector.load %arg26[%c0_450, %c32_451] : memref<4x288xf32, #tpu.memory_space<vmem>>, vector<2x32xf32>
    tpu.vector_store %arg26[%c0_450, %c32_451], %318 {strides = array<i32>} : memref<4x288xf32, #tpu.memory_space<vmem>>, vector<2x32xf32>,
    %c13_452 = arith.constant 13 : index
    %c0_453 = arith.constant 0 : index
    %320 = tpu.strided_load %arg25[%c13_452, %c0_453] {strides = array<i32: 2, 1>} : memref<36x32xf32, #tpu.memory_space<vmem>>, vector<2x32xf32>
    %c2_454 = arith.constant 2 : index
    %c32_455 = arith.constant 32 : index
    %321 = vector.load %arg26[%c2_454, %c32_455] : memref<4x288xf32, #tpu.memory_space<vmem>>, vector<2x32xf32>
    tpu.vector_store %arg26[%c2_454, %c32_455], %320 {strides = array<i32>} : memref<4x288xf32, #tpu.memory_space<vmem>>, vector<2x32xf32>,
    %c2_456 = arith.constant 2 : index
    %c0_457 = arith.constant 0 : index
    %322 = tpu.strided_load %arg25[%c2_456, %c0_457] {strides = array<i32: 2, 1>} : memref<36x32xf32, #tpu.memory_space<vmem>>, vector<2x32xf32>
    %c0_458 = arith.constant 0 : index
    %c64_459 = arith.constant 64 : index
    %323 = vector.load %arg26[%c0_458, %c64_459] : memref<4x288xf32, #tpu.memory_space<vmem>>, vector<2x32xf32>
    tpu.vector_store %arg26[%c0_458, %c64_459], %322 {strides = array<i32>} : memref<4x288xf32, #tpu.memory_space<vmem>>, vector<2x32xf32>,
    %c14 = arith.constant 14 : index
    %c0_460 = arith.constant 0 : index
    %324 = tpu.strided_load %arg25[%c14, %c0_460] {strides = array<i32: 2, 1>} : memref<36x32xf32, #tpu.memory_space<vmem>>, vector<2x32xf32>
    %c2_461 = arith.constant 2 : index
    %c64_462 = arith.constant 64 : index
    %325 = vector.load %arg26[%c2_461, %c64_462] : memref<4x288xf32, #tpu.memory_space<vmem>>, vector<2x32xf32>
    tpu.vector_store %arg26[%c2_461, %c64_462], %324 {strides = array<i32>} : memref<4x288xf32, #tpu.memory_space<vmem>>, vector<2x32xf32>,
    %c6 = arith.constant 6 : index
    %c0_463 = arith.constant 0 : index
    %326 = tpu.strided_load %arg25[%c6, %c0_463] {strides = array<i32: 2, 1>} : memref<36x32xf32, #tpu.memory_space<vmem>>, vector<2x32xf32>
    %c0_464 = arith.constant 0 : index
    %c96_465 = arith.constant 96 : index
    %327 = vector.load %arg26[%c0_464, %c96_465] : memref<4x288xf32, #tpu.memory_space<vmem>>, vector<2x32xf32>
    tpu.vector_store %arg26[%c0_464, %c96_465], %326 {strides = array<i32>} : memref<4x288xf32, #tpu.memory_space<vmem>>, vector<2x32xf32>,
    %c18_466 = arith.constant 18 : index
    %c0_467 = arith.constant 0 : index
    %328 = tpu.strided_load %arg25[%c18_466, %c0_467] {strides = array<i32: 2, 1>} : memref<36x32xf32, #tpu.memory_space<vmem>>, vector<2x32xf32>
    %c2_468 = arith.constant 2 : index
    %c96_469 = arith.constant 96 : index
    %329 = vector.load %arg26[%c2_468, %c96_469] : memref<4x288xf32, #tpu.memory_space<vmem>>, vector<2x32xf32>
    tpu.vector_store %arg26[%c2_468, %c96_469], %328 {strides = array<i32>} : memref<4x288xf32, #tpu.memory_space<vmem>>, vector<2x32xf32>,
    %c7_470 = arith.constant 7 : index
    %c0_471 = arith.constant 0 : index
    %330 = tpu.strided_load %arg25[%c7_470, %c0_471] {strides = array<i32: 2, 1>} : memref<36x32xf32, #tpu.memory_space<vmem>>, vector<2x32xf32>
    %c0_472 = arith.constant 0 : index
    %c128_473 = arith.constant 128 : index
    %331 = vector.load %arg26[%c0_472, %c128_473] : memref<4x288xf32, #tpu.memory_space<vmem>>, vector<2x32xf32>
    tpu.vector_store %arg26[%c0_472, %c128_473], %330 {strides = array<i32>} : memref<4x288xf32, #tpu.memory_space<vmem>>, vector<2x32xf32>,
    %c19_474 = arith.constant 19 : index
    %c0_475 = arith.constant 0 : index
    %332 = tpu.strided_load %arg25[%c19_474, %c0_475] {strides = array<i32: 2, 1>} : memref<36x32xf32, #tpu.memory_space<vmem>>, vector<2x32xf32>
    %c2_476 = arith.constant 2 : index
    %c128_477 = arith.constant 128 : index
    %333 = vector.load %arg26[%c2_476, %c128_477] : memref<4x288xf32, #tpu.memory_space<vmem>>, vector<2x32xf32>
    tpu.vector_store %arg26[%c2_476, %c128_477], %332 {strides = array<i32>} : memref<4x288xf32, #tpu.memory_space<vmem>>, vector<2x32xf32>,
    %c8_478 = arith.constant 8 : index
    %c0_479 = arith.constant 0 : index
    %334 = tpu.strided_load %arg25[%c8_478, %c0_479] {strides = array<i32: 2, 1>} : memref<36x32xf32, #tpu.memory_space<vmem>>, vector<2x32xf32>
    %c0_480 = arith.constant 0 : index
    %c160 = arith.constant 160 : index
    %335 = vector.load %arg26[%c0_480, %c160] : memref<4x288xf32, #tpu.memory_space<vmem>>, vector<2x32xf32>
    tpu.vector_store %arg26[%c0_480, %c160], %334 {strides = array<i32>} : memref<4x288xf32, #tpu.memory_space<vmem>>, vector<2x32xf32>,
    %c20_481 = arith.constant 20 : index
    %c0_482 = arith.constant 0 : index
    %336 = tpu.strided_load %arg25[%c20_481, %c0_482] {strides = array<i32: 2, 1>} : memref<36x32xf32, #tpu.memory_space<vmem>>, vector<2x32xf32>
    %c2_483 = arith.constant 2 : index
    %c160_484 = arith.constant 160 : index
    %337 = vector.load %arg26[%c2_483, %c160_484] : memref<4x288xf32, #tpu.memory_space<vmem>>, vector<2x32xf32>
    tpu.vector_store %arg26[%c2_483, %c160_484], %336 {strides = array<i32>} : memref<4x288xf32, #tpu.memory_space<vmem>>, vector<2x32xf32>,
    %c12_485 = arith.constant 12 : index
    %c0_486 = arith.constant 0 : index
    %338 = tpu.strided_load %arg25[%c12_485, %c0_486] {strides = array<i32: 2, 1>} : memref<36x32xf32, #tpu.memory_space<vmem>>, vector<2x32xf32>
    %c0_487 = arith.constant 0 : index
    %c192 = arith.constant 192 : index
    %339 = vector.load %arg26[%c0_487, %c192] : memref<4x288xf32, #tpu.memory_space<vmem>>, vector<2x32xf32>
    tpu.vector_store %arg26[%c0_487, %c192], %338 {strides = array<i32>} : memref<4x288xf32, #tpu.memory_space<vmem>>, vector<2x32xf32>,
    %c24_488 = arith.constant 24 : index
    %c0_489 = arith.constant 0 : index
    %340 = tpu.strided_load %arg25[%c24_488, %c0_489] {strides = array<i32: 2, 1>} : memref<36x32xf32, #tpu.memory_space<vmem>>, vector<2x32xf32>
    %c2_490 = arith.constant 2 : index
    %c192_491 = arith.constant 192 : index
    %341 = vector.load %arg26[%c2_490, %c192_491] : memref<4x288xf32, #tpu.memory_space<vmem>>, vector<2x32xf32>
    tpu.vector_store %arg26[%c2_490, %c192_491], %340 {strides = array<i32>} : memref<4x288xf32, #tpu.memory_space<vmem>>, vector<2x32xf32>,
    %c13_492 = arith.constant 13 : index
    %c0_493 = arith.constant 0 : index
    %342 = tpu.strided_load %arg25[%c13_492, %c0_493] {strides = array<i32: 2, 1>} : memref<36x32xf32, #tpu.memory_space<vmem>>, vector<2x32xf32>
    %c0_494 = arith.constant 0 : index
    %c224 = arith.constant 224 : index
    %343 = vector.load %arg26[%c0_494, %c224] : memref<4x288xf32, #tpu.memory_space<vmem>>, vector<2x32xf32>
    tpu.vector_store %arg26[%c0_494, %c224], %342 {strides = array<i32>} : memref<4x288xf32, #tpu.memory_space<vmem>>, vector<2x32xf32>,
    %c25_495 = arith.constant 25 : index
    %c0_496 = arith.constant 0 : index
    %344 = tpu.strided_load %arg25[%c25_495, %c0_496] {strides = array<i32: 2, 1>} : memref<36x32xf32, #tpu.memory_space<vmem>>, vector<2x32xf32>
    %c2_497 = arith.constant 2 : index
    %c224_498 = arith.constant 224 : index
    %345 = vector.load %arg26[%c2_497, %c224_498] : memref<4x288xf32, #tpu.memory_space<vmem>>, vector<2x32xf32>
    tpu.vector_store %arg26[%c2_497, %c224_498], %344 {strides = array<i32>} : memref<4x288xf32, #tpu.memory_space<vmem>>, vector<2x32xf32>,
    %c14_499 = arith.constant 14 : index
    %c0_500 = arith.constant 0 : index
    %346 = tpu.strided_load %arg25[%c14_499, %c0_500] {strides = array<i32: 2, 1>} : memref<36x32xf32, #tpu.memory_space<vmem>>, vector<2x32xf32>
    %c0_501 = arith.constant 0 : index
    %c256 = arith.constant 256 : index
    %347 = vector.load %arg26[%c0_501, %c256] : memref<4x288xf32, #tpu.memory_space<vmem>>, vector<2x32xf32>
    tpu.vector_store %arg26[%c0_501, %c256], %346 {strides = array<i32>} : memref<4x288xf32, #tpu.memory_space<vmem>>, vector<2x32xf32>,
    %c26 = arith.constant 26 : index
    %c0_502 = arith.constant 0 : index
    %348 = tpu.strided_load %arg25[%c26, %c0_502] {strides = array<i32: 2, 1>} : memref<36x32xf32, #tpu.memory_space<vmem>>, vector<2x32xf32>
    %c2_503 = arith.constant 2 : index
    %c256_504 = arith.constant 256 : index
    %349 = vector.load %arg26[%c2_503, %c256_504] : memref<4x288xf32, #tpu.memory_space<vmem>>, vector<2x32xf32>
    tpu.vector_store %arg26[%c2_503, %c256_504], %348 {strides = array<i32>} : memref<4x288xf32, #tpu.memory_space<vmem>>, vector<2x32xf32>,
    %c0_505 = arith.constant 0 : index
    %c0_506 = arith.constant 0 : index
    %350 = vector.load %arg26[%c0_505, %c0_506] : memref<4x288xf32, #tpu.memory_space<vmem>>, vector<4x288xf32>
    %c0_507 = arith.constant 0 : index
    %c0_508 = arith.constant 0 : index
    %351 = vector.load %arg10[%c0_507, %c0_508] : memref<288x64xf32, #tpu.memory_space<vmem>>, vector<288x64xf32>
    %cst_509 = arith.constant dense<0.000000e+00> : vector<4x64xf32>
    %352 = tpu.matmul %350, %351, %cst_509 {dimension_numbers = #tpu.dot_dimension_numbers<[1], [0], [0], [1], [0, 0, 1, 1], [], []>} : vector<4x288xf32>, vector<288x64xf32>, vector<4x64xf32> -> vector<4x64xf32>
    %c0_510 = arith.constant 0 : index
    %c0_511 = arith.constant 0 : index
    %353 = vector.load %arg11[%c0_510, %c0_511] : memref<1x64xf32, #tpu.memory_space<vmem>>, vector<1x64xf32>
    %354 = vector.broadcast %353 : vector<1x64xf32> to vector<4x64xf32>
    %355 = arith.addf %352, %354 : vector<4x64xf32>
    %cst_512 = arith.constant 0.000000e+00 : f32
    %356 = vector.broadcast %cst_512 : f32 to vector<4x64xf32>
    %357 = arith.cmpf oge, %355, %356 : vector<4x64xf32>
    %cst_513 = arith.constant 2.000000e-01 : f32
    %358 = vector.broadcast %cst_513 : f32 to vector<4x64xf32>
    %359 = arith.mulf %358, %355 : vector<4x64xf32>
    %360 = arith.select %357, %355, %359 : vector<4x64xi1>, vector<4x64xf32>
    %c0_514 = arith.constant 0 : index
    %c0_515 = arith.constant 0 : index
    %361 = vector.load %arg12[%c0_514, %c0_515] : memref<1x64xf32, #tpu.memory_space<vmem>>, vector<1x64xf32>
    %362 = vector.broadcast %361 : vector<1x64xf32> to vector<4x64xf32>
    %363 = arith.mulf %360, %362 : vector<4x64xf32>
    %c0_516 = arith.constant 0 : index
    %c0_517 = arith.constant 0 : index
    %364 = vector.load %arg13[%c0_516, %c0_517] : memref<1x64xf32, #tpu.memory_space<vmem>>, vector<1x64xf32>
    %365 = vector.broadcast %364 : vector<1x64xf32> to vector<4x64xf32>
    %366 = arith.addf %363, %365 : vector<4x64xf32>
    %cst_518 = arith.constant 0.000000e+00 : f32
    %367 = vector.broadcast %cst_518 : f32 to vector<16x64xf32>
    %c0_519 = arith.constant 0 : index
    %c0_520 = arith.constant 0 : index
    %368 = vector.load %arg27[%c0_519, %c0_520] : memref<16x64xf32, #tpu.memory_space<vmem>>, vector<16x64xf32>
    tpu.vector_store %arg27[%c0_519, %c0_520], %367 {strides = array<i32>} : memref<16x64xf32, #tpu.memory_space<vmem>>, vector<16x64xf32>,
    %369 = vector.extract_strided_slice %366 {offsets = [0, 0], sizes = [2, 64], strides = [1, 1]} : vector<4x64xf32> to vector<2x64xf32>
    %c5 = arith.constant 5 : index
    %c0_521 = arith.constant 0 : index
    %370 = vector.load %arg27[%c5, %c0_521] : memref<16x64xf32, #tpu.memory_space<vmem>>, vector<2x64xf32>
    tpu.vector_store %arg27[%c5, %c0_521], %369 {strides = array<i32>} : memref<16x64xf32, #tpu.memory_space<vmem>>, vector<2x64xf32>,
    %371 = vector.extract_strided_slice %366 {offsets = [2, 0], sizes = [2, 64], strides = [1, 1]} : vector<4x64xf32> to vector<2x64xf32>
    %c9 = arith.constant 9 : index
    %c0_522 = arith.constant 0 : index
    %372 = vector.load %arg27[%c9, %c0_522] : memref<16x64xf32, #tpu.memory_space<vmem>>, vector<2x64xf32>
    tpu.vector_store %arg27[%c9, %c0_522], %371 {strides = array<i32>} : memref<16x64xf32, #tpu.memory_space<vmem>>, vector<2x64xf32>,
    %c0_523 = arith.constant 0 : index
    %c0_524 = arith.constant 0 : index
    %373 = vector.load %arg27[%c0_523, %c0_524] : memref<16x64xf32, #tpu.memory_space<vmem>>, vector<1x64xf32>
    %c0_525 = arith.constant 0 : index
    %c0_526 = arith.constant 0 : index
    %374 = vector.load %arg28[%c0_525, %c0_526] : memref<1x576xf32, #tpu.memory_space<vmem>>, vector<1x64xf32>
    tpu.vector_store %arg28[%c0_525, %c0_526], %373 {strides = array<i32>} : memref<1x576xf32, #tpu.memory_space<vmem>>, vector<1x64xf32>,
    %c1_527 = arith.constant 1 : index
    %c0_528 = arith.constant 0 : index
    %375 = vector.load %arg27[%c1_527, %c0_528] : memref<16x64xf32, #tpu.memory_space<vmem>>, vector<1x64xf32>
    %c0_529 = arith.constant 0 : index
    %c64_530 = arith.constant 64 : index
    %376 = vector.load %arg28[%c0_529, %c64_530] : memref<1x576xf32, #tpu.memory_space<vmem>>, vector<1x64xf32>
    tpu.vector_store %arg28[%c0_529, %c64_530], %375 {strides = array<i32>} : memref<1x576xf32, #tpu.memory_space<vmem>>, vector<1x64xf32>,
    %c2_531 = arith.constant 2 : index
    %c0_532 = arith.constant 0 : index
    %377 = vector.load %arg27[%c2_531, %c0_532] : memref<16x64xf32, #tpu.memory_space<vmem>>, vector<1x64xf32>
    %c0_533 = arith.constant 0 : index
    %c128_534 = arith.constant 128 : index
    %378 = vector.load %arg28[%c0_533, %c128_534] : memref<1x576xf32, #tpu.memory_space<vmem>>, vector<1x64xf32>
    tpu.vector_store %arg28[%c0_533, %c128_534], %377 {strides = array<i32>} : memref<1x576xf32, #tpu.memory_space<vmem>>, vector<1x64xf32>,
    %c4_535 = arith.constant 4 : index
    %c0_536 = arith.constant 0 : index
    %379 = vector.load %arg27[%c4_535, %c0_536] : memref<16x64xf32, #tpu.memory_space<vmem>>, vector<1x64xf32>
    %c0_537 = arith.constant 0 : index
    %c192_538 = arith.constant 192 : index
    %380 = vector.load %arg28[%c0_537, %c192_538] : memref<1x576xf32, #tpu.memory_space<vmem>>, vector<1x64xf32>
    tpu.vector_store %arg28[%c0_537, %c192_538], %379 {strides = array<i32>} : memref<1x576xf32, #tpu.memory_space<vmem>>, vector<1x64xf32>,
    %c5_539 = arith.constant 5 : index
    %c0_540 = arith.constant 0 : index
    %381 = vector.load %arg27[%c5_539, %c0_540] : memref<16x64xf32, #tpu.memory_space<vmem>>, vector<1x64xf32>
    %c0_541 = arith.constant 0 : index
    %c256_542 = arith.constant 256 : index
    %382 = vector.load %arg28[%c0_541, %c256_542] : memref<1x576xf32, #tpu.memory_space<vmem>>, vector<1x64xf32>
    tpu.vector_store %arg28[%c0_541, %c256_542], %381 {strides = array<i32>} : memref<1x576xf32, #tpu.memory_space<vmem>>, vector<1x64xf32>,
    %c6_543 = arith.constant 6 : index
    %c0_544 = arith.constant 0 : index
    %383 = vector.load %arg27[%c6_543, %c0_544] : memref<16x64xf32, #tpu.memory_space<vmem>>, vector<1x64xf32>
    %c0_545 = arith.constant 0 : index
    %c320 = arith.constant 320 : index
    %384 = vector.load %arg28[%c0_545, %c320] : memref<1x576xf32, #tpu.memory_space<vmem>>, vector<1x64xf32>
    tpu.vector_store %arg28[%c0_545, %c320], %383 {strides = array<i32>} : memref<1x576xf32, #tpu.memory_space<vmem>>, vector<1x64xf32>,
    %c8_546 = arith.constant 8 : index
    %c0_547 = arith.constant 0 : index
    %385 = vector.load %arg27[%c8_546, %c0_547] : memref<16x64xf32, #tpu.memory_space<vmem>>, vector<1x64xf32>
    %c0_548 = arith.constant 0 : index
    %c384 = arith.constant 384 : index
    %386 = vector.load %arg28[%c0_548, %c384] : memref<1x576xf32, #tpu.memory_space<vmem>>, vector<1x64xf32>
    tpu.vector_store %arg28[%c0_548, %c384], %385 {strides = array<i32>} : memref<1x576xf32, #tpu.memory_space<vmem>>, vector<1x64xf32>,
    %c9_549 = arith.constant 9 : index
    %c0_550 = arith.constant 0 : index
    %387 = vector.load %arg27[%c9_549, %c0_550] : memref<16x64xf32, #tpu.memory_space<vmem>>, vector<1x64xf32>
    %c0_551 = arith.constant 0 : index
    %c448 = arith.constant 448 : index
    %388 = vector.load %arg28[%c0_551, %c448] : memref<1x576xf32, #tpu.memory_space<vmem>>, vector<1x64xf32>
    tpu.vector_store %arg28[%c0_551, %c448], %387 {strides = array<i32>} : memref<1x576xf32, #tpu.memory_space<vmem>>, vector<1x64xf32>,
    %c10_552 = arith.constant 10 : index
    %c0_553 = arith.constant 0 : index
    %389 = vector.load %arg27[%c10_552, %c0_553] : memref<16x64xf32, #tpu.memory_space<vmem>>, vector<1x64xf32>
    %c0_554 = arith.constant 0 : index
    %c512 = arith.constant 512 : index
    %390 = vector.load %arg28[%c0_554, %c512] : memref<1x576xf32, #tpu.memory_space<vmem>>, vector<1x64xf32>
    tpu.vector_store %arg28[%c0_554, %c512], %389 {strides = array<i32>} : memref<1x576xf32, #tpu.memory_space<vmem>>, vector<1x64xf32>,
    %c0_555 = arith.constant 0 : index
    %c0_556 = arith.constant 0 : index
    %391 = vector.load %arg28[%c0_555, %c0_556] : memref<1x576xf32, #tpu.memory_space<vmem>>, vector<1x576xf32>
    %c0_557 = arith.constant 0 : index
    %c0_558 = arith.constant 0 : index
    %392 = vector.load %arg14[%c0_557, %c0_558] : memref<576x128xf32, #tpu.memory_space<vmem>>, vector<576x128xf32>
    %cst_559 = arith.constant dense<0.000000e+00> : vector<1x128xf32>
    %393 = tpu.matmul %391, %392, %cst_559 {dimension_numbers = #tpu.dot_dimension_numbers<[1], [0], [0], [1], [0, 0, 1, 1], [], []>} : vector<1x576xf32>, vector<576x128xf32>, vector<1x128xf32> -> vector<1x128xf32>
    %c0_560 = arith.constant 0 : index
    %c0_561 = arith.constant 0 : index
    %394 = vector.load %arg15[%c0_560, %c0_561] : memref<1x128xf32, #tpu.memory_space<vmem>>, vector<1x128xf32>
    %395 = arith.addf %393, %394 : vector<1x128xf32>
    %cst_562 = arith.constant 0.000000e+00 : f32
    %396 = vector.broadcast %cst_562 : f32 to vector<1x128xf32>
    %397 = arith.cmpf oge, %395, %396 : vector<1x128xf32>
    %cst_563 = arith.constant 2.000000e-01 : f32
    %398 = vector.broadcast %cst_563 : f32 to vector<1x128xf32>
    %399 = arith.mulf %398, %395 : vector<1x128xf32>
    %400 = arith.select %397, %395, %399 : vector<1x128xi1>, vector<1x128xf32>
    %c0_564 = arith.constant 0 : index
    %c0_565 = arith.constant 0 : index
    %401 = vector.load %arg16[%c0_564, %c0_565] : memref<1x128xf32, #tpu.memory_space<vmem>>, vector<1x128xf32>
    %402 = arith.mulf %400, %401 : vector<1x128xf32>
    %c0_566 = arith.constant 0 : index
    %c0_567 = arith.constant 0 : index
    %403 = vector.load %arg17[%c0_566, %c0_567] : memref<1x128xf32, #tpu.memory_space<vmem>>, vector<1x128xf32>
    %404 = arith.addf %402, %403 : vector<1x128xf32>
    %c0_568 = arith.constant 0 : index
    %c0_569 = arith.constant 0 : index
    %405 = vector.load %arg18[%c0_568, %c0_569] : memref<1x128xf32, #tpu.memory_space<vmem>>, vector<1x128xf32>
    %406 = arith.mulf %404, %405 : vector<1x128xf32>
    %cst_570 = arith.constant dense<0.000000e+00> : vector<1xf32>
    %407 = vector.multi_reduction <add>, %406, %cst_570 [1] : vector<1x128xf32> to vector<1xf32>
    %408 = vector.shape_cast %407 : vector<1xf32> to vector<1x1xf32>
    %cst_571 = arith.constant dense<0.000000e+00> : vector<1xf32>
    %409 = vector.multi_reduction <add>, %408, %cst_571 [0] : vector<1x1xf32> to vector<1xf32>
    %410 = vector.shape_cast %409 : vector<1xf32> to vector<1x1xf32>
    %c0_572 = arith.constant 0 : index
    %c0_573 = arith.constant 0 : index
    %411 = vector.load %arg19[%c0_572, %c0_573] : memref<1x1xf32, #tpu.memory_space<vmem>>, vector<1x1xf32>
    %412 = arith.addf %410, %411 : vector<1x1xf32>
    %cst_574 = arith.constant 0.000000e+00 : f32
    %413 = vector.broadcast %cst_574 : f32 to vector<1x1xf32>
    %414 = arith.subf %413, %412 : vector<1x1xf32>
    %415 = math.exp %414 : vector<1x1xf32>
    %cst_575 = arith.constant 1.000000e+00 : f32
    %416 = vector.broadcast %cst_575 : f32 to vector<1x1xf32>
    %417 = arith.addf %416, %415 : vector<1x1xf32>
    %cst_576 = arith.constant 1.000000e+00 : f32
    %418 = vector.broadcast %cst_576 : f32 to vector<1x1xf32>
    %419 = arith.divf %418, %417 : vector<1x1xf32>
    %c0_577 = arith.constant 0 : index
    %c0_578 = arith.constant 0 : index
    %c0_579 = arith.constant 0 : index
    %420 = vector.load %arg20[%c0_577, %c0_578, %c0_579] : memref<1x1x1xf32, #tpu.memory_space<vmem>>, vector<1x1x1xf32>
    %421 = vector.shape_cast %420 : vector<1x1x1xf32> to vector<1x1xf32>
    %422 = vector.shape_cast %419 : vector<1x1xf32> to vector<1x1x1xf32>
    tpu.vector_store %arg20[%c0_577, %c0_578, %c0_579], %422 {strides = array<i32>} : memref<1x1x1xf32, #tpu.memory_space<vmem>>, vector<1x1x1xf32>,
    return
  }
  func.func @transform_0(%arg0: i32) -> (i32, i32, i32) {
    %c0_i32 = arith.constant 0 : i32
    %c0_i32_0 = arith.constant 0 : i32
    %c0_i32_1 = arith.constant 0 : i32
    return %arg0, %c0_i32, %c0_i32_0 : i32, i32, i32
  }
  func.func @transform_1(%arg0: i32) -> (i32, i32) {
    %c0_i32 = arith.constant 0 : i32
    %c0_i32_0 = arith.constant 0 : i32
    %c0_i32_1 = arith.constant 0 : i32
    return %c0_i32, %c0_i32_0 : i32, i32
  }
  func.func @transform_2(%arg0: i32) -> (i32, i32) {
    %c0_i32 = arith.constant 0 : i32
    %c0_i32_0 = arith.constant 0 : i32
    %c0_i32_1 = arith.constant 0 : i32
    return %c0_i32, %c0_i32_0 : i32, i32
  }
  func.func @transform_3(%arg0: i32) -> (i32, i32) {
    %c0_i32 = arith.constant 0 : i32
    %c0_i32_0 = arith.constant 0 : i32
    %c0_i32_1 = arith.constant 0 : i32
    return %c0_i32, %c0_i32_0 : i32, i32
  }
  func.func @transform_4(%arg0: i32) -> (i32, i32) {
    %c0_i32 = arith.constant 0 : i32
    %c0_i32_0 = arith.constant 0 : i32
    %c0_i32_1 = arith.constant 0 : i32
    return %c0_i32, %c0_i32_0 : i32, i32
  }
  func.func @transform_5(%arg0: i32) -> (i32, i32) {
    %c0_i32 = arith.constant 0 : i32
    %c0_i32_0 = arith.constant 0 : i32
    %c0_i32_1 = arith.constant 0 : i32
    return %c0_i32, %c0_i32_0 : i32, i32
  }
  func.func @transform_6(%arg0: i32) -> (i32, i32) {
    %c0_i32 = arith.constant 0 : i32
    %c0_i32_0 = arith.constant 0 : i32
    %c0_i32_1 = arith.constant 0 : i32
    return %c0_i32, %c0_i32_0 : i32, i32
  }
  func.func @transform_7(%arg0: i32) -> (i32, i32) {
    %c0_i32 = arith.constant 0 : i32
    %c0_i32_0 = arith.constant 0 : i32
    %c0_i32_1 = arith.constant 0 : i32
    return %c0_i32, %c0_i32_0 : i32, i32
  }
  func.func @transform_8(%arg0: i32) -> (i32, i32) {
    %c0_i32 = arith.constant 0 : i32
    %c0_i32_0 = arith.constant 0 : i32
    %c0_i32_1 = arith.constant 0 : i32
    return %c0_i32, %c0_i32_0 : i32, i32
  }
  func.func @transform_9(%arg0: i32) -> (i32, i32) {
    %c0_i32 = arith.constant 0 : i32
    %c0_i32_0 = arith.constant 0 : i32
    %c0_i32_1 = arith.constant 0 : i32
    return %c0_i32, %c0_i32_0 : i32, i32
  }
  func.func @transform_10(%arg0: i32) -> (i32, i32) {
    %c0_i32 = arith.constant 0 : i32
    %c0_i32_0 = arith.constant 0 : i32
    %c0_i32_1 = arith.constant 0 : i32
    return %c0_i32, %c0_i32_0 : i32, i32
  }
  func.func @transform_11(%arg0: i32) -> (i32, i32) {
    %c0_i32 = arith.constant 0 : i32
    %c0_i32_0 = arith.constant 0 : i32
    %c0_i32_1 = arith.constant 0 : i32
    return %c0_i32, %c0_i32_0 : i32, i32
  }
  func.func @transform_12(%arg0: i32) -> (i32, i32) {
    %c0_i32 = arith.constant 0 : i32
    %c0_i32_0 = arith.constant 0 : i32
    %c0_i32_1 = arith.constant 0 : i32
    return %c0_i32, %c0_i32_0 : i32, i32
  }
  func.func @transform_13(%arg0: i32) -> (i32, i32) {
    %c0_i32 = arith.constant 0 : i32
    %c0_i32_0 = arith.constant 0 : i32
    %c0_i32_1 = arith.constant 0 : i32
    return %c0_i32, %c0_i32_0 : i32, i32
  }
  func.func @transform_14(%arg0: i32) -> (i32, i32) {
    %c0_i32 = arith.constant 0 : i32
    %c0_i32_0 = arith.constant 0 : i32
    %c0_i32_1 = arith.constant 0 : i32
    return %c0_i32, %c0_i32_0 : i32, i32
  }
  func.func @transform_15(%arg0: i32) -> (i32, i32) {
    %c0_i32 = arith.constant 0 : i32
    %c0_i32_0 = arith.constant 0 : i32
    %c0_i32_1 = arith.constant 0 : i32
    return %c0_i32, %c0_i32_0 : i32, i32
  }
  func.func @transform_16(%arg0: i32) -> (i32, i32) {
    %c0_i32 = arith.constant 0 : i32
    %c0_i32_0 = arith.constant 0 : i32
    %c0_i32_1 = arith.constant 0 : i32
    return %c0_i32, %c0_i32_0 : i32, i32
  }
  func.func @transform_17(%arg0: i32) -> (i32, i32) {
    %c0_i32 = arith.constant 0 : i32
    %c0_i32_0 = arith.constant 0 : i32
    %c0_i32_1 = arith.constant 0 : i32
    return %c0_i32, %c0_i32_0 : i32, i32
  }
  func.func @transform_18(%arg0: i32) -> (i32, i32) {
    %c0_i32 = arith.constant 0 : i32
    %c0_i32_0 = arith.constant 0 : i32
    %c0_i32_1 = arith.constant 0 : i32
    return %c0_i32, %c0_i32_0 : i32, i32
  }
  func.func @transform_19(%arg0: i32) -> (i32, i32, i32) {
    %c0_i32 = arith.constant 0 : i32
    %c0_i32_0 = arith.constant 0 : i32
    %c0_i32_1 = arith.constant 0 : i32
    return %arg0, %c0_i32, %c0_i32_0 : i32, i32, i32
  }
}

</mosaic_0001>

<llo_original>
// kernel: tpu_custom_call.1
$region0: #{tpu_custom_call.1}
  #allocation0 [shape = 'u32[]', space=smem, size = 0x4, offset = 0x4, fixed_abs, tag = 'smem constant byte address 0x4 - core index']
  #allocation1 [shape = 'u32[144,128]{1,0:T(1,128)}', space=vmem, size = 0x12000, scoped, tag = 'internal scratch']
  #allocation2 [shape = 'f32[324,4]{1,0:T(8,128)}', space=vmem, size = 0x29000, scoped, tag = 'scratch operand']
  #allocation3 [shape = 'f32[64,36]{1,0:T(8,128)}', space=vmem, size = 0x8000, scoped, tag = 'scratch operand']
  #allocation4 [shape = 'f32[100,16]{1,0:T(8,128)}', space=vmem, size = 0xd000, scoped, tag = 'scratch operand']
  #allocation5 [shape = 'f32[16,144]{1,0:T(8,128)}', space=vmem, size = 0x4000, scoped, tag = 'scratch operand']
  #allocation6 [shape = 'f32[36,32]{1,0:T(8,128)}', space=vmem, size = 0x5000, scoped, tag = 'scratch operand']
  #allocation7 [shape = 'f32[4,288]{1,0:T(4,128)}', space=vmem, size = 0x1800, scoped, tag = 'scratch operand']
  #allocation8 [shape = 'f32[16,64]{1,0:T(8,128)}', space=vmem, size = 0x2000, scoped, tag = 'scratch operand']
  #allocation9 [shape = 'f32[1,576]{1,0:T(1,128)}', space=vmem, size = 0xa00, scoped, tag = 'scratch operand']
  #allocation10 [shape = 'f32[1,1]{1,0:T(1,128)S(1)}', space=vmem, size = 0x200, scoped, tag = 'scoped memory for tpu_custom_call.1']
  %s0 = inlined_call_operand.vmem [shape: f32[2,256,4], index: 0, kind: input, shape index: {}]
  %s1 = inlined_call_operand.vmem [shape: f32[36,16], index: 1, kind: input, shape index: {}]
  %s2 = inlined_call_operand.vmem [shape: f32[1,16], index: 2, kind: input, shape index: {}]
  %s3 = inlined_call_operand.vmem [shape: f32[1,16], index: 3, kind: input, shape index: {}]
  %s4 = inlined_call_operand.vmem [shape: f32[1,16], index: 4, kind: input, shape index: {}]
  %s5 = inlined_call_operand.vmem [shape: f32[144,32], index: 5, kind: input, shape index: {}]
  %s6 = inlined_call_operand.vmem [shape: f32[1,32], index: 6, kind: input, shape index: {}]
  %s7 = inlined_call_operand.vmem [shape: f32[1,32], index: 7, kind: input, shape index: {}]
  %s8 = inlined_call_operand.vmem [shape: f32[1,32], index: 8, kind: input, shape index: {}]
  %s9 = inlined_call_operand.vmem [shape: f32[288,64], index: 9, kind: input, shape index: {}]
  %s10 = inlined_call_operand.vmem [shape: f32[1,64], index: 10, kind: input, shape index: {}]
  %s11 = inlined_call_operand.vmem [shape: f32[1,64], index: 11, kind: input, shape index: {}]
  %s12 = inlined_call_operand.vmem [shape: f32[1,64], index: 12, kind: input, shape index: {}]
  %s13 = inlined_call_operand.vmem [shape: f32[576,128], index: 13, kind: input, shape index: {}]
  %s14 = inlined_call_operand.vmem [shape: f32[1,128], index: 14, kind: input, shape index: {}]
  %s15 = inlined_call_operand.vmem [shape: f32[1,128], index: 15, kind: input, shape index: {}]
  %s16 = inlined_call_operand.vmem [shape: f32[1,128], index: 16, kind: input, shape index: {}]
  %s17 = inlined_call_operand.vmem [shape: f32[1,128], index: 17, kind: input, shape index: {}]
  %s18 = inlined_call_operand.<no memory space> [shape: f32[1,1], index: 18, kind: input, shape index: {}]
  %s19 = inlined_call_operand.vmem [shape: f32[2,1,1], index: 19, kind: output, shape index: {}]
  %s20 = sld [smem:[#allocation0]]
  $region109: #{tpu_custom_call.1} parent=0
    _
  %s22 = ssub.s32 1, %s20
  %s23 = scalar_select 0, %s22, %s20
  %v24 = vstv %s18
  %25 = vst [vmem:[#allocation10] sm:$0x1] %v24
  loop: start=0, step=1, limit=4
  $region2: #{tpu_custom_call.1} parent=0 // loop_pre_header
    _
  $region3: #{tpu_custom_call.1} parent=0 // loop_header
    %s27 = sphi 0, %s31
    %p28 = scmp.ge.s32.totalorder %s27, 4
    %s37 = sphi 0, %s39
    %s40 = sphi 0, %s37
    %s41 = sphi 0, %s40
    %s57 = sphi 0, %s41
    %s61 = sphi 0, %s61
    %s63 = sphi 0, %s61
    %s64 = sphi 0, %s63
    %s78 = sphi 0, %s64
    %s82 = sphi 0, %s82
    %s84 = sphi 0, %s82
    %s85 = sphi 0, %s84
    %s99 = sphi 0, %s85
    %s103 = sphi 0, %s103
    %s105 = sphi 0, %s103
    %s106 = sphi 0, %s105
    %s120 = sphi 0, %s106
    %s124 = sphi 0, %s124
    %s126 = sphi 0, %s124
    %s127 = sphi 0, %s126
    %s141 = sphi 0, %s127
    %s145 = sphi 0, %s145
    %s147 = sphi 0, %s145
    %s148 = sphi 0, %s147
    %s162 = sphi 0, %s148
    %s166 = sphi 0, %s166
    %s168 = sphi 0, %s166
    %s169 = sphi 0, %s168
    %s183 = sphi 0, %s169
    %s187 = sphi 0, %s187
    %s189 = sphi 0, %s187
    %s190 = sphi 0, %s189
    %s204 = sphi 0, %s190
    %s208 = sphi 0, %s208
    %s210 = sphi 0, %s208
    %s211 = sphi 0, %s210
    %s225 = sphi 0, %s211
    %s229 = sphi 0, %s229
    %s231 = sphi 0, %s229
    %s232 = sphi 0, %s231
    %s246 = sphi 0, %s232
    %s250 = sphi 0, %s250
    %s252 = sphi 0, %s250
    %s253 = sphi 0, %s252
    %s267 = sphi 0, %s253
    %s271 = sphi 0, %s271
    %s273 = sphi 0, %s271
    %s274 = sphi 0, %s273
    %s288 = sphi 0, %s274
    %s292 = sphi 0, %s292
    %s294 = sphi 0, %s292
    %s295 = sphi 0, %s294
    %s309 = sphi 0, %s295
    %s313 = sphi 0, %s313
    %s315 = sphi 0, %s313
    %s316 = sphi 0, %s315
    %s330 = sphi 0, %s316
    %s334 = sphi 0, %s334
    %s336 = sphi 0, %s334
    %s337 = sphi 0, %s336
    %s351 = sphi 0, %s337
    %s355 = sphi 0, %s355
    %s357 = sphi 0, %s355
    %s358 = sphi 0, %s357
    %s372 = sphi 0, %s358
    %s376 = sphi 0, %s376
    %s378 = sphi 0, %s376
    %s379 = sphi 0, %s378
    %s393 = sphi 0, %s379
    %s397 = sphi 0, %s397
    %s399 = sphi 0, %s397
    %s400 = sphi 0, %s399
    %s414 = sphi 0, %s400
    %s418 = sphi 0, %s418
    %s420 = sphi 0, %s418
    %s421 = sphi 0, %s420
    %s435 = sphi 0, %s421
    %s441 = sphi 0, %s443
    %s444 = sphi 0, %s441
    %s445 = sphi 0, %s444
    %s461 = sphi 0, %s445
  $region4: #{tpu_custom_call.1} parent=0 // loop_header_branch
    %30 = sbr.rel (%p28) target = $region8
  $region5: #{tpu_custom_call.1} parent=0 // loop_body
    %s32 = ssub.s32 %s27, 1
    %s33 = ssub.s32 %s27, 2
    %s34 = sadd.s32 %s27, 1
    %s35 = ssub.s32 %s27, %s34
    %p36 = scmp.eq.s32.totalorder %s35, 0
    %s38 = sadd.s32 %s37, 1
    %s39 = scalar_select %p36, %s37, %s38
    %p42 = pneg %p36
    %p43 = scmp.eq.s32.totalorder %s27, 1
    %p44 = por %p42, %p43
    %p45 = scmp.ne.s32.totalorder %s37, %s40
    %p46 = scmp.eq.s32.totalorder %s27, 0
    %p47 = por %p45, %p46
    %p48 = scmp.ne.s32.totalorder %s37, %s40
    %p49 = scmp.eq.s32.totalorder %s32, 1
    %p50 = por %p48, %p49
    %p51 = scmp.ne.s32.totalorder %s40, %s41
    %p52 = scmp.eq.s32.totalorder %s32, 0
    %p53 = por %p51, %p52
    %p54 = scmp.ne.s32.totalorder %s40, %s41
    %p55 = scmp.eq.s32.totalorder %s33, 1
    %p56 = por %p54, %p55
    %p58 = scmp.ne.s32.totalorder %s41, %s57
    %p59 = scmp.eq.s32.totalorder %s33, 0
    %p60 = por %p58, %p59
    %s62 = sadd.s32 %s61, 1
    %p65 = scmp.eq.s32.totalorder %s27, 1
    %p66 = scmp.ne.s32.totalorder %s61, %s63
    %p67 = scmp.eq.s32.totalorder %s27, 0
    %p68 = por %p66, %p67
    %p69 = scmp.ne.s32.totalorder %s61, %s63
    %p70 = scmp.eq.s32.totalorder %s32, 1
    %p71 = por %p69, %p70
    %p72 = scmp.ne.s32.totalorder %s63, %s64
    %p73 = scmp.eq.s32.totalorder %s32, 0
    %p74 = por %p72, %p73
    %p75 = scmp.ne.s32.totalorder %s63, %s64
    %p76 = scmp.eq.s32.totalorder %s33, 1
    %p77 = por %p75, %p76
    %p79 = scmp.ne.s32.totalorder %s64, %s78
    %p80 = scmp.eq.s32.totalorder %s33, 0
    %p81 = por %p79, %p80
    %s83 = sadd.s32 %s82, 1
    %p86 = scmp.eq.s32.totalorder %s27, 1
    %p87 = scmp.ne.s32.totalorder %s82, %s84
    %p88 = scmp.eq.s32.totalorder %s27, 0
    %p89 = por %p87, %p88
    %p90 = scmp.ne.s32.totalorder %s82, %s84
    %p91 = scmp.eq.s32.totalorder %s32, 1
    %p92 = por %p90, %p91
    %p93 = scmp.ne.s32.totalorder %s84, %s85
    %p94 = scmp.eq.s32.totalorder %s32, 0
    %p95 = por %p93, %p94
    %p96 = scmp.ne.s32.totalorder %s84, %s85
    %p97 = scmp.eq.s32.totalorder %s33, 1
    %p98 = por %p96, %p97
    %p100 = scmp.ne.s32.totalorder %s85, %s99
    %p101 = scmp.eq.s32.totalorder %s33, 0
    %p102 = por %p100, %p101
    %s104 = sadd.s32 %s103, 1
    %p107 = scmp.eq.s32.totalorder %s27, 1
    %p108 = scmp.ne.s32.totalorder %s103, %s105
    %p109 = scmp.eq.s32.totalorder %s27, 0
    %p110 = por %p108, %p109
    %p111 = scmp.ne.s32.totalorder %s103, %s105
    %p112 = scmp.eq.s32.totalorder %s32, 1
    %p113 = por %p111, %p112
    %p114 = scmp.ne.s32.totalorder %s105, %s106
    %p115 = scmp.eq.s32.totalorder %s32, 0
    %p116 = por %p114, %p115
    %p117 = scmp.ne.s32.totalorder %s105, %s106
    %p118 = scmp.eq.s32.totalorder %s33, 1
    %p119 = por %p117, %p118
    %p121 = scmp.ne.s32.totalorder %s106, %s120
    %p122 = scmp.eq.s32.totalorder %s33, 0
    %p123 = por %p121, %p122
    %s125 = sadd.s32 %s124, 1
    %p128 = scmp.eq.s32.totalorder %s27, 1
    %p129 = scmp.ne.s32.totalorder %s124, %s126
    %p130 = scmp.eq.s32.totalorder %s27, 0
    %p131 = por %p129, %p130
    %p132 = scmp.ne.s32.totalorder %s124, %s126
    %p133 = scmp.eq.s32.totalorder %s32, 1
    %p134 = por %p132, %p133
    %p135 = scmp.ne.s32.totalorder %s126, %s127
    %p136 = scmp.eq.s32.totalorder %s32, 0
    %p137 = por %p135, %p136
    %p138 = scmp.ne.s32.totalorder %s126, %s127
    %p139 = scmp.eq.s32.totalorder %s33, 1
    %p140 = por %p138, %p139
    %p142 = scmp.ne.s32.totalorder %s127, %s141
    %p143 = scmp.eq.s32.totalorder %s33, 0
    %p144 = por %p142, %p143
    %s146 = sadd.s32 %s145, 1
    %p149 = scmp.eq.s32.totalorder %s27, 1
    %p150 = scmp.ne.s32.totalorder %s145, %s147
    %p151 = scmp.eq.s32.totalorder %s27, 0
    %p152 = por %p150, %p151
    %p153 = scmp.ne.s32.totalorder %s145, %s147
    %p154 = scmp.eq.s32.totalorder %s32, 1
    %p155 = por %p153, %p154
    %p156 = scmp.ne.s32.totalorder %s147, %s148
    %p157 = scmp.eq.s32.totalorder %s32, 0
    %p158 = por %p156, %p157
    %p159 = scmp.ne.s32.totalorder %s147, %s148
    %p160 = scmp.eq.s32.totalorder %s33, 1
    %p161 = por %p159, %p160
    %p163 = scmp.ne.s32.totalorder %s148, %s162
    %p164 = scmp.eq.s32.totalorder %s33, 0
    %p165 = por %p163, %p164
    %s167 = sadd.s32 %s166, 1
    %p170 = scmp.eq.s32.totalorder %s27, 1
    %p171 = scmp.ne.s32.totalorder %s166, %s168
    %p172 = scmp.eq.s32.totalorder %s27, 0
    %p173 = por %p171, %p172
    %p174 = scmp.ne.s32.totalorder %s166, %s168
    %p175 = scmp.eq.s32.totalorder %s32, 1
    %p176 = por %p174, %p175
    %p177 = scmp.ne.s32.totalorder %s168, %s169
    %p178 = scmp.eq.s32.totalorder %s32, 0
    %p179 = por %p177, %p178
    %p180 = scmp.ne.s32.totalorder %s168, %s169
    %p181 = scmp.eq.s32.totalorder %s33, 1
    %p182 = por %p180, %p181
    %p184 = scmp.ne.s32.totalorder %s169, %s183
    %p185 = scmp.eq.s32.totalorder %s33, 0
    %p186 = por %p184, %p185
    %s188 = sadd.s32 %s187, 1
    %p191 = scmp.eq.s32.totalorder %s27, 1
    %p192 = scmp.ne.s32.totalorder %s187, %s189
    %p193 = scmp.eq.s32.totalorder %s27, 0
    %p194 = por %p192, %p193
    %p195 = scmp.ne.s32.totalorder %s187, %s189
    %p196 = scmp.eq.s32.totalorder %s32, 1
    %p197 = por %p195, %p196
    %p198 = scmp.ne.s32.totalorder %s189, %s190
    %p199 = scmp.eq.s32.totalorder %s32, 0
    %p200 = por %p198, %p199
    %p201 = scmp.ne.s32.totalorder %s189, %s190
    %p202 = scmp.eq.s32.totalorder %s33, 1
    %p203 = por %p201, %p202
    %p205 = scmp.ne.s32.totalorder %s190, %s204
    %p206 = scmp.eq.s32.totalorder %s33, 0
    %p207 = por %p205, %p206
    %s209 = sadd.s32 %s208, 1
    %p212 = scmp.eq.s32.totalorder %s27, 1
    %p213 = scmp.ne.s32.totalorder %s208, %s210
    %p214 = scmp.eq.s32.totalorder %s27, 0
    %p215 = por %p213, %p214
    %p216 = scmp.ne.s32.totalorder %s208, %s210
    %p217 = scmp.eq.s32.totalorder %s32, 1
    %p218 = por %p216, %p217
    %p219 = scmp.ne.s32.totalorder %s210, %s211
    %p220 = scmp.eq.s32.totalorder %s32, 0
    %p221 = por %p219, %p220
    %p222 = scmp.ne.s32.totalorder %s210, %s211
    %p223 = scmp.eq.s32.totalorder %s33, 1
    %p224 = por %p222, %p223
    %p226 = scmp.ne.s32.totalorder %s211, %s225
    %p227 = scmp.eq.s32.totalorder %s33, 0
    %p228 = por %p226, %p227
    %s230 = sadd.s32 %s229, 1
    %p233 = scmp.eq.s32.totalorder %s27, 1
    %p234 = scmp.ne.s32.totalorder %s229, %s231
    %p235 = scmp.eq.s32.totalorder %s27, 0
    %p236 = por %p234, %p235
    %p237 = scmp.ne.s32.totalorder %s229, %s231
    %p238 = scmp.eq.s32.totalorder %s32, 1
    %p239 = por %p237, %p238
    %p240 = scmp.ne.s32.totalorder %s231, %s232
    %p241 = scmp.eq.s32.totalorder %s32, 0
    %p242 = por %p240, %p241
    %p243 = scmp.ne.s32.totalorder %s231, %s232
    %p244 = scmp.eq.s32.totalorder %s33, 1
    %p245 = por %p243, %p244
    %p247 = scmp.ne.s32.totalorder %s232, %s246
    %p248 = scmp.eq.s32.totalorder %s33, 0
    %p249 = por %p247, %p248
    %s251 = sadd.s32 %s250, 1
    %p254 = scmp.eq.s32.totalorder %s27, 1
    %p255 = scmp.ne.s32.totalorder %s250, %s252
    %p256 = scmp.eq.s32.totalorder %s27, 0
    %p257 = por %p255, %p256
    %p258 = scmp.ne.s32.totalorder %s250, %s252
    %p259 = scmp.eq.s32.totalorder %s32, 1
    %p260 = por %p258, %p259
    %p261 = scmp.ne.s32.totalorder %s252, %s253
    %p262 = scmp.eq.s32.totalorder %s32, 0
    %p263 = por %p261, %p262
    %p264 = scmp.ne.s32.totalorder %s252, %s253
    %p265 = scmp.eq.s32.totalorder %s33, 1
    %p266 = por %p264, %p265
    %p268 = scmp.ne.s32.totalorder %s253, %s267
    %p269 = scmp.eq.s32.totalorder %s33, 0
    %p270 = por %p268, %p269
    %s272 = sadd.s32 %s271, 1
    %p275 = scmp.eq.s32.totalorder %s27, 1
    %p276 = scmp.ne.s32.totalorder %s271, %s273
    %p277 = scmp.eq.s32.totalorder %s27, 0
    %p278 = por %p276, %p277
    %p279 = scmp.ne.s32.totalorder %s271, %s273
    %p280 = scmp.eq.s32.totalorder %s32, 1
    %p281 = por %p279, %p280
    %p282 = scmp.ne.s32.totalorder %s273, %s274
    %p283 = scmp.eq.s32.totalorder %s32, 0
    %p284 = por %p282, %p283
    %p285 = scmp.ne.s32.totalorder %s273, %s274
    %p286 = scmp.eq.s32.totalorder %s33, 1
    %p287 = por %p285, %p286
    %p289 = scmp.ne.s32.totalorder %s274, %s288
    %p290 = scmp.eq.s32.totalorder %s33, 0
    %p291 = por %p289, %p290
    %s293 = sadd.s32 %s292, 1
    %p296 = scmp.eq.s32.totalorder %s27, 1
    %p297 = scmp.ne.s32.totalorder %s292, %s294
    %p298 = scmp.eq.s32.totalorder %s27, 0
    %p299 = por %p297, %p298
    %p300 = scmp.ne.s32.totalorder %s292, %s294
    %p301 = scmp.eq.s32.totalorder %s32, 1
    %p302 = por %p300, %p301
    %p303 = scmp.ne.s32.totalorder %s294, %s295
    %p304 = scmp.eq.s32.totalorder %s32, 0
    %p305 = por %p303, %p304
    %p306 = scmp.ne.s32.totalorder %s294, %s295
    %p307 = scmp.eq.s32.totalorder %s33, 1
    %p308 = por %p306, %p307
    %p310 = scmp.ne.s32.totalorder %s295, %s309
    %p311 = scmp.eq.s32.totalorder %s33, 0
    %p312 = por %p310, %p311
    %s314 = sadd.s32 %s313, 1
    %p317 = scmp.eq.s32.totalorder %s27, 1
    %p318 = scmp.ne.s32.totalorder %s313, %s315
    %p319 = scmp.eq.s32.totalorder %s27, 0
    %p320 = por %p318, %p319
    %p321 = scmp.ne.s32.totalorder %s313, %s315
    %p322 = scmp.eq.s32.totalorder %s32, 1
    %p323 = por %p321, %p322
    %p324 = scmp.ne.s32.totalorder %s315, %s316
    %p325 = scmp.eq.s32.totalorder %s32, 0
    %p326 = por %p324, %p325
    %p327 = scmp.ne.s32.totalorder %s315, %s316
    %p328 = scmp.eq.s32.totalorder %s33, 1
    %p329 = por %p327, %p328
    %p331 = scmp.ne.s32.totalorder %s316, %s330
    %p332 = scmp.eq.s32.totalorder %s33, 0
    %p333 = por %p331, %p332
    %s335 = sadd.s32 %s334, 1
    %p338 = scmp.eq.s32.totalorder %s27, 1
    %p339 = scmp.ne.s32.totalorder %s334, %s336
    %p340 = scmp.eq.s32.totalorder %s27, 0
    %p341 = por %p339, %p340
    %p342 = scmp.ne.s32.totalorder %s334, %s336
    %p343 = scmp.eq.s32.totalorder %s32, 1
    %p344 = por %p342, %p343
    %p345 = scmp.ne.s32.totalorder %s336, %s337
    %p346 = scmp.eq.s32.totalorder %s32, 0
    %p347 = por %p345, %p346
    %p348 = scmp.ne.s32.totalorder %s336, %s337
    %p349 = scmp.eq.s32.totalorder %s33, 1
    %p350 = por %p348, %p349
    %p352 = scmp.ne.s32.totalorder %s337, %s351
    %p353 = scmp.eq.s32.totalorder %s33, 0
    %p354 = por %p352, %p353
    %s356 = sadd.s32 %s355, 1
    %p359 = scmp.eq.s32.totalorder %s27, 1
    %p360 = scmp.ne.s32.totalorder %s355, %s357
    %p361 = scmp.eq.s32.totalorder %s27, 0
    %p362 = por %p360, %p361
    %p363 = scmp.ne.s32.totalorder %s355, %s357
    %p364 = scmp.eq.s32.totalorder %s32, 1
    %p365 = por %p363, %p364
    %p366 = scmp.ne.s32.totalorder %s357, %s358
    %p367 = scmp.eq.s32.totalorder %s32, 0
    %p368 = por %p366, %p367
    %p369 = scmp.ne.s32.totalorder %s357, %s358
    %p370 = scmp.eq.s32.totalorder %s33, 1
    %p371 = por %p369, %p370
    %p373 = scmp.ne.s32.totalorder %s358, %s372
    %p374 = scmp.eq.s32.totalorder %s33, 0
    %p375 = por %p373, %p374
    %s377 = sadd.s32 %s376, 1
    %p380 = scmp.eq.s32.totalorder %s27, 1
    %p381 = scmp.ne.s32.totalorder %s376, %s378
    %p382 = scmp.eq.s32.totalorder %s27, 0
    %p383 = por %p381, %p382
    %p384 = scmp.ne.s32.totalorder %s376, %s378
    %p385 = scmp.eq.s32.totalorder %s32, 1
    %p386 = por %p384, %p385
    %p387 = scmp.ne.s32.totalorder %s378, %s379
    %p388 = scmp.eq.s32.totalorder %s32, 0
    %p389 = por %p387, %p388
    %p390 = scmp.ne.s32.totalorder %s378, %s379
    %p391 = scmp.eq.s32.totalorder %s33, 1
    %p392 = por %p390, %p391
    %p394 = scmp.ne.s32.totalorder %s379, %s393
    %p395 = scmp.eq.s32.totalorder %s33, 0
    %p396 = por %p394, %p395
    %s398 = sadd.s32 %s397, 1
    %p401 = scmp.eq.s32.totalorder %s27, 1
    %p402 = scmp.ne.s32.totalorder %s397, %s399
    %p403 = scmp.eq.s32.totalorder %s27, 0
    %p404 = por %p402, %p403
    %p405 = scmp.ne.s32.totalorder %s397, %s399
    %p406 = scmp.eq.s32.totalorder %s32, 1
    %p407 = por %p405, %p406
    %p408 = scmp.ne.s32.totalorder %s399, %s400
    %p409 = scmp.eq.s32.totalorder %s32, 0
    %p410 = por %p408, %p409
    %p411 = scmp.ne.s32.totalorder %s399, %s400
    %p412 = scmp.eq.s32.totalorder %s33, 1
    %p413 = por %p411, %p412
    %p415 = scmp.ne.s32.totalorder %s400, %s414
    %p416 = scmp.eq.s32.totalorder %s33, 0
    %p417 = por %p415, %p416
    %s419 = sadd.s32 %s418, 1
    %p422 = scmp.eq.s32.totalorder %s27, 1
    %p423 = scmp.ne.s32.totalorder %s418, %s420
    %p424 = scmp.eq.s32.totalorder %s27, 0
    %p425 = por %p423, %p424
    %p426 = scmp.ne.s32.totalorder %s418, %s420
    %p427 = scmp.eq.s32.totalorder %s32, 1
    %p428 = por %p426, %p427
    %p429 = scmp.ne.s32.totalorder %s420, %s421
    %p430 = scmp.eq.s32.totalorder %s32, 0
    %p431 = por %p429, %p430
    %p432 = scmp.ne.s32.totalorder %s420, %s421
    %p433 = scmp.eq.s32.totalorder %s33, 1
    %p434 = por %p432, %p433
    %p436 = scmp.ne.s32.totalorder %s421, %s435
    %p437 = scmp.eq.s32.totalorder %s33, 0
    %p438 = por %p436, %p437
    %s439 = ssub.s32 %s27, %s34
    %p440 = scmp.eq.s32.totalorder %s439, 0
    %s442 = sadd.s32 %s441, 1
    %s443 = scalar_select %p440, %s441, %s442
    %p446 = pneg %p440
    %p447 = scmp.eq.s32.totalorder %s27, 1
    %p448 = por %p446, %p447
    %p449 = scmp.ne.s32.totalorder %s441, %s444
    %p450 = scmp.eq.s32.totalorder %s27, 0
    %p451 = por %p449, %p450
    %p452 = scmp.ne.s32.totalorder %s441, %s444
    %p453 = scmp.eq.s32.totalorder %s32, 1
    %p454 = por %p452, %p453
    %p455 = scmp.ne.s32.totalorder %s444, %s445
    %p456 = scmp.eq.s32.totalorder %s32, 0
    %p457 = por %p455, %p456
    %p458 = scmp.ne.s32.totalorder %s444, %s445
    %p459 = scmp.eq.s32.totalorder %s33, 1
    %p460 = por %p458, %p459
    %p462 = scmp.ne.s32.totalorder %s445, %s461
    %p463 = scmp.eq.s32.totalorder %s33, 0
    %p464 = por %p462, %p463
    %p465 = scmp.le.s32.totalorder 1, %s27
    %p466 = scmp.lt.s32.totalorder %s27, 3
    %p467 = pnand %p465, %p466
    %p468 = pneg %p467
    // Predicated region
    $region9: #{tpu_custom_call.1} parent=5 // pred_check
      _
    $region10: #{tpu_custom_call.1} parent=5 // pred_check_branch
      %470 = sbr.rel (%p467) target = $region12
    $region11: #{tpu_custom_call.1} parent=5 // pred_region
      %s471 = ssub.s32 %s27, 1
      // Predicated region
      $region13: #{tpu_custom_call.1} parent=11 // pred_check
        %p472 = pneg %p74
      $region14: #{tpu_custom_call.1} parent=11 // pred_check_branch
        %474 = sbr.rel (%p472) target = $region16
      $region15: #{tpu_custom_call.1} parent=11 // pred_region
        _
      $region16: #{tpu_custom_call.1} parent=11 // pred_fallthru
        _
      // Predicated region
      $region17: #{tpu_custom_call.1} parent=11 // pred_check
        %p475 = pneg %p95
      $region18: #{tpu_custom_call.1} parent=11 // pred_check_branch
        %477 = sbr.rel (%p475) target = $region20
      $region19: #{tpu_custom_call.1} parent=11 // pred_region
        _
      $region20: #{tpu_custom_call.1} parent=11 // pred_fallthru
        _
      // Predicated region
      $region21: #{tpu_custom_call.1} parent=11 // pred_check
        %p478 = pneg %p116
      $region22: #{tpu_custom_call.1} parent=11 // pred_check_branch
        %480 = sbr.rel (%p478) target = $region24
      $region23: #{tpu_custom_call.1} parent=11 // pred_region
        _
      $region24: #{tpu_custom_call.1} parent=11 // pred_fallthru
        _
      // Predicated region
      $region25: #{tpu_custom_call.1} parent=11 // pred_check
        %p481 = pneg %p137
      $region26: #{tpu_custom_call.1} parent=11 // pred_check_branch
        %483 = sbr.rel (%p481) target = $region28
      $region27: #{tpu_custom_call.1} parent=11 // pred_region
        _
      $region28: #{tpu_custom_call.1} parent=11 // pred_fallthru
        _
      // Predicated region
      $region29: #{tpu_custom_call.1} parent=11 // pred_check
        %p484 = pneg %p158
      $region30: #{tpu_custom_call.1} parent=11 // pred_check_branch
        %486 = sbr.rel (%p484) target = $region32
      $region31: #{tpu_custom_call.1} parent=11 // pred_region
        _
      $region32: #{tpu_custom_call.1} parent=11 // pred_fallthru
        _
      // Predicated region
      $region33: #{tpu_custom_call.1} parent=11 // pred_check
        %p487 = pneg %p179
      $region34: #{tpu_custom_call.1} parent=11 // pred_check_branch
        %489 = sbr.rel (%p487) target = $region36
      $region35: #{tpu_custom_call.1} parent=11 // pred_region
        _
      $region36: #{tpu_custom_call.1} parent=11 // pred_fallthru
        _
      // Predicated region
      $region37: #{tpu_custom_call.1} parent=11 // pred_check
        %p490 = pneg %p200
      $region38: #{tpu_custom_call.1} parent=11 // pred_check_branch
        %492 = sbr.rel (%p490) target = $region40
      $region39: #{tpu_custom_call.1} parent=11 // pred_region
        _
      $region40: #{tpu_custom_call.1} parent=11 // pred_fallthru
        _
      // Predicated region
      $region41: #{tpu_custom_call.1} parent=11 // pred_check
        %p493 = pneg %p221
      $region42: #{tpu_custom_call.1} parent=11 // pred_check_branch
        %495 = sbr.rel (%p493) target = $region44
      $region43: #{tpu_custom_call.1} parent=11 // pred_region
        _
      $region44: #{tpu_custom_call.1} parent=11 // pred_fallthru
        _
      // Predicated region
      $region45: #{tpu_custom_call.1} parent=11 // pred_check
        %p496 = pneg %p242
      $region46: #{tpu_custom_call.1} parent=11 // pred_check_branch
        %498 = sbr.rel (%p496) target = $region48
      $region47: #{tpu_custom_call.1} parent=11 // pred_region
        _
      $region48: #{tpu_custom_call.1} parent=11 // pred_fallthru
        _
      // Predicated region
      $region49: #{tpu_custom_call.1} parent=11 // pred_check
        %p499 = pneg %p263
      $region50: #{tpu_custom_call.1} parent=11 // pred_check_branch
        %501 = sbr.rel (%p499) target = $region52
      $region51: #{tpu_custom_call.1} parent=11 // pred_region
        _
      $region52: #{tpu_custom_call.1} parent=11 // pred_fallthru
        _
      // Predicated region
      $region53: #{tpu_custom_call.1} parent=11 // pred_check
        %p502 = pneg %p284
      $region54: #{tpu_custom_call.1} parent=11 // pred_check_branch
        %504 = sbr.rel (%p502) target = $region56
      $region55: #{tpu_custom_call.1} parent=11 // pred_region
        _
      $region56: #{tpu_custom_call.1} parent=11 // pred_fallthru
        _
      // Predicated region
      $region57: #{tpu_custom_call.1} parent=11 // pred_check
        %p505 = pneg %p305
      $region58: #{tpu_custom_call.1} parent=11 // pred_check_branch
        %507 = sbr.rel (%p505) target = $region60
      $region59: #{tpu_custom_call.1} parent=11 // pred_region
        _
      $region60: #{tpu_custom_call.1} parent=11 // pred_fallthru
        _
      // Predicated region
      $region61: #{tpu_custom_call.1} parent=11 // pred_check
        %p508 = pneg %p326
      $region62: #{tpu_custom_call.1} parent=11 // pred_check_branch
        %510 = sbr.rel (%p508) target = $region64
      $region63: #{tpu_custom_call.1} parent=11 // pred_region
        _
      $region64: #{tpu_custom_call.1} parent=11 // pred_fallthru
        _
      // Predicated region
      $region65: #{tpu_custom_call.1} parent=11 // pred_check
        %p511 = pneg %p347
      $region66: #{tpu_custom_call.1} parent=11 // pred_check_branch
        %513 = sbr.rel (%p511) target = $region68
      $region67: #{tpu_custom_call.1} parent=11 // pred_region
        _
      $region68: #{tpu_custom_call.1} parent=11 // pred_fallthru
        _
      // Predicated region
      $region69: #{tpu_custom_call.1} parent=11 // pred_check
        %p514 = pneg %p368
      $region70: #{tpu_custom_call.1} parent=11 // pred_check_branch
        %516 = sbr.rel (%p514) target = $region72
      $region71: #{tpu_custom_call.1} parent=11 // pred_region
        _
      $region72: #{tpu_custom_call.1} parent=11 // pred_fallthru
        _
      // Predicated region
      $region73: #{tpu_custom_call.1} parent=11 // pred_check
        %p517 = pneg %p389
      $region74: #{tpu_custom_call.1} parent=11 // pred_check_branch
        %519 = sbr.rel (%p517) target = $region76
      $region75: #{tpu_custom_call.1} parent=11 // pred_region
        _
      $region76: #{tpu_custom_call.1} parent=11 // pred_fallthru
        _
      // Predicated region
      $region77: #{tpu_custom_call.1} parent=11 // pred_check
        %p520 = pneg %p410
      $region78: #{tpu_custom_call.1} parent=11 // pred_check_branch
        %522 = sbr.rel (%p520) target = $region80
      $region79: #{tpu_custom_call.1} parent=11 // pred_region
        _
      $region80: #{tpu_custom_call.1} parent=11 // pred_fallthru
        _
      // Predicated region
      $region81: #{tpu_custom_call.1} parent=11 // pred_check
        %p523 = pneg %p431
      $region82: #{tpu_custom_call.1} parent=11 // pred_check_branch
        %525 = sbr.rel (%p523) target = $region84
      $region83: #{tpu_custom_call.1} parent=11 // pred_region
        _
      $region84: #{tpu_custom_call.1} parent=11 // pred_fallthru
        _
    $region12: #{tpu_custom_call.1} parent=5 // pred_fallthru
      _
    %p526 = scmp.lt.s32.totalorder %s27, 2
    // Predicated region
    $region85: #{tpu_custom_call.1} parent=5 // pred_check
      %p527 = pneg %p526
    $region86: #{tpu_custom_call.1} parent=5 // pred_check_branch
      %529 = sbr.rel (%p527) target = $region88
    $region87: #{tpu_custom_call.1} parent=5 // pred_region
      // Predicated region
      $region89: #{tpu_custom_call.1} parent=87 // pred_check
        %p530 = pneg %p47
      $region90: #{tpu_custom_call.1} parent=87 // pred_check_branch
        %532 = sbr.rel (%p530) target = $region92
      $region91: #{tpu_custom_call.1} parent=87 // pred_region
        %p533 = scmp.lt.s32.totalorder %s27, 1
        %s534 = scalar_select %p533, %s27, 1
        %s535 = smul.addr %s534, 32
        %s536 = smul.addr %s535, 8
        %s537 = scalar_lea.vmem %s0, %s536
      $region92: #{tpu_custom_call.1} parent=87 // pred_fallthru
        _
    $region88: #{tpu_custom_call.1} parent=5 // pred_fallthru
      _
    %p538 = scmp.le.s32.totalorder 1, %s27
    %p539 = scmp.lt.s32.totalorder %s27, 3
    %p540 = pnand %p538, %p539
    %p541 = pneg %p540
    // Predicated region
    $region93: #{tpu_custom_call.1} parent=5 // pred_check
      _
    $region94: #{tpu_custom_call.1} parent=5 // pred_check_branch
      %543 = sbr.rel (%p540) target = $region96
    $region95: #{tpu_custom_call.1} parent=5 // pred_region
      %s544 = ssub.s32 %s27, 1
      %p545 = scmp.lt.s32.totalorder %s32, 1
      %s546 = scalar_select %p545, %s32, 1
      %s547 = smul.addr %s546, 32
      %s548 = smul.addr %s547, 8
      %s549 = scalar_lea.vmem %s0, %s548
      %p550 = pneg %p53
      %p551 = pneg %p50
      %p552 = pneg %p74
      %p553 = pneg %p71
      %p554 = pneg %p95
      %p555 = pneg %p92
      %p556 = pneg %p116
      %p557 = pneg %p113
      %p558 = pneg %p137
      %p559 = pneg %p134
      %p560 = pneg %p158
      %p561 = pneg %p155
      %p562 = pneg %p179
      %p563 = pneg %p176
      %p564 = pneg %p200
      %p565 = pneg %p197
      %p566 = pneg %p221
      %p567 = pneg %p218
      %p568 = pneg %p242
      %p569 = pneg %p239
      %p570 = pneg %p263
      %p571 = pneg %p260
      %p572 = pneg %p284
      %p573 = pneg %p281
      %p574 = pneg %p305
      %p575 = pneg %p302
      %p576 = pneg %p326
      %p577 = pneg %p323
      %p578 = pneg %p347
      %p579 = pneg %p344
      %p580 = pneg %p368
      %p581 = pneg %p365
      %p582 = pneg %p389
      %p583 = pneg %p386
      %p584 = pneg %p410
      %p585 = pneg %p407
      %p586 = pneg %p431
      %p587 = pneg %p428
      %p588 = pneg %p457
      %p589 = pneg %p454
      %p590 = scmp.lt.s32.totalorder %s32, 1
      %s591 = scalar_select %p590, %s32, 1
      %s592 = scalar_lea.vmem %s19, %s591
      %p593 = scmp.lt.s32.totalorder %s32, 1
      %s594 = scalar_select %p593, %s32, 1
      %s595 = smul.addr %s594, 32
      %s596 = smul.addr %s595, 8
      %s597 = scalar_lea.vmem %s0, %s596
      %p598 = scmp.lt.s32.totalorder %s32, 1
      %s599 = scalar_select %p598, %s32, 1
      %s600 = scalar_lea.vmem %s19, %s599
      %v601 = vld [vmem:[%s597] sm:$0xff]
      %v602 = vld [vmem:[%s597 + $0x8] sm:$0xff]
      %v603 = vld [vmem:[%s597 + $0x10] sm:$0xff]
      %v604 = vld [vmem:[%s597 + $0x18] sm:$0xff]
      %v605 = vld [vmem:[%s597 + $0x20] sm:$0xff]
      %v606 = vld [vmem:[%s597 + $0x28] sm:$0xff]
      %v607 = vld [vmem:[%s597 + $0x30] sm:$0xff]
      %v608 = vld [vmem:[%s597 + $0x38] sm:$0xff]
      %v609 = vld [vmem:[%s597 + $0x40] sm:$0xff]
      %v610 = vld [vmem:[%s597 + $0x48] sm:$0xff]
      %v611 = vld [vmem:[%s597 + $0x50] sm:$0xff]
      %v612 = vld [vmem:[%s597 + $0x58] sm:$0xff]
      %v613 = vld [vmem:[%s597 + $0x60] sm:$0xff]
      %v614 = vld [vmem:[%s597 + $0x68] sm:$0xff]
      %v615 = vld [vmem:[%s597 + $0x70] sm:$0xff]
      %v616 = vld [vmem:[%s597 + $0x78] sm:$0xff]
      %v617 = vld [vmem:[%s597 + $0x80] sm:$0xff]
      %v618 = vld [vmem:[%s597 + $0x88] sm:$0xff]
      %v619 = vld [vmem:[%s597 + $0x90] sm:$0xff]
      %v620 = vld [vmem:[%s597 + $0x98] sm:$0xff]
      %v621 = vld [vmem:[%s597 + $0xa0] sm:$0xff]
      %v622 = vld [vmem:[%s597 + $0xa8] sm:$0xff]
      %v623 = vld [vmem:[%s597 + $0xb0] sm:$0xff]
      %v624 = vld [vmem:[%s597 + $0xb8] sm:$0xff]
      %v625 = vld [vmem:[%s597 + $0xc0] sm:$0xff]
      %v626 = vld [vmem:[%s597 + $0xc8] sm:$0xff]
      %v627 = vld [vmem:[%s597 + $0xd0] sm:$0xff]
      %v628 = vld [vmem:[%s597 + $0xd8] sm:$0xff]
      %v629 = vld [vmem:[%s597 + $0xe0] sm:$0xff]
      %v630 = vld [vmem:[%s597 + $0xe8] sm:$0xff]
      %v631 = vld [vmem:[%s597 + $0xf0] sm:$0xff]
      %v632 = vld [vmem:[%s597 + $0xf8] sm:$0xff]
      %vm633 = vcmask 31744
      %634 = vst.msk [vmem:[#allocation2] sm:$0xff] %vm633, 0.0
      %635 = vst.msk [vmem:[#allocation2 + $0x8] sm:$0xff] %vm633, 0.0
      %636 = vst.msk [vmem:[#allocation2 + $0x10] sm:$0xff] %vm633, 0.0
      %637 = vst.msk [vmem:[#allocation2 + $0x18] sm:$0xff] %vm633, 0.0
      %638 = vst.msk [vmem:[#allocation2 + $0x20] sm:$0xff] %vm633, 0.0
      %639 = vst.msk [vmem:[#allocation2 + $0x28] sm:$0xff] %vm633, 0.0
      %640 = vst.msk [vmem:[#allocation2 + $0x30] sm:$0xff] %vm633, 0.0
      %641 = vst.msk [vmem:[#allocation2 + $0x38] sm:$0xff] %vm633, 0.0
      %642 = vst.msk [vmem:[#allocation2 + $0x40] sm:$0xff] %vm633, 0.0
      %643 = vst.msk [vmem:[#allocation2 + $0x48] sm:$0xff] %vm633, 0.0
      %644 = vst.msk [vmem:[#allocation2 + $0x50] sm:$0xff] %vm633, 0.0
      %645 = vst.msk [vmem:[#allocation2 + $0x58] sm:$0xff] %vm633, 0.0
      %646 = vst.msk [vmem:[#allocation2 + $0x60] sm:$0xff] %vm633, 0.0
      %647 = vst.msk [vmem:[#allocation2 + $0x68] sm:$0xff] %vm633, 0.0
      %648 = vst.msk [vmem:[#allocation2 + $0x70] sm:$0xff] %vm633, 0.0
      %649 = vst.msk [vmem:[#allocation2 + $0x78] sm:$0xff] %vm633, 0.0
      %650 = vst.msk [vmem:[#allocation2 + $0x80] sm:$0xff] %vm633, 0.0
      %651 = vst.msk [vmem:[#allocation2 + $0x88] sm:$0xff] %vm633, 0.0
      %652 = vst.msk [vmem:[#allocation2 + $0x90] sm:$0xff] %vm633, 0.0
      %653 = vst.msk [vmem:[#allocation2 + $0x98] sm:$0xff] %vm633, 0.0
      %654 = vst.msk [vmem:[#allocation2 + $0xa0] sm:$0xff] %vm633, 0.0
      %655 = vst.msk [vmem:[#allocation2 + $0xa8] sm:$0xff] %vm633, 0.0
      %656 = vst.msk [vmem:[#allocation2 + $0xb0] sm:$0xff] %vm633, 0.0
      %657 = vst.msk [vmem:[#allocation2 + $0xb8] sm:$0xff] %vm633, 0.0
      %658 = vst.msk [vmem:[#allocation2 + $0xc0] sm:$0xff] %vm633, 0.0
      %659 = vst.msk [vmem:[#allocation2 + $0xc8] sm:$0xff] %vm633, 0.0
      %660 = vst.msk [vmem:[#allocation2 + $0xd0] sm:$0xff] %vm633, 0.0
      %661 = vst.msk [vmem:[#allocation2 + $0xd8] sm:$0xff] %vm633, 0.0
      %662 = vst.msk [vmem:[#allocation2 + $0xe0] sm:$0xff] %vm633, 0.0
      %663 = vst.msk [vmem:[#allocation2 + $0xe8] sm:$0xff] %vm633, 0.0
      %664 = vst.msk [vmem:[#allocation2 + $0xf0] sm:$0xff] %vm633, 0.0
      %665 = vst.msk [vmem:[#allocation2 + $0xf8] sm:$0xff] %vm633, 0.0
      %666 = vst.msk [vmem:[#allocation2 + $0x100] sm:$0xff] %vm633, 0.0
      %667 = vst.msk [vmem:[#allocation2 + $0x108] sm:$0xff] %vm633, 0.0
      %668 = vst.msk [vmem:[#allocation2 + $0x110] sm:$0xff] %vm633, 0.0
      %669 = vst.msk [vmem:[#allocation2 + $0x118] sm:$0xff] %vm633, 0.0
      %670 = vst.msk [vmem:[#allocation2 + $0x120] sm:$0xff] %vm633, 0.0
      %671 = vst.msk [vmem:[#allocation2 + $0x128] sm:$0xff] %vm633, 0.0
      %672 = vst.msk [vmem:[#allocation2 + $0x130] sm:$0xff] %vm633, 0.0
      %673 = vst.msk [vmem:[#allocation2 + $0x138] sm:$0xff] %vm633, 0.0
      %vm674 = vcmask 27648
      %675 = vst.msk [vmem:[#allocation2 + $0x140] sm:$0xf] %vm674, 0.0
      %676 = vst.msk [vmem:[#allocation2 + $0x13] sm:$0xff] %vm633, %v601
      %677 = vst.msk [vmem:[#allocation2 + $0x1b] sm:$0xff] %vm633, %v602
      %678 = vst.msk [vmem:[#allocation2 + $0x25] sm:$0xff] %vm633, %v603
      %679 = vst.msk [vmem:[#allocation2 + $0x2d] sm:$0xff] %vm633, %v604
      %680 = vst.msk [vmem:[#allocation2 + $0x37] sm:$0xff] %vm633, %v605
      %681 = vst.msk [vmem:[#allocation2 + $0x3f] sm:$0xff] %vm633, %v606
      %682 = vst.msk [vmem:[#allocation2 + $0x49] sm:$0xff] %vm633, %v607
      %683 = vst.msk [vmem:[#allocation2 + $0x51] sm:$0xff] %vm633, %v608
      %684 = vst.msk [vmem:[#allocation2 + $0x5b] sm:$0xff] %vm633, %v609
      %685 = vst.msk [vmem:[#allocation2 + $0x63] sm:$0xff] %vm633, %v610
      %686 = vst.msk [vmem:[#allocation2 + $0x6d] sm:$0xff] %vm633, %v611
      %687 = vst.msk [vmem:[#allocation2 + $0x75] sm:$0xff] %vm633, %v612
      %688 = vst.msk [vmem:[#allocation2 + $0x7f] sm:$0xff] %vm633, %v613
      %689 = vst.msk [vmem:[#allocation2 + $0x87] sm:$0xff] %vm633, %v614
      %690 = vst.msk [vmem:[#allocation2 + $0x91] sm:$0xff] %vm633, %v615
      %691 = vst.msk [vmem:[#allocation2 + $0x99] sm:$0xff] %vm633, %v616
      %692 = vst.msk [vmem:[#allocation2 + $0xa3] sm:$0xff] %vm633, %v617
      %693 = vst.msk [vmem:[#allocation2 + $0xab] sm:$0xff] %vm633, %v618
      %694 = vst.msk [vmem:[#allocation2 + $0xb5] sm:$0xff] %vm633, %v619
      %695 = vst.msk [vmem:[#allocation2 + $0xbd] sm:$0xff] %vm633, %v620
      %696 = vst.msk [vmem:[#allocation2 + $0xc7] sm:$0xff] %vm633, %v621
      %697 = vst.msk [vmem:[#allocation2 + $0xcf] sm:$0xff] %vm633, %v622
      %698 = vst.msk [vmem:[#allocation2 + $0xd9] sm:$0xff] %vm633, %v623
      %699 = vst.msk [vmem:[#allocation2 + $0xe1] sm:$0xff] %vm633, %v624
      %700 = vst.msk [vmem:[#allocation2 + $0xeb] sm:$0xff] %vm633, %v625
      %701 = vst.msk [vmem:[#allocation2 + $0xf3] sm:$0xff] %vm633, %v626
      %702 = vst.msk [vmem:[#allocation2 + $0xfd] sm:$0xff] %vm633, %v627
      %703 = vst.msk [vmem:[#allocation2 + $0x105] sm:$0xff] %vm633, %v628
      %704 = vst.msk [vmem:[#allocation2 + $0x10f] sm:$0xff] %vm633, %v629
      %705 = vst.msk [vmem:[#allocation2 + $0x117] sm:$0xff] %vm633, %v630
      %706 = vst.msk [vmem:[#allocation2 + $0x121] sm:$0xff] %vm633, %v631
      %707 = vst.msk [vmem:[#allocation2 + $0x129] sm:$0xff] %vm633, %v632
      %v708 = vld [vmem:[#allocation2] ss:$2 sm:$0xff]
      %709 = vst.msk [vmem:[#allocation3] sm:$0xff] %vm633, %v708
      %s710 = scalar_lea.vmem [#allocation2], 36
      %v711 = vld [vmem:[%s710] ss:$2 sm:$0xff]
      %712 = vst.msk [vmem:[#allocation3 + $0x8] sm:$0xff] %vm633, %v711
      %s713 = scalar_lea.vmem [#allocation2], 72
      %v714 = vld [vmem:[%s713] ss:$2 sm:$0xff]
      %715 = vst.msk [vmem:[#allocation3 + $0x10] sm:$0xff] %vm633, %v714
      %s716 = scalar_lea.vmem [#allocation2], 108
      %v717 = vld [vmem:[%s716] ss:$2 sm:$0xff]
      %718 = vst.msk [vmem:[#allocation3 + $0x18] sm:$0xff] %vm633, %v717
      %s719 = scalar_lea.vmem [#allocation2], 144
      %v720 = vld [vmem:[%s719] ss:$2 sm:$0xff]
      %721 = vst.msk [vmem:[#allocation3 + $0x20] sm:$0xff] %vm633, %v720
      %s722 = scalar_lea.vmem [#allocation2], 180
      %v723 = vld [vmem:[%s722] ss:$2 sm:$0xff]
      %724 = vst.msk [vmem:[#allocation3 + $0x28] sm:$0xff] %vm633, %v723
      %s725 = scalar_lea.vmem [#allocation2], 216
      %v726 = vld [vmem:[%s725] ss:$2 sm:$0xff]
      %727 = vst.msk [vmem:[#allocation3 + $0x30] sm:$0xff] %vm633, %v726
      %s728 = scalar_lea.vmem [#allocation2], 252
      %v729 = vld [vmem:[%s728] ss:$2 sm:$0xff]
      %730 = vst.msk [vmem:[#allocation3 + $0x38] sm:$0xff] %vm633, %v729
      %s731 = scalar_lea.vmem [#allocation2], 1
      %v732 = vld [vmem:[%s731] ss:$2 sm:$0xff]
      %734 = vrot.lane.b32.xlu0 %v732, 4
      %v735 = vpop.permute.xlu0 %734
      %vm737 = vcmask 64544
      %738 = vst.msk [vmem:[#allocation3] sm:$0xff] %vm737, %v735
      %s739 = scalar_lea.vmem [#allocation2], 37
      %v740 = vld [vmem:[%s739] ss:$2 sm:$0xff]
      %742 = vrot.lane.b32.xlu0 %v740, 4
      %v743 = vpop.permute.xlu0 %742
      %745 = vst.msk [vmem:[#allocation3 + $0x8] sm:$0xff] %vm737, %v743
      %s746 = scalar_lea.vmem [#allocation2], 73
      %v747 = vld [vmem:[%s746] ss:$2 sm:$0xff]
      %749 = vrot.lane.b32.xlu0 %v747, 4
      %v750 = vpop.permute.xlu0 %749
      %752 = vst.msk [vmem:[#allocation3 + $0x10] sm:$0xff] %vm737, %v750
      %s753 = scalar_lea.vmem [#allocation2], 109
      %v754 = vld [vmem:[%s753] ss:$2 sm:$0xff]
      %756 = vrot.lane.b32.xlu0 %v754, 4
      %v757 = vpop.permute.xlu0 %756
      %759 = vst.msk [vmem:[#allocation3 + $0x18] sm:$0xff] %vm737, %v757
      %s760 = scalar_lea.vmem [#allocation2], 145
      %v761 = vld [vmem:[%s760] ss:$2 sm:$0xff]
      %763 = vrot.lane.b32.xlu0 %v761, 4
      %v764 = vpop.permute.xlu0 %763
      %766 = vst.msk [vmem:[#allocation3 + $0x20] sm:$0xff] %vm737, %v764
      %s767 = scalar_lea.vmem [#allocation2], 181
      %v768 = vld [vmem:[%s767] ss:$2 sm:$0xff]
      %770 = vrot.lane.b32.xlu0 %v768, 4
      %v771 = vpop.permute.xlu0 %770
      %773 = vst.msk [vmem:[#allocation3 + $0x28] sm:$0xff] %vm737, %v771
      %s774 = scalar_lea.vmem [#allocation2], 217
      %v775 = vld [vmem:[%s774] ss:$2 sm:$0xff]
      %777 = vrot.lane.b32.xlu0 %v775, 4
      %v778 = vpop.permute.xlu0 %777
      %780 = vst.msk [vmem:[#allocation3 + $0x30] sm:$0xff] %vm737, %v778
      %s781 = scalar_lea.vmem [#allocation2], 253
      %v782 = vld [vmem:[%s781] ss:$2 sm:$0xff]
      %784 = vrot.lane.b32.xlu0 %v782, 4
      %v785 = vpop.permute.xlu0 %784
      %787 = vst.msk [vmem:[#allocation3 + $0x38] sm:$0xff] %vm737, %v785
      %s788 = scalar_lea.vmem [#allocation2], 2
      %v789 = vld [vmem:[%s788] ss:$2 sm:$0xff]
      %791 = vrot.lane.b32.xlu0 %v789, 8
      %v792 = vpop.permute.xlu0 %791
      %vm794 = vcmask 97344
      %795 = vst.msk [vmem:[#allocation3] sm:$0xff] %vm794, %v792
      %s796 = scalar_lea.vmem [#allocation2], 38
      %v797 = vld [vmem:[%s796] ss:$2 sm:$0xff]
      %799 = vrot.lane.b32.xlu0 %v797, 8
      %v800 = vpop.permute.xlu0 %799
      %802 = vst.msk [vmem:[#allocation3 + $0x8] sm:$0xff] %vm794, %v800
      %s803 = scalar_lea.vmem [#allocation2], 74
      %v804 = vld [vmem:[%s803] ss:$2 sm:$0xff]
      %806 = vrot.lane.b32.xlu0 %v804, 8
      %v807 = vpop.permute.xlu0 %806
      %809 = vst.msk [vmem:[#allocation3 + $0x10] sm:$0xff] %vm794, %v807
      %s810 = scalar_lea.vmem [#allocation2], 110
      %v811 = vld [vmem:[%s810] ss:$2 sm:$0xff]
      %813 = vrot.lane.b32.xlu0 %v811, 8
      %v814 = vpop.permute.xlu0 %813
      %816 = vst.msk [vmem:[#allocation3 + $0x18] sm:$0xff] %vm794, %v814
      %s817 = scalar_lea.vmem [#allocation2], 146
      %v818 = vld [vmem:[%s817] ss:$2 sm:$0xff]
      %820 = vrot.lane.b32.xlu0 %v818, 8
      %v821 = vpop.permute.xlu0 %820
      %823 = vst.msk [vmem:[#allocation3 + $0x20] sm:$0xff] %vm794, %v821
      %s824 = scalar_lea.vmem [#allocation2], 182
      %v825 = vld [vmem:[%s824] ss:$2 sm:$0xff]
      %827 = vrot.lane.b32.xlu0 %v825, 8
      %v828 = vpop.permute.xlu0 %827
      %830 = vst.msk [vmem:[#allocation3 + $0x28] sm:$0xff] %vm794, %v828
      %s831 = scalar_lea.vmem [#allocation2], 218
      %v832 = vld [vmem:[%s831] ss:$2 sm:$0xff]
      %834 = vrot.lane.b32.xlu0 %v832, 8
      %v835 = vpop.permute.xlu0 %834
      %837 = vst.msk [vmem:[#allocation3 + $0x30] sm:$0xff] %vm794, %v835
      %s838 = scalar_lea.vmem [#allocation2], 254
      %v839 = vld [vmem:[%s838] ss:$2 sm:$0xff]
      %841 = vrot.lane.b32.xlu0 %v839, 8
      %v842 = vpop.permute.xlu0 %841
      %844 = vst.msk [vmem:[#allocation3 + $0x38] sm:$0xff] %vm794, %v842
      %s845 = scalar_lea.vmem [#allocation2], 18
      %v846 = vld [vmem:[%s845] ss:$2 sm:$0xff]
      %848 = vrot.lane.b32.xlu0 %v846, 12
      %v849 = vpop.permute.xlu0 %848
      %vm851 = vcmask 130144
      %852 = vst.msk [vmem:[#allocation3] sm:$0xff] %vm851, %v849
      %s853 = scalar_lea.vmem [#allocation2], 54
      %v854 = vld [vmem:[%s853] ss:$2 sm:$0xff]
      %856 = vrot.lane.b32.xlu0 %v854, 12
      %v857 = vpop.permute.xlu0 %856
      %859 = vst.msk [vmem:[#allocation3 + $0x8] sm:$0xff] %vm851, %v857
      %s860 = scalar_lea.vmem [#allocation2], 90
      %v861 = vld [vmem:[%s860] ss:$2 sm:$0xff]
      %863 = vrot.lane.b32.xlu0 %v861, 12
      %v864 = vpop.permute.xlu0 %863
      %866 = vst.msk [vmem:[#allocation3 + $0x10] sm:$0xff] %vm851, %v864
      %s867 = scalar_lea.vmem [#allocation2], 126
      %v868 = vld [vmem:[%s867] ss:$2 sm:$0xff]
      %870 = vrot.lane.b32.xlu0 %v868, 12
      %v871 = vpop.permute.xlu0 %870
      %873 = vst.msk [vmem:[#allocation3 + $0x18] sm:$0xff] %vm851, %v871
      %s874 = scalar_lea.vmem [#allocation2], 162
      %v875 = vld [vmem:[%s874] ss:$2 sm:$0xff]
      %877 = vrot.lane.b32.xlu0 %v875, 12
      %v878 = vpop.permute.xlu0 %877
      %880 = vst.msk [vmem:[#allocation3 + $0x20] sm:$0xff] %vm851, %v878
      %s881 = scalar_lea.vmem [#allocation2], 198
      %v882 = vld [vmem:[%s881] ss:$2 sm:$0xff]
      %884 = vrot.lane.b32.xlu0 %v882, 12
      %v885 = vpop.permute.xlu0 %884
      %887 = vst.msk [vmem:[#allocation3 + $0x28] sm:$0xff] %vm851, %v885
      %s888 = scalar_lea.vmem [#allocation2], 234
      %v889 = vld [vmem:[%s888] ss:$2 sm:$0xff]
      %891 = vrot.lane.b32.xlu0 %v889, 12
      %v892 = vpop.permute.xlu0 %891
      %894 = vst.msk [vmem:[#allocation3 + $0x30] sm:$0xff] %vm851, %v892
      %s895 = scalar_lea.vmem [#allocation2], 270
      %v896 = vld [vmem:[%s895] ss:$2 sm:$0xff]
      %898 = vrot.lane.b32.xlu0 %v896, 12
      %v899 = vpop.permute.xlu0 %898
      %901 = vst.msk [vmem:[#allocation3 + $0x38] sm:$0xff] %vm851, %v899
      %s902 = scalar_lea.vmem [#allocation2], 19
      %v903 = vld [vmem:[%s902] ss:$2 sm:$0xff]
      %905 = vrot.lane.b32.xlu0 %v903, 16
      %v906 = vpop.permute.xlu0 %905
      %vm908 = vcmask 162944
      %909 = vst.msk [vmem:[#allocation3] sm:$0xff] %vm908, %v906
      %s910 = scalar_lea.vmem [#allocation2], 55
      %v911 = vld [vmem:[%s910] ss:$2 sm:$0xff]
      %913 = vrot.lane.b32.xlu0 %v911, 16
      %v914 = vpop.permute.xlu0 %913
      %916 = vst.msk [vmem:[#allocation3 + $0x8] sm:$0xff] %vm908, %v914
      %s917 = scalar_lea.vmem [#allocation2], 91
      %v918 = vld [vmem:[%s917] ss:$2 sm:$0xff]
      %920 = vrot.lane.b32.xlu0 %v918, 16
      %v921 = vpop.permute.xlu0 %920
      %923 = vst.msk [vmem:[#allocation3 + $0x10] sm:$0xff] %vm908, %v921
      %s924 = scalar_lea.vmem [#allocation2], 127
      %v925 = vld [vmem:[%s924] ss:$2 sm:$0xff]
      %927 = vrot.lane.b32.xlu0 %v925, 16
      %v928 = vpop.permute.xlu0 %927
      %930 = vst.msk [vmem:[#allocation3 + $0x18] sm:$0xff] %vm908, %v928
      %s931 = scalar_lea.vmem [#allocation2], 163
      %v932 = vld [vmem:[%s931] ss:$2 sm:$0xff]
      %934 = vrot.lane.b32.xlu0 %v932, 16
      %v935 = vpop.permute.xlu0 %934
      %937 = vst.msk [vmem:[#allocation3 + $0x20] sm:$0xff] %vm908, %v935
      %s938 = scalar_lea.vmem [#allocation2], 199
      %v939 = vld [vmem:[%s938] ss:$2 sm:$0xff]
      %941 = vrot.lane.b32.xlu0 %v939, 16
      %v942 = vpop.permute.xlu0 %941
      %944 = vst.msk [vmem:[#allocation3 + $0x28] sm:$0xff] %vm908, %v942
      %s945 = scalar_lea.vmem [#allocation2], 235
      %v946 = vld [vmem:[%s945] ss:$2 sm:$0xff]
      %948 = vrot.lane.b32.xlu0 %v946, 16
      %v949 = vpop.permute.xlu0 %948
      %951 = vst.msk [vmem:[#allocation3 + $0x30] sm:$0xff] %vm908, %v949
      %s952 = scalar_lea.vmem [#allocation2], 271
      %v953 = vld [vmem:[%s952] ss:$2 sm:$0xff]
      %955 = vrot.lane.b32.xlu0 %v953, 16
      %v956 = vpop.permute.xlu0 %955
      %958 = vst.msk [vmem:[#allocation3 + $0x38] sm:$0xff] %vm908, %v956
      %s959 = scalar_lea.vmem [#allocation2], 20
      %v960 = vld [vmem:[%s959] ss:$2 sm:$0xff]
      %962 = vrot.lane.b32.xlu0 %v960, 20
      %v963 = vpop.permute.xlu0 %962
      %vm965 = vcmask 195744
      %966 = vst.msk [vmem:[#allocation3] sm:$0xff] %vm965, %v963
      %s967 = scalar_lea.vmem [#allocation2], 56
      %v968 = vld [vmem:[%s967] ss:$2 sm:$0xff]
      %970 = vrot.lane.b32.xlu0 %v968, 20
      %v971 = vpop.permute.xlu0 %970
      %973 = vst.msk [vmem:[#allocation3 + $0x8] sm:$0xff] %vm965, %v971
      %s974 = scalar_lea.vmem [#allocation2], 92
      %v975 = vld [vmem:[%s974] ss:$2 sm:$0xff]
      %977 = vrot.lane.b32.xlu0 %v975, 20
      %v978 = vpop.permute.xlu0 %977
      %980 = vst.msk [vmem:[#allocation3 + $0x10] sm:$0xff] %vm965, %v978
      %s981 = scalar_lea.vmem [#allocation2], 128
      %v982 = vld [vmem:[%s981] ss:$2 sm:$0xff]
      %984 = vrot.lane.b32.xlu0 %v982, 20
      %v985 = vpop.permute.xlu0 %984
      %987 = vst.msk [vmem:[#allocation3 + $0x18] sm:$0xff] %vm965, %v985
      %s988 = scalar_lea.vmem [#allocation2], 164
      %v989 = vld [vmem:[%s988] ss:$2 sm:$0xff]
      %991 = vrot.lane.b32.xlu0 %v989, 20
      %v992 = vpop.permute.xlu0 %991
      %994 = vst.msk [vmem:[#allocation3 + $0x20] sm:$0xff] %vm965, %v992
      %s995 = scalar_lea.vmem [#allocation2], 200
      %v996 = vld [vmem:[%s995] ss:$2 sm:$0xff]
      %998 = vrot.lane.b32.xlu0 %v996, 20
      %v999 = vpop.permute.xlu0 %998
      %1001 = vst.msk [vmem:[#allocation3 + $0x28] sm:$0xff] %vm965, %v999
      %s1002 = scalar_lea.vmem [#allocation2], 236
      %v1003 = vld [vmem:[%s1002] ss:$2 sm:$0xff]
      %1005 = vrot.lane.b32.xlu0 %v1003, 20
      %v1006 = vpop.permute.xlu0 %1005
      %1008 = vst.msk [vmem:[#allocation3 + $0x30] sm:$0xff] %vm965, %v1006
      %s1009 = scalar_lea.vmem [#allocation2], 272
      %v1010 = vld [vmem:[%s1009] ss:$2 sm:$0xff]
      %1012 = vrot.lane.b32.xlu0 %v1010, 20
      %v1013 = vpop.permute.xlu0 %1012
      %1015 = vst.msk [vmem:[#allocation3 + $0x38] sm:$0xff] %vm965, %v1013
      %v1016 = vld [vmem:[%s710] ss:$2 sm:$0xff]
      %1018 = vrot.lane.b32.xlu0 %v1016, 24
      %v1019 = vpop.permute.xlu0 %1018
      %vm1021 = vcmask 228544
      %1022 = vst.msk [vmem:[#allocation3] sm:$0xff] %vm1021, %v1019
      %v1023 = vld [vmem:[%s713] ss:$2 sm:$0xff]
      %1025 = vrot.lane.b32.xlu0 %v1023, 24
      %v1026 = vpop.permute.xlu0 %1025
      %1028 = vst.msk [vmem:[#allocation3 + $0x8] sm:$0xff] %vm1021, %v1026
      %v1029 = vld [vmem:[%s716] ss:$2 sm:$0xff]
      %1031 = vrot.lane.b32.xlu0 %v1029, 24
      %v1032 = vpop.permute.xlu0 %1031
      %1034 = vst.msk [vmem:[#allocation3 + $0x10] sm:$0xff] %vm1021, %v1032
      %v1035 = vld [vmem:[%s719] ss:$2 sm:$0xff]
      %1037 = vrot.lane.b32.xlu0 %v1035, 24
      %v1038 = vpop.permute.xlu0 %1037
      %1040 = vst.msk [vmem:[#allocation3 + $0x18] sm:$0xff] %vm1021, %v1038
      %v1041 = vld [vmem:[%s722] ss:$2 sm:$0xff]
      %1043 = vrot.lane.b32.xlu0 %v1041, 24
      %v1044 = vpop.permute.xlu0 %1043
      %1046 = vst.msk [vmem:[#allocation3 + $0x20] sm:$0xff] %vm1021, %v1044
      %v1047 = vld [vmem:[%s725] ss:$2 sm:$0xff]
      %1049 = vrot.lane.b32.xlu0 %v1047, 24
      %v1050 = vpop.permute.xlu0 %1049
      %1052 = vst.msk [vmem:[#allocation3 + $0x28] sm:$0xff] %vm1021, %v1050
      %v1053 = vld [vmem:[%s728] ss:$2 sm:$0xff]
      %1055 = vrot.lane.b32.xlu0 %v1053, 24
      %v1056 = vpop.permute.xlu0 %1055
      %1058 = vst.msk [vmem:[#allocation3 + $0x30] sm:$0xff] %vm1021, %v1056
      %s1059 = scalar_lea.vmem [#allocation2], 288
      %v1060 = vld [vmem:[%s1059] ss:$2 sm:$0xff]
      %1062 = vrot.lane.b32.xlu0 %v1060, 24
      %v1063 = vpop.permute.xlu0 %1062
      %1065 = vst.msk [vmem:[#allocation3 + $0x38] sm:$0xff] %vm1021, %v1063
      %v1066 = vld [vmem:[%s739] ss:$2 sm:$0xff]
      %1068 = vrot.lane.b32.xlu0 %v1066, 28
      %v1069 = vpop.permute.xlu0 %1068
      %vm1071 = vcmask 261344
      %1072 = vst.msk [vmem:[#allocation3] sm:$0xff] %vm1071, %v1069
      %v1073 = vld [vmem:[%s746] ss:$2 sm:$0xff]
      %1075 = vrot.lane.b32.xlu0 %v1073, 28
      %v1076 = vpop.permute.xlu0 %1075
      %1078 = vst.msk [vmem:[#allocation3 + $0x8] sm:$0xff] %vm1071, %v1076
      %v1079 = vld [vmem:[%s753] ss:$2 sm:$0xff]
      %1081 = vrot.lane.b32.xlu0 %v1079, 28
      %v1082 = vpop.permute.xlu0 %1081
      %1084 = vst.msk [vmem:[#allocation3 + $0x10] sm:$0xff] %vm1071, %v1082
      %v1085 = vld [vmem:[%s760] ss:$2 sm:$0xff]
      %1087 = vrot.lane.b32.xlu0 %v1085, 28
      %v1088 = vpop.permute.xlu0 %1087
      %1090 = vst.msk [vmem:[#allocation3 + $0x18] sm:$0xff] %vm1071, %v1088
      %v1091 = vld [vmem:[%s767] ss:$2 sm:$0xff]
      %1093 = vrot.lane.b32.xlu0 %v1091, 28
      %v1094 = vpop.permute.xlu0 %1093
      %1096 = vst.msk [vmem:[#allocation3 + $0x20] sm:$0xff] %vm1071, %v1094
      %v1097 = vld [vmem:[%s774] ss:$2 sm:$0xff]
      %1099 = vrot.lane.b32.xlu0 %v1097, 28
      %v1100 = vpop.permute.xlu0 %1099
      %1102 = vst.msk [vmem:[#allocation3 + $0x28] sm:$0xff] %vm1071, %v1100
      %v1103 = vld [vmem:[%s781] ss:$2 sm:$0xff]
      %1105 = vrot.lane.b32.xlu0 %v1103, 28
      %v1106 = vpop.permute.xlu0 %1105
      %1108 = vst.msk [vmem:[#allocation3 + $0x30] sm:$0xff] %vm1071, %v1106
      %s1109 = scalar_lea.vmem [#allocation2], 289
      %v1110 = vld [vmem:[%s1109] ss:$2 sm:$0xff]
      %1112 = vrot.lane.b32.xlu0 %v1110, 28
      %v1113 = vpop.permute.xlu0 %1112
      %1115 = vst.msk [vmem:[#allocation3 + $0x38] sm:$0xff] %vm1071, %v1113
      %v1116 = vld [vmem:[%s796] ss:$2 sm:$0xff]
      %1118 = vrot.lane.b32.xlu0 %v1116, 32
      %v1119 = vpop.permute.xlu0 %1118
      %vm1121 = vcmask 294144
      %1122 = vst.msk [vmem:[#allocation3] sm:$0xff] %vm1121, %v1119
      %v1123 = vld [vmem:[%s803] ss:$2 sm:$0xff]
      %1125 = vrot.lane.b32.xlu0 %v1123, 32
      %v1126 = vpop.permute.xlu0 %1125
      %1128 = vst.msk [vmem:[#allocation3 + $0x8] sm:$0xff] %vm1121, %v1126
      %v1129 = vld [vmem:[%s810] ss:$2 sm:$0xff]
      %1131 = vrot.lane.b32.xlu0 %v1129, 32
      %v1132 = vpop.permute.xlu0 %1131
      %1134 = vst.msk [vmem:[#allocation3 + $0x10] sm:$0xff] %vm1121, %v1132
      %v1135 = vld [vmem:[%s817] ss:$2 sm:$0xff]
      %1137 = vrot.lane.b32.xlu0 %v1135, 32
      %v1138 = vpop.permute.xlu0 %1137
      %1140 = vst.msk [vmem:[#allocation3 + $0x18] sm:$0xff] %vm1121, %v1138
      %v1141 = vld [vmem:[%s824] ss:$2 sm:$0xff]
      %1143 = vrot.lane.b32.xlu0 %v1141, 32
      %v1144 = vpop.permute.xlu0 %1143
      %1146 = vst.msk [vmem:[#allocation3 + $0x20] sm:$0xff] %vm1121, %v1144
      %v1147 = vld [vmem:[%s831] ss:$2 sm:$0xff]
      %1149 = vrot.lane.b32.xlu0 %v1147, 32
      %v1150 = vpop.permute.xlu0 %1149
      %1152 = vst.msk [vmem:[#allocation3 + $0x28] sm:$0xff] %vm1121, %v1150
      %v1153 = vld [vmem:[%s838] ss:$2 sm:$0xff]
      %1155 = vrot.lane.b32.xlu0 %v1153, 32
      %v1156 = vpop.permute.xlu0 %1155
      %1158 = vst.msk [vmem:[#allocation3 + $0x30] sm:$0xff] %vm1121, %v1156
      %s1159 = scalar_lea.vmem [#allocation2], 290
      %v1160 = vld [vmem:[%s1159] ss:$2 sm:$0xff]
      %1162 = vrot.lane.b32.xlu0 %v1160, 32
      %v1163 = vpop.permute.xlu0 %1162
      %1165 = vst.msk [vmem:[#allocation3 + $0x38] sm:$0xff] %vm1121, %v1163
      %v1166 = vld [vmem:[#allocation3] sm:$0xff]
      %v1167 = vld [vmem:[#allocation3 + $0x8] sm:$0xff]
      %v1168 = vld [vmem:[#allocation3 + $0x10] sm:$0xff]
      %v1169 = vld [vmem:[#allocation3 + $0x18] sm:$0xff]
      %v1170 = vld [vmem:[#allocation3 + $0x20] sm:$0xff]
      %v1171 = vld [vmem:[#allocation3 + $0x28] sm:$0xff]
      %v1172 = vld [vmem:[#allocation3 + $0x30] sm:$0xff]
      %v1173 = vld [vmem:[#allocation3 + $0x38] sm:$0xff]
      %v1174 = vld [vmem:[%s1] sm:$0xff]
      %v1175 = vld [vmem:[%s1 + $0x8] sm:$0xff]
      %v1176 = vld [vmem:[%s1 + $0x10] sm:$0xff]
      %v1177 = vld [vmem:[%s1 + $0x18] sm:$0xff]
      %v1178 = vld [vmem:[%s1 + $0x20] sm:$0xf]
      %v1179 = vld [vmem:[%s2] sm:$0x1]
      %v1181 = vlaneseq
      %v1182 = vshrl.u32 %v1181, 7
      %v1183 = vsub.s32 0, %v1182
      %v1184 = vrot.slane %v1179, %v1183
      %vm1186 = vcmask 293888
      %v1188 = vsel %vm1186, %v1166, 0
      %v1191 = vsel %vm1186, %v1167, 0
      %v1194 = vsel %vm1186, %v1168, 0
      %v1197 = vsel %vm1186, %v1169, 0
      %v1200 = vsel %vm1186, %v1170, 0
      %v1203 = vsel %vm1186, %v1171, 0
      %v1206 = vsel %vm1186, %v1172, 0
      %v1209 = vsel %vm1186, %v1173, 0
      %vm1211 = vcmask 1043456
      %v1213 = vsel %vm1211, %v1178, 0
      %1215 = vmatprep.subr.mxu0 0.0
      %1216 = vmatpush1.msra.mxu0 0.0
      %1217 = vmatprep.subr.mxu0 0.0
      %1218 = vmatpush1.msra.mxu0 0.0
      %1219 = vmatprep.subr.mxu0 0.0
      %1220 = vmatpush1.msra.mxu0 0.0
      %1221 = vmatprep.subr.mxu0 0.0
      %1222 = vmatpush1.msra.mxu0 0.0
      %1223 = vmatprep.subr.mxu0 0.0
      %1224 = vmatpush1.msra.mxu0 0.0
      %1225 = vmatprep.subr.mxu0 0.0
      %1226 = vmatpush1.msra.mxu0 0.0
      %1227 = vmatprep.subr.mxu0 0.0
      %1228 = vmatpush1.msra.mxu0 0.0
      %1229 = vmatprep.subr.mxu0 0.0
      %1230 = vmatpush1.msra.mxu0 0.0
      %1231 = vmatprep.subr.mxu0 0.0
      %1232 = vmatpush1.msra.mxu0 0.0
      %1233 = vmatprep.subr.mxu0 0.0
      %1234 = vmatpush1.msra.mxu0 0.0
      %1235 = vmatprep.subr.mxu0 0.0
      %1236 = vmatpush1.msra.mxu0 0.0
      %1237 = vmatprep.subr.mxu0 0.0
      %1238 = vmatpush1.msra.mxu0 %v1213
      %1239 = vmatprep.subr.mxu0 0.0
      %1240 = vmatpush1.msra.mxu0 %v1177
      %1241 = vmatprep.subr.mxu0 0.0
      %1242 = vmatpush1.msra.mxu0 %v1176
      %1243 = vmatprep.subr.mxu0 0.0
      %1244 = vmatpush1.msra.mxu0 %v1175
      %1245 = vmatprep.subr.mxu0 0.0
      %1246 = vmatpush1.msra.mxu0 %v1174
      %1247 = vmatprep.subr.mxu0 0.0
      %1248 = vmatpush2.msra.mxu0 0.0
      %1249 = vmatprep.subr.mxu0 0.0
      %1250 = vmatpush2.msra.mxu0 0.0
      %1251 = vmatprep.subr.mxu0 0.0
      %1252 = vmatpush2.msra.mxu0 0.0
      %1253 = vmatprep.subr.mxu0 0.0
      %1254 = vmatpush2.msra.mxu0 0.0
      %1255 = vmatprep.subr.mxu0 0.0
      %1256 = vmatpush2.msra.mxu0 0.0
      %1257 = vmatprep.subr.mxu0 0.0
      %1258 = vmatpush2.msra.mxu0 0.0
      %1259 = vmatprep.subr.mxu0 0.0
      %1260 = vmatpush2.msra.mxu0 0.0
      %1261 = vmatprep.subr.mxu0 0.0
      %1262 = vmatpush2.msra.mxu0 0.0
      %1263 = vmatprep.subr.mxu0 0.0
      %1264 = vmatpush2.msra.mxu0 0.0
      %1265 = vmatprep.subr.mxu0 0.0
      %1266 = vmatpush2.msra.mxu0 0.0
      %1267 = vmatprep.subr.mxu0 0.0
      %1268 = vmatpush2.msra.mxu0 0.0
      %1269 = vmatprep.subr.mxu0 0.0
      %1270 = vmatpush2.msra.mxu0 0.0
      %1271 = vmatprep.subr.mxu0 0.0
      %1272 = vmatpush2.msra.mxu0 0.0
      %1273 = vmatprep.subr.mxu0 0.0
      %1274 = vmatpush2.msra.mxu0 0.0
      %1275 = vmatprep.subr.mxu0 0.0
      %1276 = vmatpush2.msra.mxu0 0.0
      %1277 = vmatprep.subr.mxu0 0.0
      %1278 = vmatpush2.msra.mxu0 0.0
      %1279 = vmatprep.mubr.f32.mxu0 0.0
      %1280 = vmatmul.mubr.f32.gmra.mxu0 %v1188
      %v1281 = vpop.f32.mrf.mxu0
      %v1282 = vadd.f32 %v1184, %v1281
      %v1283 = vpop.f32.mrf.mxu0
      %1284 = vmatprep.mubr.f32.mxu0 0.0
      %1285 = vmatmul.mubr.f32.gmra.mxu0 %v1191
      %v1286 = vpop.f32.mrf.mxu0
      %v1287 = vadd.f32 %v1184, %v1286
      %v1288 = vpop.f32.mrf.mxu0
      %1289 = vmatprep.mubr.f32.mxu0 0.0
      %1290 = vmatmul.mubr.f32.gmra.mxu0 %v1194
      %v1291 = vpop.f32.mrf.mxu0
      %v1292 = vadd.f32 %v1184, %v1291
      %v1293 = vpop.f32.mrf.mxu0
      %1294 = vmatprep.mubr.f32.mxu0 0.0
      %1295 = vmatmul.mubr.f32.gmra.mxu0 %v1197
      %v1296 = vpop.f32.mrf.mxu0
      %v1297 = vadd.f32 %v1184, %v1296
      %v1298 = vpop.f32.mrf.mxu0
      %1299 = vmatprep.mubr.f32.mxu0 0.0
      %1300 = vmatmul.mubr.f32.gmra.mxu0 %v1200
      %v1301 = vpop.f32.mrf.mxu0
      %v1302 = vadd.f32 %v1184, %v1301
      %v1303 = vpop.f32.mrf.mxu0
      %1304 = vmatprep.mubr.f32.mxu0 0.0
      %1305 = vmatmul.mubr.f32.gmra.mxu0 %v1203
      %v1306 = vpop.f32.mrf.mxu0
      %v1307 = vadd.f32 %v1184, %v1306
      %v1308 = vpop.f32.mrf.mxu0
      %1309 = vmatprep.mubr.f32.mxu0 0.0
      %1310 = vmatmul.mubr.f32.gmra.mxu0 %v1206
      %v1311 = vpop.f32.mrf.mxu0
      %v1312 = vadd.f32 %v1184, %v1311
      %v1313 = vpop.f32.mrf.mxu0
      %1314 = vmatprep.mubr.f32.mxu0 0.0
      %1315 = vmatmul.mubr.f32.gmra.mxu0 %v1209
      %v1316 = vpop.f32.mrf.mxu0
      %v1317 = vadd.f32 %v1184, %v1316
      %v1318 = vpop.f32.mrf.mxu0
      %1319 = vdwg.mxu0
      %vm1320 = vcmp.ge.f32.partialorder %v1282, 0.0
      %vm1321 = vcmp.ge.f32.partialorder %v1287, 0.0
      %vm1322 = vcmp.ge.f32.partialorder %v1292, 0.0
      %vm1323 = vcmp.ge.f32.partialorder %v1297, 0.0
      %vm1324 = vcmp.ge.f32.partialorder %v1302, 0.0
      %vm1325 = vcmp.ge.f32.partialorder %v1307, 0.0
      %vm1326 = vcmp.ge.f32.partialorder %v1312, 0.0
      %vm1327 = vcmp.ge.f32.partialorder %v1317, 0.0
      %v1328 = vmul.f32 %v1282, 0.2
      %v1329 = vmul.f32 %v1287, 0.2
      %v1330 = vmul.f32 %v1292, 0.2
      %v1331 = vmul.f32 %v1297, 0.2
      %v1332 = vmul.f32 %v1302, 0.2
      %v1333 = vmul.f32 %v1307, 0.2
      %v1334 = vmul.f32 %v1312, 0.2
      %v1335 = vmul.f32 %v1317, 0.2
      %v1336 = vsel %vm1320, %v1282, %v1328
      %v1337 = vsel %vm1321, %v1287, %v1329
      %v1338 = vsel %vm1322, %v1292, %v1330
      %v1339 = vsel %vm1323, %v1297, %v1331
      %v1340 = vsel %vm1324, %v1302, %v1332
      %v1341 = vsel %vm1325, %v1307, %v1333
      %v1342 = vsel %vm1326, %v1312, %v1334
      %v1343 = vsel %vm1327, %v1317, %v1335
      %v1344 = vld [vmem:[%s3] sm:$0x1]
      %v1346 = vlaneseq
      %v1347 = vshrl.u32 %v1346, 7
      %v1348 = vsub.s32 0, %v1347
      %v1349 = vrot.slane %v1344, %v1348
      %v1351 = vmul.f32 %v1336, %v1349
      %v1352 = vmul.f32 %v1337, %v1349
      %v1353 = vmul.f32 %v1338, %v1349
      %v1354 = vmul.f32 %v1339, %v1349
      %v1355 = vmul.f32 %v1340, %v1349
      %v1356 = vmul.f32 %v1341, %v1349
      %v1357 = vmul.f32 %v1342, %v1349
      %v1358 = vmul.f32 %v1343, %v1349
      %v1359 = vld [vmem:[%s4] sm:$0x1]
      %v1361 = vlaneseq
      %v1362 = vshrl.u32 %v1361, 7
      %v1363 = vsub.s32 0, %v1362
      %v1364 = vrot.slane %v1359, %v1363
      %v1366 = vadd.f32 %v1351, %v1364
      %v1367 = vadd.f32 %v1352, %v1364
      %v1368 = vadd.f32 %v1353, %v1364
      %v1369 = vadd.f32 %v1354, %v1364
      %v1370 = vadd.f32 %v1355, %v1364
      %v1371 = vadd.f32 %v1356, %v1364
      %v1372 = vadd.f32 %v1357, %v1364
      %v1373 = vadd.f32 %v1358, %v1364
      %vm1374 = vcmask 130048
      %1375 = vst.msk [vmem:[#allocation4] sm:$0xff] %vm1374, 0.0
      %1376 = vst.msk [vmem:[#allocation4 + $0x8] sm:$0xff] %vm1374, 0.0
      %1377 = vst.msk [vmem:[#allocation4 + $0x10] sm:$0xff] %vm1374, 0.0
      %1378 = vst.msk [vmem:[#allocation4 + $0x18] sm:$0xff] %vm1374, 0.0
      %1379 = vst.msk [vmem:[#allocation4 + $0x20] sm:$0xff] %vm1374, 0.0
      %1380 = vst.msk [vmem:[#allocation4 + $0x28] sm:$0xff] %vm1374, 0.0
      %1381 = vst.msk [vmem:[#allocation4 + $0x30] sm:$0xff] %vm1374, 0.0
      %1382 = vst.msk [vmem:[#allocation4 + $0x38] sm:$0xff] %vm1374, 0.0
      %1383 = vst.msk [vmem:[#allocation4 + $0x40] sm:$0xff] %vm1374, 0.0
      %1384 = vst.msk [vmem:[#allocation4 + $0x48] sm:$0xff] %vm1374, 0.0
      %1385 = vst.msk [vmem:[#allocation4 + $0x50] sm:$0xff] %vm1374, 0.0
      %1386 = vst.msk [vmem:[#allocation4 + $0x58] sm:$0xff] %vm1374, 0.0
      %vm1387 = vcmask 125952
      %1388 = vst.msk [vmem:[#allocation4 + $0x60] sm:$0xf] %vm1387, 0.0
      %1389 = vst.msk [vmem:[#allocation4 + $0xb] sm:$0xff] %vm1374, %v1366
      %1390 = vst.msk [vmem:[#allocation4 + $0x15] sm:$0xff] %vm1374, %v1367
      %1391 = vst.msk [vmem:[#allocation4 + $0x1f] sm:$0xff] %vm1374, %v1368
      %1392 = vst.msk [vmem:[#allocation4 + $0x29] sm:$0xff] %vm1374, %v1369
      %1393 = vst.msk [vmem:[#allocation4 + $0x33] sm:$0xff] %vm1374, %v1370
      %1394 = vst.msk [vmem:[#allocation4 + $0x3d] sm:$0xff] %vm1374, %v1371
      %1395 = vst.msk [vmem:[#allocation4 + $0x47] sm:$0xff] %vm1374, %v1372
      %1396 = vst.msk [vmem:[#allocation4 + $0x51] sm:$0xff] %vm1374, %v1373
      %v1397 = vld [vmem:[#allocation4] ss:$2 sm:$0xf]
      %1398 = vst.msk [vmem:[#allocation5] sm:$0xf] %vm1387, %v1397
      %s1399 = scalar_lea.vmem [#allocation4], 20
      %v1400 = vld [vmem:[%s1399] ss:$2 sm:$0xf]
      %v1402 = vrot.slane %v1400, 4
      %vm1404 = vcmask 130052
      %1405 = vst.msk [vmem:[#allocation5] sm:$0xf0] %vm1404, %v1402
      %s1406 = scalar_lea.vmem [#allocation4], 40
      %v1407 = vld [vmem:[%s1406] ss:$2 sm:$0xf]
      %1408 = vst.msk [vmem:[#allocation5 + $0x10] sm:$0xf] %vm1387, %v1407
      %s1409 = scalar_lea.vmem [#allocation4], 60
      %v1410 = vld [vmem:[%s1409] ss:$2 sm:$0xf]
      %v1412 = vrot.slane %v1410, 4
      %1414 = vst.msk [vmem:[#allocation5 + $0x10] sm:$0xf0] %vm1404, %v1412
      %s1415 = scalar_lea.vmem [#allocation4], 1
      %v1416 = vld [vmem:[%s1415] ss:$2 sm:$0xf]
      %1418 = vrot.lane.b32.xlu0 %v1416, 16
      %v1419 = vpop.permute.xlu0 %1418
      %vm1421 = vcmask 257152
      %1422 = vst.msk [vmem:[#allocation5] sm:$0xf] %vm1421, %v1419
      %s1423 = scalar_lea.vmem [#allocation4], 21
      %v1424 = vld [vmem:[%s1423] ss:$2 sm:$0xf]
      %v1426 = vrot.slane %v1424, 4
      %1427 = vrot.lane.b32.xlu0 %v1426, 16
      %v1428 = vpop.permute.xlu0 %1427
      %vm1430 = vcmask 261252
      %1431 = vst.msk [vmem:[#allocation5] sm:$0xf0] %vm1430, %v1428
      %s1432 = scalar_lea.vmem [#allocation4], 41
      %v1433 = vld [vmem:[%s1432] ss:$2 sm:$0xf]
      %1435 = vrot.lane.b32.xlu0 %v1433, 16
      %v1436 = vpop.permute.xlu0 %1435
      %1438 = vst.msk [vmem:[#allocation5 + $0x10] sm:$0xf] %vm1421, %v1436
      %s1439 = scalar_lea.vmem [#allocation4], 61
      %v1440 = vld [vmem:[%s1439] ss:$2 sm:$0xf]
      %v1442 = vrot.slane %v1440, 4
      %1443 = vrot.lane.b32.xlu0 %v1442, 16
      %v1444 = vpop.permute.xlu0 %1443
      %1446 = vst.msk [vmem:[#allocation5 + $0x10] sm:$0xf0] %vm1430, %v1444
      %s1447 = scalar_lea.vmem [#allocation4], 2
      %v1448 = vld [vmem:[%s1447] ss:$2 sm:$0xf]
      %1450 = vrot.lane.b32.xlu0 %v1448, 32
      %v1451 = vpop.permute.xlu0 %1450
      %vm1453 = vcmask 388352
      %1454 = vst.msk [vmem:[#allocation5] sm:$0xf] %vm1453, %v1451
      %s1455 = scalar_lea.vmem [#allocation4], 22
      %v1456 = vld [vmem:[%s1455] ss:$2 sm:$0xf]
      %v1458 = vrot.slane %v1456, 4
      %1459 = vrot.lane.b32.xlu0 %v1458, 32
      %v1460 = vpop.permute.xlu0 %1459
      %vm1462 = vcmask 392452
      %1463 = vst.msk [vmem:[#allocation5] sm:$0xf0] %vm1462, %v1460
      %s1464 = scalar_lea.vmem [#allocation4], 42
      %v1465 = vld [vmem:[%s1464] ss:$2 sm:$0xf]
      %1467 = vrot.lane.b32.xlu0 %v1465, 32
      %v1468 = vpop.permute.xlu0 %1467
      %1470 = vst.msk [vmem:[#allocation5 + $0x10] sm:$0xf] %vm1453, %v1468
      %s1471 = scalar_lea.vmem [#allocation4], 62
      %v1472 = vld [vmem:[%s1471] ss:$2 sm:$0xf]
      %v1474 = vrot.slane %v1472, 4
      %1475 = vrot.lane.b32.xlu0 %v1474, 32
      %v1476 = vpop.permute.xlu0 %1475
      %1478 = vst.msk [vmem:[#allocation5 + $0x10] sm:$0xf0] %vm1462, %v1476
      %s1479 = scalar_lea.vmem [#allocation4], 10
      %v1480 = vld [vmem:[%s1479] ss:$2 sm:$0xf]
      %1482 = vrot.lane.b32.xlu0 %v1480, 48
      %v1483 = vpop.permute.xlu0 %1482
      %vm1485 = vcmask 519552
      %1486 = vst.msk [vmem:[#allocation5] sm:$0xf] %vm1485, %v1483
      %s1487 = scalar_lea.vmem [#allocation4], 30
      %v1488 = vld [vmem:[%s1487] ss:$2 sm:$0xf]
      %v1490 = vrot.slane %v1488, 4
      %1491 = vrot.lane.b32.xlu0 %v1490, 48
      %v1492 = vpop.permute.xlu0 %1491
      %vm1494 = vcmask 523652
      %1495 = vst.msk [vmem:[#allocation5] sm:$0xf0] %vm1494, %v1492
      %s1496 = scalar_lea.vmem [#allocation4], 50
      %v1497 = vld [vmem:[%s1496] ss:$2 sm:$0xf]
      %1499 = vrot.lane.b32.xlu0 %v1497, 48
      %v1500 = vpop.permute.xlu0 %1499
      %1502 = vst.msk [vmem:[#allocation5 + $0x10] sm:$0xf] %vm1485, %v1500
      %s1503 = scalar_lea.vmem [#allocation4], 70
      %v1504 = vld [vmem:[%s1503] ss:$2 sm:$0xf]
      %v1506 = vrot.slane %v1504, 4
      %1507 = vrot.lane.b32.xlu0 %v1506, 48
      %v1508 = vpop.permute.xlu0 %1507
      %1510 = vst.msk [vmem:[#allocation5 + $0x10] sm:$0xf0] %vm1494, %v1508
      %s1511 = scalar_lea.vmem [#allocation4], 11
      %v1512 = vld [vmem:[%s1511] ss:$2 sm:$0xf]
      %1514 = vrot.lane.b32.xlu0 %v1512, 64
      %v1515 = vpop.permute.xlu0 %1514
      %vm1517 = vcmask 650752
      %1518 = vst.msk [vmem:[#allocation5] sm:$0xf] %vm1517, %v1515
      %s1519 = scalar_lea.vmem [#allocation4], 31
      %v1520 = vld [vmem:[%s1519] ss:$2 sm:$0xf]
      %v1522 = vrot.slane %v1520, 4
      %1523 = vrot.lane.b32.xlu0 %v1522, 64
      %v1524 = vpop.permute.xlu0 %1523
      %vm1526 = vcmask 654852
      %1527 = vst.msk [vmem:[#allocation5] sm:$0xf0] %vm1526, %v1524
      %s1528 = scalar_lea.vmem [#allocation4], 51
      %v1529 = vld [vmem:[%s1528] ss:$2 sm:$0xf]
      %1531 = vrot.lane.b32.xlu0 %v1529, 64
      %v1532 = vpop.permute.xlu0 %1531
      %1534 = vst.msk [vmem:[#allocation5 + $0x10] sm:$0xf] %vm1517, %v1532
      %s1535 = scalar_lea.vmem [#allocation4], 71
      %v1536 = vld [vmem:[%s1535] ss:$2 sm:$0xf]
      %v1538 = vrot.slane %v1536, 4
      %1539 = vrot.lane.b32.xlu0 %v1538, 64
      %v1540 = vpop.permute.xlu0 %1539
      %1542 = vst.msk [vmem:[#allocation5 + $0x10] sm:$0xf0] %vm1526, %v1540
      %s1543 = scalar_lea.vmem [#allocation4], 12
      %v1544 = vld [vmem:[%s1543] ss:$2 sm:$0xf]
      %1546 = vrot.lane.b32.xlu0 %v1544, 80
      %v1547 = vpop.permute.xlu0 %1546
      %vm1549 = vcmask 781952
      %1550 = vst.msk [vmem:[#allocation5] sm:$0xf] %vm1549, %v1547
      %s1551 = scalar_lea.vmem [#allocation4], 32
      %v1552 = vld [vmem:[%s1551] ss:$2 sm:$0xf]
      %v1554 = vrot.slane %v1552, 4
      %1555 = vrot.lane.b32.xlu0 %v1554, 80
      %v1556 = vpop.permute.xlu0 %1555
      %vm1558 = vcmask 786052
      %1559 = vst.msk [vmem:[#allocation5] sm:$0xf0] %vm1558, %v1556
      %s1560 = scalar_lea.vmem [#allocation4], 52
      %v1561 = vld [vmem:[%s1560] ss:$2 sm:$0xf]
      %1563 = vrot.lane.b32.xlu0 %v1561, 80
      %v1564 = vpop.permute.xlu0 %1563
      %1566 = vst.msk [vmem:[#allocation5 + $0x10] sm:$0xf] %vm1549, %v1564
      %s1567 = scalar_lea.vmem [#allocation4], 72
      %v1568 = vld [vmem:[%s1567] ss:$2 sm:$0xf]
      %v1570 = vrot.slane %v1568, 4
      %1571 = vrot.lane.b32.xlu0 %v1570, 80
      %v1572 = vpop.permute.xlu0 %1571
      %1574 = vst.msk [vmem:[#allocation5 + $0x10] sm:$0xf0] %vm1558, %v1572
      %v1575 = vld [vmem:[%s1399] ss:$2 sm:$0xf]
      %1577 = vrot.lane.b32.xlu0 %v1575, 96
      %v1578 = vpop.permute.xlu0 %1577
      %vm1580 = vcmask 913152
      %1581 = vst.msk [vmem:[#allocation5] sm:$0xf] %vm1580, %v1578
      %v1582 = vld [vmem:[%s1406] ss:$2 sm:$0xf]
      %v1584 = vrot.slane %v1582, 4
      %1585 = vrot.lane.b32.xlu0 %v1584, 96
      %v1586 = vpop.permute.xlu0 %1585
      %vm1588 = vcmask 917252
      %1589 = vst.msk [vmem:[#allocation5] sm:$0xf0] %vm1588, %v1586
      %v1590 = vld [vmem:[%s1409] ss:$2 sm:$0xf]
      %1592 = vrot.lane.b32.xlu0 %v1590, 96
      %v1593 = vpop.permute.xlu0 %1592
      %1595 = vst.msk [vmem:[#allocation5 + $0x10] sm:$0xf] %vm1580, %v1593
      %s1596 = scalar_lea.vmem [#allocation4], 80
      %v1597 = vld [vmem:[%s1596] ss:$2 sm:$0xf]
      %v1599 = vrot.slane %v1597, 4
      %1600 = vrot.lane.b32.xlu0 %v1599, 96
      %v1601 = vpop.permute.xlu0 %1600
      %1603 = vst.msk [vmem:[#allocation5 + $0x10] sm:$0xf0] %vm1588, %v1601
      %v1604 = vld [vmem:[%s1423] ss:$2 sm:$0xf]
      %1606 = vrot.lane.b32.xlu0 %v1604, 112
      %v1607 = vpop.permute.xlu0 %1606
      %vm1609 = vcmask 1044352
      %1610 = vst.msk [vmem:[#allocation5] sm:$0xf] %vm1609, %v1607
      %v1611 = vld [vmem:[%s1432] ss:$2 sm:$0xf]
      %v1613 = vrot.slane %v1611, 4
      %1614 = vrot.lane.b32.xlu0 %v1613, 112
      %v1615 = vpop.permute.xlu0 %1614
      %vm1617 = vcmask 1048452
      %1618 = vst.msk [vmem:[#allocation5] sm:$0xf0] %vm1617, %v1615
      %v1619 = vld [vmem:[%s1439] ss:$2 sm:$0xf]
      %1621 = vrot.lane.b32.xlu0 %v1619, 112
      %v1622 = vpop.permute.xlu0 %1621
      %1624 = vst.msk [vmem:[#allocation5 + $0x10] sm:$0xf] %vm1609, %v1622
      %s1625 = scalar_lea.vmem [#allocation4], 81
      %v1626 = vld [vmem:[%s1625] ss:$2 sm:$0xf]
      %v1628 = vrot.slane %v1626, 4
      %1629 = vrot.lane.b32.xlu0 %v1628, 112
      %v1630 = vpop.permute.xlu0 %1629
      %1632 = vst.msk [vmem:[#allocation5 + $0x10] sm:$0xf0] %vm1617, %v1630
      %v1633 = vld [vmem:[%s1455] ss:$2 sm:$0xf]
      %1634 = vst.msk [vmem:[#allocation5 + $0x8] sm:$0xf] %vm1387, %v1633
      %v1635 = vld [vmem:[%s1464] ss:$2 sm:$0xf]
      %v1637 = vrot.slane %v1635, 4
      %1639 = vst.msk [vmem:[#allocation5 + $0x8] sm:$0xf0] %vm1404, %v1637
      %v1640 = vld [vmem:[%s1471] ss:$2 sm:$0xf]
      %1641 = vst.msk [vmem:[#allocation5 + $0x18] sm:$0xf] %vm1387, %v1640
      %s1642 = scalar_lea.vmem [#allocation4], 82
      %v1643 = vld [vmem:[%s1642] ss:$2 sm:$0xf]
      %v1645 = vrot.slane %v1643, 4
      %1647 = vst.msk [vmem:[#allocation5 + $0x18] sm:$0xf0] %vm1404, %v1645
      %v1648 = vld [vmem:[#allocation5] sm:$0xff]
      %v1649 = vld [vmem:[#allocation5 + $0x8] sm:$0xff]
      %v1650 = vld [vmem:[#allocation5 + $0x10] sm:$0xff]
      %v1651 = vld [vmem:[#allocation5 + $0x18] sm:$0xff]
      %v1652 = vld [vmem:[%s5] sm:$0xff]
      %v1653 = vld [vmem:[%s5 + $0x8] sm:$0xff]
      %v1654 = vld [vmem:[%s5 + $0x10] sm:$0xff]
      %v1655 = vld [vmem:[%s5 + $0x18] sm:$0xff]
      %v1656 = vld [vmem:[%s5 + $0x20] sm:$0xff]
      %v1657 = vld [vmem:[%s5 + $0x28] sm:$0xff]
      %v1658 = vld [vmem:[%s5 + $0x30] sm:$0xff]
      %v1659 = vld [vmem:[%s5 + $0x38] sm:$0xff]
      %v1660 = vld [vmem:[%s5 + $0x40] sm:$0xff]
      %v1661 = vld [vmem:[%s5 + $0x48] sm:$0xff]
      %v1662 = vld [vmem:[%s5 + $0x50] sm:$0xff]
      %v1663 = vld [vmem:[%s5 + $0x58] sm:$0xff]
      %v1664 = vld [vmem:[%s5 + $0x60] sm:$0xff]
      %v1665 = vld [vmem:[%s5 + $0x68] sm:$0xff]
      %v1666 = vld [vmem:[%s5 + $0x70] sm:$0xff]
      %v1667 = vld [vmem:[%s5 + $0x78] sm:$0xff]
      %v1668 = vld [vmem:[%s5 + $0x80] sm:$0xff]
      %v1669 = vld [vmem:[%s5 + $0x88] sm:$0xff]
      %v1670 = vld [vmem:[%s6] sm:$0x1]
      %v1672 = vlaneseq
      %v1673 = vshrl.u32 %v1672, 7
      %v1674 = vsub.s32 0, %v1673
      %v1675 = vrot.slane %v1670, %v1674
      %v1678 = vsel %vm1374, %v1649, 0
      %v1681 = vsel %vm1374, %v1651, 0
      %1683 = vmatprep.subr.mxu0 0.0
      %1684 = vmatpush1.msra.mxu0 %v1667
      %1685 = vmatprep.subr.mxu0 0.0
      %1686 = vmatpush1.msra.mxu0 %v1666
      %1687 = vmatprep.subr.mxu0 0.0
      %1688 = vmatpush1.msra.mxu0 %v1665
      %1689 = vmatprep.subr.mxu0 0.0
      %1690 = vmatpush1.msra.mxu0 %v1664
      %1691 = vmatprep.subr.mxu0 0.0
      %1692 = vmatpush1.msra.mxu0 %v1663
      %1693 = vmatprep.subr.mxu0 0.0
      %1694 = vmatpush1.msra.mxu0 %v1662
      %1695 = vmatprep.subr.mxu0 0.0
      %1696 = vmatpush1.msra.mxu0 %v1661
      %1697 = vmatprep.subr.mxu0 0.0
      %1698 = vmatpush1.msra.mxu0 %v1660
      %1699 = vmatprep.subr.mxu0 0.0
      %1700 = vmatpush1.msra.mxu0 %v1659
      %1701 = vmatprep.subr.mxu0 0.0
      %1702 = vmatpush1.msra.mxu0 %v1658
      %1703 = vmatprep.subr.mxu0 0.0
      %1704 = vmatpush1.msra.mxu0 %v1657
      %1705 = vmatprep.subr.mxu0 0.0
      %1706 = vmatpush1.msra.mxu0 %v1656
      %1707 = vmatprep.subr.mxu0 0.0
      %1708 = vmatpush1.msra.mxu0 %v1655
      %1709 = vmatprep.subr.mxu0 0.0
      %1710 = vmatpush1.msra.mxu0 %v1654
      %1711 = vmatprep.subr.mxu0 0.0
      %1712 = vmatpush1.msra.mxu0 %v1653
      %1713 = vmatprep.subr.mxu0 0.0
      %1714 = vmatpush1.msra.mxu0 %v1652
      %1715 = vmatprep.subr.mxu0 0.0
      %1716 = vmatpush2.msra.mxu0 0.0
      %1717 = vmatprep.subr.mxu0 0.0
      %1718 = vmatpush2.msra.mxu0 0.0
      %1719 = vmatprep.subr.mxu0 0.0
      %1720 = vmatpush2.msra.mxu0 0.0
      %1721 = vmatprep.subr.mxu0 0.0
      %1722 = vmatpush2.msra.mxu0 0.0
      %1723 = vmatprep.subr.mxu0 0.0
      %1724 = vmatpush2.msra.mxu0 0.0
      %1725 = vmatprep.subr.mxu0 0.0
      %1726 = vmatpush2.msra.mxu0 0.0
      %1727 = vmatprep.subr.mxu0 0.0
      %1728 = vmatpush2.msra.mxu0 0.0
      %1729 = vmatprep.subr.mxu0 0.0
      %1730 = vmatpush2.msra.mxu0 0.0
      %1731 = vmatprep.subr.mxu0 0.0
      %1732 = vmatpush2.msra.mxu0 0.0
      %1733 = vmatprep.subr.mxu0 0.0
      %1734 = vmatpush2.msra.mxu0 0.0
      %1735 = vmatprep.subr.mxu0 0.0
      %1736 = vmatpush2.msra.mxu0 0.0
      %1737 = vmatprep.subr.mxu0 0.0
      %1738 = vmatpush2.msra.mxu0 0.0
      %1739 = vmatprep.subr.mxu0 0.0
      %1740 = vmatpush2.msra.mxu0 0.0
      %1741 = vmatprep.subr.mxu0 0.0
      %1742 = vmatpush2.msra.mxu0 0.0
      %1743 = vmatprep.subr.mxu0 0.0
      %1744 = vmatpush2.msra.mxu0 %v1669
      %1745 = vmatprep.subr.mxu0 0.0
      %1746 = vmatpush2.msra.mxu0 %v1668
      %1747 = vmatprep.mubr.f32.mxu0 %v1678
      %1748 = vmatmul.mubr.f32.gmra.mxu0 %v1648
      %v1749 = vpop.f32.mrf.mxu0
      %v1750 = vadd.f32 %v1675, %v1749
      %v1751 = vpop.f32.mrf.mxu0
      %1752 = vmatprep.mubr.f32.mxu0 %v1681
      %1753 = vmatmul.mubr.f32.gmra.mxu0 %v1650
      %v1754 = vpop.f32.mrf.mxu0
      %v1755 = vadd.f32 %v1675, %v1754
      %v1756 = vpop.f32.mrf.mxu0
      %1757 = vdwg.mxu0
      %vm1758 = vcmp.ge.f32.partialorder %v1750, 0.0
      %vm1759 = vcmp.ge.f32.partialorder %v1755, 0.0
      %v1760 = vmul.f32 %v1750, 0.2
      %v1761 = vmul.f32 %v1755, 0.2
      %v1762 = vsel %vm1758, %v1750, %v1760
      %v1763 = vsel %vm1759, %v1755, %v1761
      %v1764 = vld [vmem:[%s7] sm:$0x1]
      %v1766 = vlaneseq
      %v1767 = vshrl.u32 %v1766, 7
      %v1768 = vsub.s32 0, %v1767
      %v1769 = vrot.slane %v1764, %v1768
      %v1771 = vmul.f32 %v1762, %v1769
      %v1772 = vmul.f32 %v1763, %v1769
      %v1773 = vld [vmem:[%s8] sm:$0x1]
      %v1775 = vlaneseq
      %v1776 = vshrl.u32 %v1775, 7
      %v1777 = vsub.s32 0, %v1776
      %v1778 = vrot.slane %v1773, %v1777
      %v1780 = vadd.f32 %v1771, %v1778
      %v1781 = vadd.f32 %v1772, %v1778
      %vm1782 = vcmask 261120
      %1783 = vst.msk [vmem:[#allocation6] sm:$0xff] %vm1782, 0.0
      %1784 = vst.msk [vmem:[#allocation6 + $0x8] sm:$0xff] %vm1782, 0.0
      %1785 = vst.msk [vmem:[#allocation6 + $0x10] sm:$0xff] %vm1782, 0.0
      %1786 = vst.msk [vmem:[#allocation6 + $0x18] sm:$0xff] %vm1782, 0.0
      %vm1787 = vcmask 257024
      %1788 = vst.msk [vmem:[#allocation6 + $0x20] sm:$0xf] %vm1787, 0.0
      %1789 = vst.msk [vmem:[#allocation6 + $0x7] sm:$0xf] %vm1787, %v1780
      %vm1790 = vcmask 261124
      %1791 = vst.msk [vmem:[#allocation6 + $0x9] sm:$0xf0] %vm1790, %v1780
      %1792 = vst.msk [vmem:[#allocation6 + $0x13] sm:$0xf] %vm1787, %v1781
      %1793 = vst.msk [vmem:[#allocation6 + $0x15] sm:$0xf0] %vm1790, %v1781
      %v1794 = vld [vmem:[#allocation6] ss:$2 sm:$0x3]
      %vm1795 = vcmask 254976
      %1796 = vst.msk [vmem:[#allocation7] sm:$0x3] %vm1795, %v1794
      %s1797 = scalar_lea.vmem [#allocation6], 12
      %v1798 = vld [vmem:[%s1797] ss:$2 sm:$0x3]
      %v1800 = vrot.slane %v1798, 6
      %vm1802 = vcmask 257026
      %1803 = vst.msk [vmem:[#allocation7] sm:$0xc] %vm1802, %v1800
      %s1804 = scalar_lea.vmem [#allocation6], 1
      %v1805 = vld [vmem:[%s1804] ss:$2 sm:$0x3]
      %1807 = vrot.lane.b32.xlu0 %v1805, 32
      %v1808 = vpop.permute.xlu0 %1807
      %vm1810 = vcmask 517376
      %1811 = vst.msk [vmem:[#allocation7] sm:$0x3] %vm1810, %v1808
      %s1812 = scalar_lea.vmem [#allocation6], 13
      %v1813 = vld [vmem:[%s1812] ss:$2 sm:$0x3]
      %v1815 = vrot.slane %v1813, 6
      %1816 = vrot.lane.b32.xlu0 %v1815, 32
      %v1817 = vpop.permute.xlu0 %1816
      %vm1819 = vcmask 519426
      %1820 = vst.msk [vmem:[#allocation7] sm:$0xc] %vm1819, %v1817
      %s1821 = scalar_lea.vmem [#allocation6], 2
      %v1822 = vld [vmem:[%s1821] ss:$2 sm:$0x3]
      %1824 = vrot.lane.b32.xlu0 %v1822, 64
      %v1825 = vpop.permute.xlu0 %1824
      %vm1827 = vcmask 779776
      %1828 = vst.msk [vmem:[#allocation7] sm:$0x3] %vm1827, %v1825
      %s1829 = scalar_lea.vmem [#allocation6], 14
      %v1830 = vld [vmem:[%s1829] ss:$2 sm:$0x3]
      %v1832 = vrot.slane %v1830, 6
      %1833 = vrot.lane.b32.xlu0 %v1832, 64
      %v1834 = vpop.permute.xlu0 %1833
      %vm1836 = vcmask 781826
      %1837 = vst.msk [vmem:[#allocation7] sm:$0xc] %vm1836, %v1834
      %s1838 = scalar_lea.vmem [#allocation6], 6
      %v1839 = vld [vmem:[%s1838] ss:$2 sm:$0x3]
      %1841 = vrot.lane.b32.xlu0 %v1839, 96
      %v1842 = vpop.permute.xlu0 %1841
      %vm1844 = vcmask 1042176
      %1845 = vst.msk [vmem:[#allocation7] sm:$0x3] %vm1844, %v1842
      %s1846 = scalar_lea.vmem [#allocation6], 18
      %v1847 = vld [vmem:[%s1846] ss:$2 sm:$0x3]
      %v1849 = vrot.slane %v1847, 6
      %1850 = vrot.lane.b32.xlu0 %v1849, 96
      %v1851 = vpop.permute.xlu0 %1850
      %vm1853 = vcmask 1044226
      %1854 = vst.msk [vmem:[#allocation7] sm:$0xc] %vm1853, %v1851
      %s1855 = scalar_lea.vmem [#allocation6], 7
      %v1856 = vld [vmem:[%s1855] ss:$2 sm:$0x3]
      %1857 = vst.msk [vmem:[#allocation7 + $0x4] sm:$0x3] %vm1795, %v1856
      %s1858 = scalar_lea.vmem [#allocation6], 19
      %v1859 = vld [vmem:[%s1858] ss:$2 sm:$0x3]
      %v1861 = vrot.slane %v1859, 6
      %1863 = vst.msk [vmem:[#allocation7 + $0x4] sm:$0xc] %vm1802, %v1861
      %s1864 = scalar_lea.vmem [#allocation6], 8
      %v1865 = vld [vmem:[%s1864] ss:$2 sm:$0x3]
      %1867 = vrot.lane.b32.xlu0 %v1865, 32
      %v1868 = vpop.permute.xlu0 %1867
      %1870 = vst.msk [vmem:[#allocation7 + $0x4] sm:$0x3] %vm1810, %v1868
      %s1871 = scalar_lea.vmem [#allocation6], 20
      %v1872 = vld [vmem:[%s1871] ss:$2 sm:$0x3]
      %v1874 = vrot.slane %v1872, 6
      %1875 = vrot.lane.b32.xlu0 %v1874, 32
      %v1876 = vpop.permute.xlu0 %1875
      %1878 = vst.msk [vmem:[#allocation7 + $0x4] sm:$0xc] %vm1819, %v1876
      %v1879 = vld [vmem:[%s1797] ss:$2 sm:$0x3]
      %1881 = vrot.lane.b32.xlu0 %v1879, 64
      %v1882 = vpop.permute.xlu0 %1881
      %1884 = vst.msk [vmem:[#allocation7 + $0x4] sm:$0x3] %vm1827, %v1882
      %s1885 = scalar_lea.vmem [#allocation6], 24
      %v1886 = vld [vmem:[%s1885] ss:$2 sm:$0x3]
      %v1888 = vrot.slane %v1886, 6
      %1889 = vrot.lane.b32.xlu0 %v1888, 64
      %v1890 = vpop.permute.xlu0 %1889
      %1892 = vst.msk [vmem:[#allocation7 + $0x4] sm:$0xc] %vm1836, %v1890
      %v1893 = vld [vmem:[%s1812] ss:$2 sm:$0x3]
      %1895 = vrot.lane.b32.xlu0 %v1893, 96
      %v1896 = vpop.permute.xlu0 %1895
      %1898 = vst.msk [vmem:[#allocation7 + $0x4] sm:$0x3] %vm1844, %v1896
      %s1899 = scalar_lea.vmem [#allocation6], 25
      %v1900 = vld [vmem:[%s1899] ss:$2 sm:$0x3]
      %v1902 = vrot.slane %v1900, 6
      %1903 = vrot.lane.b32.xlu0 %v1902, 96
      %v1904 = vpop.permute.xlu0 %1903
      %1906 = vst.msk [vmem:[#allocation7 + $0x4] sm:$0xc] %vm1853, %v1904
      %v1907 = vld [vmem:[%s1829] ss:$2 sm:$0x3]
      %1908 = vst.msk [vmem:[#allocation7 + $0x8] sm:$0x3] %vm1795, %v1907
      %s1909 = scalar_lea.vmem [#allocation6], 26
      %v1910 = vld [vmem:[%s1909] ss:$2 sm:$0x3]
      %v1912 = vrot.slane %v1910, 6
      %1914 = vst.msk [vmem:[#allocation7 + $0x8] sm:$0xc] %vm1802, %v1912
      %v1915 = vld [vmem:[#allocation7] sm:$0xff]
      %v1916 = vld [vmem:[#allocation7 + $0x8] sm:$0xf]
      %v1917 = vld [vmem:[%s9] sm:$0xff]
      %v1918 = vld [vmem:[%s9 + $0x8] sm:$0xff]
      %v1919 = vld [vmem:[%s9 + $0x10] sm:$0xff]
      %v1920 = vld [vmem:[%s9 + $0x18] sm:$0xff]
      %v1921 = vld [vmem:[%s9 + $0x20] sm:$0xff]
      %v1922 = vld [vmem:[%s9 + $0x28] sm:$0xff]
      %v1923 = vld [vmem:[%s9 + $0x30] sm:$0xff]
      %v1924 = vld [vmem:[%s9 + $0x38] sm:$0xff]
      %v1925 = vld [vmem:[%s9 + $0x40] sm:$0xff]
      %v1926 = vld [vmem:[%s9 + $0x48] sm:$0xff]
      %v1927 = vld [vmem:[%s9 + $0x50] sm:$0xff]
      %v1928 = vld [vmem:[%s9 + $0x58] sm:$0xff]
      %v1929 = vld [vmem:[%s9 + $0x60] sm:$0xff]
      %v1930 = vld [vmem:[%s9 + $0x68] sm:$0xff]
      %v1931 = vld [vmem:[%s9 + $0x70] sm:$0xff]
      %v1932 = vld [vmem:[%s9 + $0x78] sm:$0xff]
      %v1933 = vld [vmem:[%s9 + $0x80] sm:$0xff]
      %v1934 = vld [vmem:[%s9 + $0x88] sm:$0xff]
      %v1935 = vld [vmem:[%s9 + $0x90] sm:$0xff]
      %v1936 = vld [vmem:[%s9 + $0x98] sm:$0xff]
      %v1937 = vld [vmem:[%s9 + $0xa0] sm:$0xff]
      %v1938 = vld [vmem:[%s9 + $0xa8] sm:$0xff]
      %v1939 = vld [vmem:[%s9 + $0xb0] sm:$0xff]
      %v1940 = vld [vmem:[%s9 + $0xb8] sm:$0xff]
      %v1941 = vld [vmem:[%s9 + $0xc0] sm:$0xff]
      %v1942 = vld [vmem:[%s9 + $0xc8] sm:$0xff]
      %v1943 = vld [vmem:[%s9 + $0xd0] sm:$0xff]
      %v1944 = vld [vmem:[%s9 + $0xd8] sm:$0xff]
      %v1945 = vld [vmem:[%s9 + $0xe0] sm:$0xff]
      %v1946 = vld [vmem:[%s9 + $0xe8] sm:$0xff]
      %v1947 = vld [vmem:[%s9 + $0xf0] sm:$0xff]
      %v1948 = vld [vmem:[%s9 + $0xf8] sm:$0xff]
      %v1949 = vld [vmem:[%s9 + $0x100] sm:$0xff]
      %v1950 = vld [vmem:[%s9 + $0x108] sm:$0xff]
      %v1951 = vld [vmem:[%s9 + $0x110] sm:$0xff]
      %v1952 = vld [vmem:[%s9 + $0x118] sm:$0xff]
      %v1953 = vld [vmem:[%s10] sm:$0x1]
      %v1955 = vlaneseq
      %v1956 = vshrl.u32 %v1955, 7
      %v1957 = vsub.s32 0, %v1956
      %v1958 = vrot.slane %v1953, %v1957
      %v1962 = vcombine.high %v1915, %v1915
      %v1964 = vsel %vm1782, %v1916, 0
      %1966 = vmatprep.subr.mxu0 0.0
      %1967 = vmatpush1.msra.mxu0 %v1932
      %1968 = vmatprep.subr.mxu0 0.0
      %1969 = vmatpush1.msra.mxu0 %v1931
      %1970 = vmatprep.subr.mxu0 0.0
      %1971 = vmatpush1.msra.mxu0 %v1930
      %1972 = vmatprep.subr.mxu0 0.0
      %1973 = vmatpush1.msra.mxu0 %v1929
      %1974 = vmatprep.subr.mxu0 0.0
      %1975 = vmatpush1.msra.mxu0 %v1928
      %1976 = vmatprep.subr.mxu0 0.0
      %1977 = vmatpush1.msra.mxu0 %v1927
      %1978 = vmatprep.subr.mxu0 0.0
      %1979 = vmatpush1.msra.mxu0 %v1926
      %1980 = vmatprep.subr.mxu0 0.0
      %1981 = vmatpush1.msra.mxu0 %v1925
      %1982 = vmatprep.subr.mxu0 0.0
      %1983 = vmatpush1.msra.mxu0 %v1924
      %1984 = vmatprep.subr.mxu0 0.0
      %1985 = vmatpush1.msra.mxu0 %v1923
      %1986 = vmatprep.subr.mxu0 0.0
      %1987 = vmatpush1.msra.mxu0 %v1922
      %1988 = vmatprep.subr.mxu0 0.0
      %1989 = vmatpush1.msra.mxu0 %v1921
      %1990 = vmatprep.subr.mxu0 0.0
      %1991 = vmatpush1.msra.mxu0 %v1920
      %1992 = vmatprep.subr.mxu0 0.0
      %1993 = vmatpush1.msra.mxu0 %v1919
      %1994 = vmatprep.subr.mxu0 0.0
      %1995 = vmatpush1.msra.mxu0 %v1918
      %1996 = vmatprep.subr.mxu0 0.0
      %1997 = vmatpush1.msra.mxu0 %v1917
      %1998 = vmatprep.subr.mxu0 0.0
      %1999 = vmatpush2.msra.mxu0 %v1948
      %2000 = vmatprep.subr.mxu0 0.0
      %2001 = vmatpush2.msra.mxu0 %v1947
      %2002 = vmatprep.subr.mxu0 0.0
      %2003 = vmatpush2.msra.mxu0 %v1946
      %2004 = vmatprep.subr.mxu0 0.0
      %2005 = vmatpush2.msra.mxu0 %v1945
      %2006 = vmatprep.subr.mxu0 0.0
      %2007 = vmatpush2.msra.mxu0 %v1944
      %2008 = vmatprep.subr.mxu0 0.0
      %2009 = vmatpush2.msra.mxu0 %v1943
      %2010 = vmatprep.subr.mxu0 0.0
      %2011 = vmatpush2.msra.mxu0 %v1942
      %2012 = vmatprep.subr.mxu0 0.0
      %2013 = vmatpush2.msra.mxu0 %v1941
      %2014 = vmatprep.subr.mxu0 0.0
      %2015 = vmatpush2.msra.mxu0 %v1940
      %2016 = vmatprep.subr.mxu0 0.0
      %2017 = vmatpush2.msra.mxu0 %v1939
      %2018 = vmatprep.subr.mxu0 0.0
      %2019 = vmatpush2.msra.mxu0 %v1938
      %2020 = vmatprep.subr.mxu0 0.0
      %2021 = vmatpush2.msra.mxu0 %v1937
      %2022 = vmatprep.subr.mxu0 0.0
      %2023 = vmatpush2.msra.mxu0 %v1936
      %2024 = vmatprep.subr.mxu0 0.0
      %2025 = vmatpush2.msra.mxu0 %v1935
      %2026 = vmatprep.subr.mxu0 0.0
      %2027 = vmatpush2.msra.mxu0 %v1934
      %2028 = vmatprep.subr.mxu0 0.0
      %2029 = vmatpush2.msra.mxu0 %v1933
      %2030 = vmatprep.mubr.f32.mxu0 %v1962
      %2031 = vmatmul.mubr.f32.gmra.mxu0 %v1915
      %v2032 = vpop.f32.mrf.mxu0
      %v2033 = vadd.f32 %v1958, %v2032
      %v2034 = vpop.f32.mrf.mxu0
      %2035 = vdwg.mxu0
      %2036 = vmatprep.subr.mxu0 0.0
      %2037 = vmatpush1.msra.mxu0 0.0
      %2038 = vmatprep.subr.mxu0 0.0
      %2039 = vmatpush1.msra.mxu0 0.0
      %2040 = vmatprep.subr.mxu0 0.0
      %2041 = vmatpush1.msra.mxu0 0.0
      %2042 = vmatprep.subr.mxu0 0.0
      %2043 = vmatpush1.msra.mxu0 0.0
      %2044 = vmatprep.subr.mxu0 0.0
      %2045 = vmatpush1.msra.mxu0 0.0
      %2046 = vmatprep.subr.mxu0 0.0
      %2047 = vmatpush1.msra.mxu0 0.0
      %2048 = vmatprep.subr.mxu0 0.0
      %2049 = vmatpush1.msra.mxu0 0.0
      %2050 = vmatprep.subr.mxu0 0.0
      %2051 = vmatpush1.msra.mxu0 0.0
      %2052 = vmatprep.subr.mxu0 0.0
      %2053 = vmatpush1.msra.mxu0 0.0
      %2054 = vmatprep.subr.mxu0 0.0
      %2055 = vmatpush1.msra.mxu0 0.0
      %2056 = vmatprep.subr.mxu0 0.0
      %2057 = vmatpush1.msra.mxu0 0.0
      %2058 = vmatprep.subr.mxu0 0.0
      %2059 = vmatpush1.msra.mxu0 0.0
      %2060 = vmatprep.subr.mxu0 0.0
      %2061 = vmatpush1.msra.mxu0 %v1952
      %2062 = vmatprep.subr.mxu0 0.0
      %2063 = vmatpush1.msra.mxu0 %v1951
      %2064 = vmatprep.subr.mxu0 0.0
      %2065 = vmatpush1.msra.mxu0 %v1950
      %2066 = vmatprep.subr.mxu0 0.0
      %2067 = vmatpush1.msra.mxu0 %v1949
      %2068 = vmatprep.subr.mxu0 0.0
      %2069 = vmatpush2.msra.mxu0 0.0
      %2070 = vmatprep.subr.mxu0 0.0
      %2071 = vmatpush2.msra.mxu0 0.0
      %2072 = vmatprep.subr.mxu0 0.0
      %2073 = vmatpush2.msra.mxu0 0.0
      %2074 = vmatprep.subr.mxu0 0.0
      %2075 = vmatpush2.msra.mxu0 0.0
      %2076 = vmatprep.subr.mxu0 0.0
      %2077 = vmatpush2.msra.mxu0 0.0
      %2078 = vmatprep.subr.mxu0 0.0
      %2079 = vmatpush2.msra.mxu0 0.0
      %2080 = vmatprep.subr.mxu0 0.0
      %2081 = vmatpush2.msra.mxu0 0.0
      %2082 = vmatprep.subr.mxu0 0.0
      %2083 = vmatpush2.msra.mxu0 0.0
      %2084 = vmatprep.subr.mxu0 0.0
      %2085 = vmatpush2.msra.mxu0 0.0
      %2086 = vmatprep.subr.mxu0 0.0
      %2087 = vmatpush2.msra.mxu0 0.0
      %2088 = vmatprep.subr.mxu0 0.0
      %2089 = vmatpush2.msra.mxu0 0.0
      %2090 = vmatprep.subr.mxu0 0.0
      %2091 = vmatpush2.msra.mxu0 0.0
      %2092 = vmatprep.subr.mxu0 0.0
      %2093 = vmatpush2.msra.mxu0 0.0
      %2094 = vmatprep.subr.mxu0 0.0
      %2095 = vmatpush2.msra.mxu0 0.0
      %2096 = vmatprep.subr.mxu0 0.0
      %2097 = vmatpush2.msra.mxu0 0.0
      %2098 = vmatprep.subr.mxu0 0.0
      %2099 = vmatpush2.msra.mxu0 0.0
      %2100 = vmatprep.mubr.f32.mxu0 0.0
      %2101 = vmatmul.mubr.f32.gmra.mxu0 %v1964
      %v2102 = vpop.f32.mrf.mxu0
      %v2103 = vadd.f32 %v2033, %v2102
      %v2104 = vpop.f32.mrf.mxu0
      %2105 = vdwg.mxu0
      %vm2106 = vcmp.ge.f32.partialorder %v2103, 0.0
      %v2107 = vmul.f32 %v2103, 0.2
      %v2108 = vsel %vm2106, %v2103, %v2107
      %v2109 = vld [vmem:[%s11] sm:$0x1]
      %v2111 = vlaneseq
      %v2112 = vshrl.u32 %v2111, 7
      %v2113 = vsub.s32 0, %v2112
      %v2114 = vrot.slane %v2109, %v2113
      %v2116 = vmul.f32 %v2108, %v2114
      %v2117 = vld [vmem:[%s12] sm:$0x1]
      %v2119 = vlaneseq
      %v2120 = vshrl.u32 %v2119, 7
      %v2121 = vsub.s32 0, %v2120
      %v2122 = vrot.slane %v2117, %v2121
      %v2124 = vadd.f32 %v2116, %v2122
      %vm2125 = vcmask 523264
      %2126 = vst.msk [vmem:[#allocation8] sm:$0xff] %vm2125, 0.0
      %2127 = vst.msk [vmem:[#allocation8 + $0x8] sm:$0xff] %vm2125, 0.0
      %vm2128 = vcmask 517120
      %2129 = vst.msk [vmem:[#allocation8 + $0x5] sm:$0x3] %vm2128, %v2124
      %vm2130 = vcmask 519170
      %2131 = vst.msk [vmem:[#allocation8 + $0x7] sm:$0xc] %vm2130, %v2124
      %v2132 = vld [vmem:[#allocation8] sm:$0x1]
      %v2133 = vlaneseq
      %vm2134 = vcmp.ge.s32.totalorder %v2133, 0
      %vm2135 = vcmp.lt.s32.totalorder %v2133, 64
      %vm2136 = vmand %vm2134, %vm2135
      %2137 = vst.msk [vmem:[#allocation9] sm:$0x1] %vm2136, %v2132
      %v2138 = vld [vmem:[#allocation8 + $0x1] sm:$0x1]
      %v2141 = vunpack.c.l.s4 1966171168
      %v2142 = vunpack.c.0.s8 %v2141
      %v2143 = vlaneseq
      %v2144 = vshrl.u32 %v2143, 7
      %v2145 = vsub.s32 %v2142, %v2144
      %v2146 = vrot.slane %v2138, %v2145
      %v2148 = vunpack.c.l.s4 1966171168
      %v2149 = vunpack.c.0.s8 %v2148
      %v2150 = vlaneseq
      %v2151 = vshrl.u32 %v2150, 7
      %v2152 = vsub.s32 %v2149, %v2151
      %v2153 = vrot.slane %v2146, %v2152
      %2154 = vrot.lane.b32.xlu0 %v2153, 64
      %v2155 = vpop.permute.xlu0 %2154
      %vm2157 = vcmp.ge.s32.totalorder %v2133, 64
      %vm2158 = vcmp.lt.s32.totalorder %v2133, 128
      %vm2159 = vmand %vm2157, %vm2158
      %2160 = vst.msk [vmem:[#allocation9] sm:$0x1] %vm2159, %v2155
      %v2161 = vld [vmem:[#allocation8 + $0x2] sm:$0x1]
      %2162 = vst.msk [vmem:[#allocation9 + $0x1] sm:$0x1] %vm2136, %v2161
      %v2163 = vld [vmem:[#allocation8 + $0x4] sm:$0x1]
      %v2166 = vunpack.c.l.s4 1966171168
      %v2167 = vunpack.c.0.s8 %v2166
      %v2168 = vlaneseq
      %v2169 = vshrl.u32 %v2168, 7
      %v2170 = vsub.s32 %v2167, %v2169
      %v2171 = vrot.slane %v2163, %v2170
      %v2173 = vunpack.c.l.s4 1966171168
      %v2174 = vunpack.c.0.s8 %v2173
      %v2175 = vlaneseq
      %v2176 = vshrl.u32 %v2175, 7
      %v2177 = vsub.s32 %v2174, %v2176
      %v2178 = vrot.slane %v2171, %v2177
      %2179 = vrot.lane.b32.xlu0 %v2178, 64
      %v2180 = vpop.permute.xlu0 %2179
      %2182 = vst.msk [vmem:[#allocation9 + $0x1] sm:$0x1] %vm2159, %v2180
      %v2183 = vld [vmem:[#allocation8 + $0x5] sm:$0x1]
      %2184 = vst.msk [vmem:[#allocation9 + $0x2] sm:$0x1] %vm2136, %v2183
      %v2185 = vld [vmem:[#allocation8 + $0x6] sm:$0x1]
      %v2188 = vunpack.c.l.s4 1966171168
      %v2189 = vunpack.c.0.s8 %v2188
      %v2190 = vlaneseq
      %v2191 = vshrl.u32 %v2190, 7
      %v2192 = vsub.s32 %v2189, %v2191
      %v2193 = vrot.slane %v2185, %v2192
      %v2195 = vunpack.c.l.s4 1966171168
      %v2196 = vunpack.c.0.s8 %v2195
      %v2197 = vlaneseq
      %v2198 = vshrl.u32 %v2197, 7
      %v2199 = vsub.s32 %v2196, %v2198
      %v2200 = vrot.slane %v2193, %v2199
      %2201 = vrot.lane.b32.xlu0 %v2200, 64
      %v2202 = vpop.permute.xlu0 %2201
      %2204 = vst.msk [vmem:[#allocation9 + $0x2] sm:$0x1] %vm2159, %v2202
      %v2205 = vld [vmem:[#allocation8 + $0x8] sm:$0x1]
      %2206 = vst.msk [vmem:[#allocation9 + $0x3] sm:$0x1] %vm2136, %v2205
      %v2207 = vld [vmem:[#allocation8 + $0x9] sm:$0x1]
      %v2210 = vunpack.c.l.s4 1966171168
      %v2211 = vunpack.c.0.s8 %v2210
      %v2212 = vlaneseq
      %v2213 = vshrl.u32 %v2212, 7
      %v2214 = vsub.s32 %v2211, %v2213
      %v2215 = vrot.slane %v2207, %v2214
      %v2217 = vunpack.c.l.s4 1966171168
      %v2218 = vunpack.c.0.s8 %v2217
      %v2219 = vlaneseq
      %v2220 = vshrl.u32 %v2219, 7
      %v2221 = vsub.s32 %v2218, %v2220
      %v2222 = vrot.slane %v2215, %v2221
      %2223 = vrot.lane.b32.xlu0 %v2222, 64
      %v2224 = vpop.permute.xlu0 %2223
      %2226 = vst.msk [vmem:[#allocation9 + $0x3] sm:$0x1] %vm2159, %v2224
      %v2227 = vld [vmem:[#allocation8 + $0xa] sm:$0x1]
      %2228 = vst.msk [vmem:[#allocation9 + $0x4] sm:$0x1] %vm2136, %v2227
      %v2229 = vld [vmem:[#allocation9] sm:$0x1f]
      %v2230 = vld [vmem:[%s13] sm:$0xff]
      %v2231 = vld [vmem:[%s13 + $0x8] sm:$0xff]
      %v2232 = vld [vmem:[%s13 + $0x10] sm:$0xff]
      %v2233 = vld [vmem:[%s13 + $0x18] sm:$0xff]
      %v2234 = vld [vmem:[%s13 + $0x20] sm:$0xff]
      %v2235 = vld [vmem:[%s13 + $0x28] sm:$0xff]
      %v2236 = vld [vmem:[%s13 + $0x30] sm:$0xff]
      %v2237 = vld [vmem:[%s13 + $0x38] sm:$0xff]
      %v2238 = vld [vmem:[%s13 + $0x40] sm:$0xff]
      %v2239 = vld [vmem:[%s13 + $0x48] sm:$0xff]
      %v2240 = vld [vmem:[%s13 + $0x50] sm:$0xff]
      %v2241 = vld [vmem:[%s13 + $0x58] sm:$0xff]
      %v2242 = vld [vmem:[%s13 + $0x60] sm:$0xff]
      %v2243 = vld [vmem:[%s13 + $0x68] sm:$0xff]
      %v2244 = vld [vmem:[%s13 + $0x70] sm:$0xff]
      %v2245 = vld [vmem:[%s13 + $0x78] sm:$0xff]
      %v2246 = vld [vmem:[%s13 + $0x80] sm:$0xff]
      %v2247 = vld [vmem:[%s13 + $0x88] sm:$0xff]
      %v2248 = vld [vmem:[%s13 + $0x90] sm:$0xff]
      %v2249 = vld [vmem:[%s13 + $0x98] sm:$0xff]
      %v2250 = vld [vmem:[%s13 + $0xa0] sm:$0xff]
      %v2251 = vld [vmem:[%s13 + $0xa8] sm:$0xff]
      %v2252 = vld [vmem:[%s13 + $0xb0] sm:$0xff]
      %v2253 = vld [vmem:[%s13 + $0xb8] sm:$0xff]
      %v2254 = vld [vmem:[%s13 + $0xc0] sm:$0xff]
      %v2255 = vld [vmem:[%s13 + $0xc8] sm:$0xff]
      %v2256 = vld [vmem:[%s13 + $0xd0] sm:$0xff]
      %v2257 = vld [vmem:[%s13 + $0xd8] sm:$0xff]
      %v2258 = vld [vmem:[%s13 + $0xe0] sm:$0xff]
      %v2259 = vld [vmem:[%s13 + $0xe8] sm:$0xff]
      %v2260 = vld [vmem:[%s13 + $0xf0] sm:$0xff]
      %v2261 = vld [vmem:[%s13 + $0xf8] sm:$0xff]
      %v2262 = vld [vmem:[%s13 + $0x100] sm:$0xff]
      %v2263 = vld [vmem:[%s13 + $0x108] sm:$0xff]
      %v2264 = vld [vmem:[%s13 + $0x110] sm:$0xff]
      %v2265 = vld [vmem:[%s13 + $0x118] sm:$0xff]
      %v2266 = vld [vmem:[%s13 + $0x120] sm:$0xff]
      %v2267 = vld [vmem:[%s13 + $0x128] sm:$0xff]
      %v2268 = vld [vmem:[%s13 + $0x130] sm:$0xff]
      %v2269 = vld [vmem:[%s13 + $0x138] sm:$0xff]
      %v2270 = vld [vmem:[%s13 + $0x140] sm:$0xff]
      %v2271 = vld [vmem:[%s13 + $0x148] sm:$0xff]
      %v2272 = vld [vmem:[%s13 + $0x150] sm:$0xff]
      %v2273 = vld [vmem:[%s13 + $0x158] sm:$0xff]
      %v2274 = vld [vmem:[%s13 + $0x160] sm:$0xff]
      %v2275 = vld [vmem:[%s13 + $0x168] sm:$0xff]
      %v2276 = vld [vmem:[%s13 + $0x170] sm:$0xff]
      %v2277 = vld [vmem:[%s13 + $0x178] sm:$0xff]
      %v2278 = vld [vmem:[%s13 + $0x180] sm:$0xff]
      %v2279 = vld [vmem:[%s13 + $0x188] sm:$0xff]
      %v2280 = vld [vmem:[%s13 + $0x190] sm:$0xff]
      %v2281 = vld [vmem:[%s13 + $0x198] sm:$0xff]
      %v2282 = vld [vmem:[%s13 + $0x1a0] sm:$0xff]
      %v2283 = vld [vmem:[%s13 + $0x1a8] sm:$0xff]
      %v2284 = vld [vmem:[%s13 + $0x1b0] sm:$0xff]
      %v2285 = vld [vmem:[%s13 + $0x1b8] sm:$0xff]
      %v2286 = vld [vmem:[%s13 + $0x1c0] sm:$0xff]
      %v2287 = vld [vmem:[%s13 + $0x1c8] sm:$0xff]
      %v2288 = vld [vmem:[%s13 + $0x1d0] sm:$0xff]
      %v2289 = vld [vmem:[%s13 + $0x1d8] sm:$0xff]
      %v2290 = vld [vmem:[%s13 + $0x1e0] sm:$0xff]
      %v2291 = vld [vmem:[%s13 + $0x1e8] sm:$0xff]
      %v2292 = vld [vmem:[%s13 + $0x1f0] sm:$0xff]
      %v2293 = vld [vmem:[%s13 + $0x1f8] sm:$0xff]
      %v2294 = vld [vmem:[%s13 + $0x200] sm:$0xff]
      %v2295 = vld [vmem:[%s13 + $0x208] sm:$0xff]
      %v2296 = vld [vmem:[%s13 + $0x210] sm:$0xff]
      %v2297 = vld [vmem:[%s13 + $0x218] sm:$0xff]
      %v2298 = vld [vmem:[%s13 + $0x220] sm:$0xff]
      %v2299 = vld [vmem:[%s13 + $0x228] sm:$0xff]
      %v2300 = vld [vmem:[%s13 + $0x230] sm:$0xff]
      %v2301 = vld [vmem:[%s13 + $0x238] sm:$0xff]
      %v2302 = vld [vmem:[%s14] sm:$0x1]
      %v2304 = vlaneseq
      %v2305 = vshrl.u32 %v2304, 7
      %v2306 = vsub.s32 0, %v2305
      %v2307 = vrot.slane %v2229, %v2306
      %v2308 = vlaneseq
      %v2309 = vshrl.u32 %v2308, 7
      %v2310 = vsub.s32 1, %v2309
      %v2311 = vrot.slane %v2229, %v2310
      %v2312 = vlaneseq
      %v2313 = vshrl.u32 %v2312, 7
      %v2314 = vsub.s32 2, %v2313
      %v2315 = vrot.slane %v2229, %v2314
      %v2316 = vlaneseq
      %v2317 = vshrl.u32 %v2316, 7
      %v2318 = vsub.s32 3, %v2317
      %v2319 = vrot.slane %v2229, %v2318
      %v2320 = vlaneseq
      %v2321 = vshrl.u32 %v2320, 7
      %v2322 = vsub.s32 4, %v2321
      %v2323 = vrot.slane %v2229, %v2322
      %v2328 = vsel %vm2125, %v2323, 0
      %2330 = vmatprep.subr.mxu0 0.0
      %2331 = vmatpush1.msra.mxu0 %v2245
      %2332 = vmatprep.subr.mxu0 0.0
      %2333 = vmatpush1.msra.mxu0 %v2244
      %2334 = vmatprep.subr.mxu0 0.0
      %2335 = vmatpush1.msra.mxu0 %v2243
      %2336 = vmatprep.subr.mxu0 0.0
      %2337 = vmatpush1.msra.mxu0 %v2242
      %2338 = vmatprep.subr.mxu0 0.0
      %2339 = vmatpush1.msra.mxu0 %v2241
      %2340 = vmatprep.subr.mxu0 0.0
      %2341 = vmatpush1.msra.mxu0 %v2240
      %2342 = vmatprep.subr.mxu0 0.0
      %2343 = vmatpush1.msra.mxu0 %v2239
      %2344 = vmatprep.subr.mxu0 0.0
      %2345 = vmatpush1.msra.mxu0 %v2238
      %2346 = vmatprep.subr.mxu0 0.0
      %2347 = vmatpush1.msra.mxu0 %v2237
      %2348 = vmatprep.subr.mxu0 0.0
      %2349 = vmatpush1.msra.mxu0 %v2236
      %2350 = vmatprep.subr.mxu0 0.0
      %2351 = vmatpush1.msra.mxu0 %v2235
      %2352 = vmatprep.subr.mxu0 0.0
      %2353 = vmatpush1.msra.mxu0 %v2234
      %2354 = vmatprep.subr.mxu0 0.0
      %2355 = vmatpush1.msra.mxu0 %v2233
      %2356 = vmatprep.subr.mxu0 0.0
      %2357 = vmatpush1.msra.mxu0 %v2232
      %2358 = vmatprep.subr.mxu0 0.0
      %2359 = vmatpush1.msra.mxu0 %v2231
      %2360 = vmatprep.subr.mxu0 0.0
      %2361 = vmatpush1.msra.mxu0 %v2230
      %2362 = vmatprep.subr.mxu0 0.0
      %2363 = vmatpush2.msra.mxu0 %v2261
      %2364 = vmatprep.subr.mxu0 0.0
      %2365 = vmatpush2.msra.mxu0 %v2260
      %2366 = vmatprep.subr.mxu0 0.0
      %2367 = vmatpush2.msra.mxu0 %v2259
      %2368 = vmatprep.subr.mxu0 0.0
      %2369 = vmatpush2.msra.mxu0 %v2258
      %2370 = vmatprep.subr.mxu0 0.0
      %2371 = vmatpush2.msra.mxu0 %v2257
      %2372 = vmatprep.subr.mxu0 0.0
      %2373 = vmatpush2.msra.mxu0 %v2256
      %2374 = vmatprep.subr.mxu0 0.0
      %2375 = vmatpush2.msra.mxu0 %v2255
      %2376 = vmatprep.subr.mxu0 0.0
      %2377 = vmatpush2.msra.mxu0 %v2254
      %2378 = vmatprep.subr.mxu0 0.0
      %2379 = vmatpush2.msra.mxu0 %v2253
      %2380 = vmatprep.subr.mxu0 0.0
      %2381 = vmatpush2.msra.mxu0 %v2252
      %2382 = vmatprep.subr.mxu0 0.0
      %2383 = vmatpush2.msra.mxu0 %v2251
      %2384 = vmatprep.subr.mxu0 0.0
      %2385 = vmatpush2.msra.mxu0 %v2250
      %2386 = vmatprep.subr.mxu0 0.0
      %2387 = vmatpush2.msra.mxu0 %v2249
      %2388 = vmatprep.subr.mxu0 0.0
      %2389 = vmatpush2.msra.mxu0 %v2248
      %2390 = vmatprep.subr.mxu0 0.0
      %2391 = vmatpush2.msra.mxu0 %v2247
      %2392 = vmatprep.subr.mxu0 0.0
      %2393 = vmatpush2.msra.mxu0 %v2246
      %2394 = vmatprep.mubr.f32.mxu0 %v2311
      %2395 = vmatmul.mubr.f32.gmra.mxu0 %v2307
      %v2396 = vpop.f32.mrf.mxu0
      %v2397 = vadd.f32 %v2302, %v2396
      %v2398 = vpop.f32.mrf.mxu0
      %2399 = vdwg.mxu0
      %2400 = vmatprep.subr.mxu0 0.0
      %2401 = vmatpush1.msra.mxu0 %v2277
      %2402 = vmatprep.subr.mxu0 0.0
      %2403 = vmatpush1.msra.mxu0 %v2276
      %2404 = vmatprep.subr.mxu0 0.0
      %2405 = vmatpush1.msra.mxu0 %v2275
      %2406 = vmatprep.subr.mxu0 0.0
      %2407 = vmatpush1.msra.mxu0 %v2274
      %2408 = vmatprep.subr.mxu0 0.0
      %2409 = vmatpush1.msra.mxu0 %v2273
      %2410 = vmatprep.subr.mxu0 0.0
      %2411 = vmatpush1.msra.mxu0 %v2272
      %2412 = vmatprep.subr.mxu0 0.0
      %2413 = vmatpush1.msra.mxu0 %v2271
      %2414 = vmatprep.subr.mxu0 0.0
      %2415 = vmatpush1.msra.mxu0 %v2270
      %2416 = vmatprep.subr.mxu0 0.0
      %2417 = vmatpush1.msra.mxu0 %v2269
      %2418 = vmatprep.subr.mxu0 0.0
      %2419 = vmatpush1.msra.mxu0 %v2268
      %2420 = vmatprep.subr.mxu0 0.0
      %2421 = vmatpush1.msra.mxu0 %v2267
      %2422 = vmatprep.subr.mxu0 0.0
      %2423 = vmatpush1.msra.mxu0 %v2266
      %2424 = vmatprep.subr.mxu0 0.0
      %2425 = vmatpush1.msra.mxu0 %v2265
      %2426 = vmatprep.subr.mxu0 0.0
      %2427 = vmatpush1.msra.mxu0 %v2264
      %2428 = vmatprep.subr.mxu0 0.0
      %2429 = vmatpush1.msra.mxu0 %v2263
      %2430 = vmatprep.subr.mxu0 0.0
      %2431 = vmatpush1.msra.mxu0 %v2262
      %2432 = vmatprep.subr.mxu0 0.0
      %2433 = vmatpush2.msra.mxu0 %v2293
      %2434 = vmatprep.subr.mxu0 0.0
      %2435 = vmatpush2.msra.mxu0 %v2292
      %2436 = vmatprep.subr.mxu0 0.0
      %2437 = vmatpush2.msra.mxu0 %v2291
      %2438 = vmatprep.subr.mxu0 0.0
      %2439 = vmatpush2.msra.mxu0 %v2290
      %2440 = vmatprep.subr.mxu0 0.0
      %2441 = vmatpush2.msra.mxu0 %v2289
      %2442 = vmatprep.subr.mxu0 0.0
      %2443 = vmatpush2.msra.mxu0 %v2288
      %2444 = vmatprep.subr.mxu0 0.0
      %2445 = vmatpush2.msra.mxu0 %v2287
      %2446 = vmatprep.subr.mxu0 0.0
      %2447 = vmatpush2.msra.mxu0 %v2286
      %2448 = vmatprep.subr.mxu0 0.0
      %2449 = vmatpush2.msra.mxu0 %v2285
      %2450 = vmatprep.subr.mxu0 0.0
      %2451 = vmatpush2.msra.mxu0 %v2284
      %2452 = vmatprep.subr.mxu0 0.0
      %2453 = vmatpush2.msra.mxu0 %v2283
      %2454 = vmatprep.subr.mxu0 0.0
      %2455 = vmatpush2.msra.mxu0 %v2282
      %2456 = vmatprep.subr.mxu0 0.0
      %2457 = vmatpush2.msra.mxu0 %v2281
      %2458 = vmatprep.subr.mxu0 0.0
      %2459 = vmatpush2.msra.mxu0 %v2280
      %2460 = vmatprep.subr.mxu0 0.0
      %2461 = vmatpush2.msra.mxu0 %v2279
      %2462 = vmatprep.subr.mxu0 0.0
      %2463 = vmatpush2.msra.mxu0 %v2278
      %2464 = vmatprep.mubr.f32.mxu0 %v2319
      %2465 = vmatmul.mubr.f32.gmra.mxu0 %v2315
      %v2466 = vpop.f32.mrf.mxu0
      %v2467 = vadd.f32 %v2397, %v2466
      %v2468 = vpop.f32.mrf.mxu0
      %2469 = vdwg.mxu0
      %2470 = vmatprep.subr.mxu0 0.0
      %2471 = vmatpush1.msra.mxu0 0.0
      %2472 = vmatprep.subr.mxu0 0.0
      %2473 = vmatpush1.msra.mxu0 0.0
      %2474 = vmatprep.subr.mxu0 0.0
      %2475 = vmatpush1.msra.mxu0 0.0
      %2476 = vmatprep.subr.mxu0 0.0
      %2477 = vmatpush1.msra.mxu0 0.0
      %2478 = vmatprep.subr.mxu0 0.0
      %2479 = vmatpush1.msra.mxu0 0.0
      %2480 = vmatprep.subr.mxu0 0.0
      %2481 = vmatpush1.msra.mxu0 0.0
      %2482 = vmatprep.subr.mxu0 0.0
      %2483 = vmatpush1.msra.mxu0 0.0
      %2484 = vmatprep.subr.mxu0 0.0
      %2485 = vmatpush1.msra.mxu0 0.0
      %2486 = vmatprep.subr.mxu0 0.0
      %2487 = vmatpush1.msra.mxu0 %v2301
      %2488 = vmatprep.subr.mxu0 0.0
      %2489 = vmatpush1.msra.mxu0 %v2300
      %2490 = vmatprep.subr.mxu0 0.0
      %2491 = vmatpush1.msra.mxu0 %v2299
      %2492 = vmatprep.subr.mxu0 0.0
      %2493 = vmatpush1.msra.mxu0 %v2298
      %2494 = vmatprep.subr.mxu0 0.0
      %2495 = vmatpush1.msra.mxu0 %v2297
      %2496 = vmatprep.subr.mxu0 0.0
      %2497 = vmatpush1.msra.mxu0 %v2296
      %2498 = vmatprep.subr.mxu0 0.0
      %2499 = vmatpush1.msra.mxu0 %v2295
      %2500 = vmatprep.subr.mxu0 0.0
      %2501 = vmatpush1.msra.mxu0 %v2294
      %2502 = vmatprep.subr.mxu0 0.0
      %2503 = vmatpush2.msra.mxu0 0.0
      %2504 = vmatprep.subr.mxu0 0.0
      %2505 = vmatpush2.msra.mxu0 0.0
      %2506 = vmatprep.subr.mxu0 0.0
      %2507 = vmatpush2.msra.mxu0 0.0
      %2508 = vmatprep.subr.mxu0 0.0
      %2509 = vmatpush2.msra.mxu0 0.0
      %2510 = vmatprep.subr.mxu0 0.0
      %2511 = vmatpush2.msra.mxu0 0.0
      %2512 = vmatprep.subr.mxu0 0.0
      %2513 = vmatpush2.msra.mxu0 0.0
      %2514 = vmatprep.subr.mxu0 0.0
      %2515 = vmatpush2.msra.mxu0 0.0
      %2516 = vmatprep.subr.mxu0 0.0
      %2517 = vmatpush2.msra.mxu0 0.0
      %2518 = vmatprep.subr.mxu0 0.0
      %2519 = vmatpush2.msra.mxu0 0.0
      %2520 = vmatprep.subr.mxu0 0.0
      %2521 = vmatpush2.msra.mxu0 0.0
      %2522 = vmatprep.subr.mxu0 0.0
      %2523 = vmatpush2.msra.mxu0 0.0
      %2524 = vmatprep.subr.mxu0 0.0
      %2525 = vmatpush2.msra.mxu0 0.0
      %2526 = vmatprep.subr.mxu0 0.0
      %2527 = vmatpush2.msra.mxu0 0.0
      %2528 = vmatprep.subr.mxu0 0.0
      %2529 = vmatpush2.msra.mxu0 0.0
      %2530 = vmatprep.subr.mxu0 0.0
      %2531 = vmatpush2.msra.mxu0 0.0
      %2532 = vmatprep.subr.mxu0 0.0
      %2533 = vmatpush2.msra.mxu0 0.0
      %2534 = vmatprep.mubr.f32.mxu0 0.0
      %2535 = vmatmul.mubr.f32.gmra.mxu0 %v2328
      %v2536 = vpop.f32.mrf.mxu0
      %v2537 = vadd.f32 %v2467, %v2536
      %v2538 = vpop.f32.mrf.mxu0
      %2539 = vdwg.mxu0
      %vm2540 = vcmp.ge.f32.partialorder %v2537, 0.0
      %v2541 = vmul.f32 %v2537, 0.2
      %v2542 = vsel %vm2540, %v2537, %v2541
      %v2543 = vld [vmem:[%s15] sm:$0x1]
      %v2544 = vmul.f32 %v2542, %v2543
      %v2545 = vld [vmem:[%s16] sm:$0x1]
      %v2546 = vadd.f32 %v2544, %v2545
      %v2547 = vld [vmem:[%s17] sm:$0x1]
      %v2548 = vmul.f32 %v2546, %v2547
      %vm2549 = vcmask 1040384
      %v2550 = vsel %vm2549, %v2548, 0.0
      %2551 = vadd.xlane.f32.xlu0 %v2550
      %v2552 = vpop.xlane.xlu0 %2551
      %v2553 = vadd.f32 %v2552, 0.0
      %v2554 = vld [vmem:[#allocation10] sm:$0x1]
      %v2555 = vadd.f32 %v2553, %v2554
      %v2556 = vsub.f32 0.0, %v2555
      %v2557 = vmul.f32 %v2556, 1.442695
      %v2558 = vpow.pop %v2557
      %v2559 = vadd.f32 %v2558, 1.0
      %v2560 = vrcp.pop %v2559
      %v2561 = vmul.f32 1.0, %v2560
      %vm2562 = vcmask 0
      %2563 = vst.msk [vmem:[%s600] sm:$0x1] %vm2562, %v2561
      %p2564 = scmp.lt.s32.totalorder %s32, 1
      %s2565 = scalar_select %p2564, %s32, 1
      %s2566 = scalar_lea.vmem %s19, %s2565
      // Predicated region
      $region97: #{tpu_custom_call.1} parent=95 // pred_check
        %p2567 = pneg %p454
      $region98: #{tpu_custom_call.1} parent=95 // pred_check_branch
        %2569 = sbr.rel (%p2567) target = $region100
      $region99: #{tpu_custom_call.1} parent=95 // pred_region
        _
      $region100: #{tpu_custom_call.1} parent=95 // pred_fallthru
        _
    $region96: #{tpu_custom_call.1} parent=5 // pred_fallthru
      _
    %p2570 = scmp.le.s32.totalorder 2, %s27
    // Predicated region
    $region101: #{tpu_custom_call.1} parent=5 // pred_check
      %p2571 = pneg %p2570
    $region102: #{tpu_custom_call.1} parent=5 // pred_check_branch
      %2573 = sbr.rel (%p2571) target = $region104
    $region103: #{tpu_custom_call.1} parent=5 // pred_region
      %s2574 = ssub.s32 %s27, 2
      // Predicated region
      $region105: #{tpu_custom_call.1} parent=103 // pred_check
        %p2575 = pneg %p460
      $region106: #{tpu_custom_call.1} parent=103 // pred_check_branch
        %2577 = sbr.rel (%p2575) target = $region108
      $region107: #{tpu_custom_call.1} parent=103 // pred_region
        %p2578 = scmp.lt.s32.totalorder %s33, 1
        %s2579 = scalar_select %p2578, %s33, 1
        %s2580 = scalar_lea.vmem %s19, %s2579
      $region108: #{tpu_custom_call.1} parent=103 // pred_fallthru
        _
    $region104: #{tpu_custom_call.1} parent=5 // pred_fallthru
      _
  $region6: #{tpu_custom_call.1} parent=0 // loop_footer
    %s31 = sadd.s32 1, %s27
  $region7: #{tpu_custom_call.1} parent=0 // loop_footer_branch
    %26 = sbr.rel target = $region3
  $region8: #{tpu_custom_call.1} parent=0 // loop_exit
    _

</llo_original>
